<compile_context>
chip_gen: v7x
topology: tpu7x:2x2x1
jax: 0.10.0
libtpu: 0.0.40
codegen_flags: <defaults>
</compile_context>

<pallas_src>
import functools
import math

import jax
import jax.numpy as jnp
from jax.experimental import pallas as pl
from jax.experimental.pallas import tpu as pltpu

# ------------------------- model hyper-parameters (small) -------------------
VOCAB = 30          # len(vocab)
VOCAB_PAD = 128     # lane-dense padded vocab for the classifier / logits
HIDDEN = 32         # config['hidden_dim']
NUM_HEADS = 4
HEAD_DIM = HIDDEN // NUM_HEADS
INTERMEDIATE = 64
NUM_LAYERS = 2
MAX_POS = 16
BATCH = 2
SEQ = 8
LANES = 128
NEG_INF = -1e9


# ----------------------------- slab layouts ----------------------------------
def _mat_layout(num_layers, seq):
    """Row layout of the [R,128] matrix slab. All offsets are multiples of 8."""
    lay, off = {}, 0

    def add(name, rows, cols):
        nonlocal off
        lay[name] = (off, rows, cols)
        off += rows

    add("word", VOCAB_PAD, HIDDEN)                 # padded word-embedding table
    add("pos", seq, HIDDEN)                        # position embeddings [:seq]
    for l in range(num_layers):
        add(f"wqkv{l}", HIDDEN, 3 * HIDDEN)        # fused QKV projection
        add(f"wo{l}", HIDDEN, HIDDEN)
        add(f"w1{l}", HIDDEN, INTERMEDIATE)
        add(f"w2{l}", INTERMEDIATE, HIDDEN)
    add("cls_w", HIDDEN, VOCAB_PAD)
    total = ((off + 7) // 8) * 8
    return lay, total


def _vec_layout(num_layers):
    """Row layout of the [R,128] vector slab (one row per bias / LN param)."""
    lay, off = {}, 0

    def add(name, cols):
        nonlocal off
        lay[name] = (off, cols)
        off += 1

    add("typ", HIDDEN)
    add("emb_g", HIDDEN)
    add("emb_b", HIDDEN)
    for l in range(num_layers):
        add(f"bqkv{l}", 3 * HIDDEN)
        add(f"bo{l}", HIDDEN)
        add(f"ln1_g{l}", HIDDEN)
        add(f"ln1_b{l}", HIDDEN)
        add(f"bf1{l}", INTERMEDIATE)
        add(f"bf2{l}", HIDDEN)
        add(f"ln2_g{l}", HIDDEN)
        add(f"ln2_b{l}", HIDDEN)
    add("cls_b", VOCAB_PAD)
    total = ((off + 7) // 8) * 8
    return lay, total


# --------------------------- in-kernel math helpers --------------------------
def _one_hot(ids_col, num_classes):
    # ids_col: [M, 1] int32 -> [M, num_classes] f32 (embedding "gather" via MXU).
    iota = jax.lax.broadcasted_iota(jnp.int32, (ids_col.shape[0], num_classes), 1)
    return (iota == ids_col).astype(jnp.float32)


def _layernorm(x, gamma, beta, eps=1e-12):
    mu = jnp.mean(x, axis=-1, keepdims=True)
    var = jnp.mean(jnp.square(x - mu), axis=-1, keepdims=True)
    return (x - mu) * jax.lax.rsqrt(var + eps) * gamma + beta


def _softmax_approx(x):
    # attention-internal softmax: approx reciprocal (EUP slot, effectively free)
    e = jnp.exp(x - jnp.max(x, axis=-1, keepdims=True))
    return e * pl.reciprocal(jnp.sum(e, axis=-1, keepdims=True), approx=True)


# ------------------------------ fused kernel ---------------------------------
def _make_fused_kernel(num_layers, with_loss, seq):
    scale = 1.0 / math.sqrt(HEAD_DIM)
    mlay, _ = _mat_layout(num_layers, seq)
    vlay, _ = _vec_layout(num_layers)

    def kernel(*refs):
        if with_loss:
            x_ref, mask_ref, y_ref, m_ref, v_ref, o_ref = refs
        else:
            x_ref, mask_ref, m_ref, v_ref, o_ref = refs

        x_ids = x_ref[...]                     # [B*S, 1] int32
        mask = mask_ref[...]                   # [B, S]   f32
        B, S = mask.shape
        BS = B * S
        H = HIDDEN

        def W(name):                           # static slab slices: zero-cost views
            off, rows, cols = mlay[name]
            return m_ref[off:off + rows, 0:cols]

        def V(name):
            off, cols = vlay[name]
            return v_ref[off:off + 1, 0:cols]

        # ---- embeddings: one-hot @ table (MXU) + position + token-type, then LN
        emb = jnp.dot(_one_hot(x_ids, VOCAB_PAD), W("word"),
                      preferred_element_type=jnp.float32)          # [BS, H]
        emb = emb + V("typ")                                        # token-type 0
        emb = (emb.reshape(B, S, H) + W("pos")[None, :, :]).reshape(BS, H)
        h = _layernorm(emb, V("emb_g"), V("emb_b"))

        # additive attention-mask bias: computed ONCE per forward, [B, 1, S]
        bias = ((1.0 - mask) * NEG_INF).reshape(B, 1, S)

        for l in range(num_layers):
            # fused QKV projection: one [BS,H] x [H,3H] MXU push
            qkv = jnp.dot(h, W(f"wqkv{l}"),
                          preferred_element_type=jnp.float32) + V(f"bqkv{l}")

            # attention: static head loop, batched over B via 3-D einsums
            heads = []
            for n in range(NUM_HEADS):
                c0 = n * HEAD_DIM
                q = qkv[:, c0:c0 + HEAD_DIM].reshape(B, S, HEAD_DIM)
                k = qkv[:, H + c0:H + c0 + HEAD_DIM].reshape(B, S, HEAD_DIM)
                v = qkv[:, 2 * H + c0:2 * H + c0 + HEAD_DIM].reshape(B, S, HEAD_DIM)
                s = jnp.einsum('bqd,bkd->bqk', q, k,
                               preferred_element_type=jnp.float32) * scale
                p = _softmax_approx(s + bias)
                ctx = jnp.einsum('bqk,bkd->bqd', p, v,
                                 preferred_element_type=jnp.float32)
                heads.append(ctx.reshape(BS, HEAD_DIM))
            ctx = jnp.concatenate(heads, axis=1)                    # [BS, H]

            # out-proj + residual + LayerNorm
            h1 = _layernorm(
                h + jnp.dot(ctx, W(f"wo{l}"),
                            preferred_element_type=jnp.float32) + V(f"bo{l}"),
                V(f"ln1_g{l}"), V(f"ln1_b{l}"))
            # FFN (GELU, tanh approx == original BERT gelu) + residual + LayerNorm
            ff = jax.nn.gelu(
                jnp.dot(h1, W(f"w1{l}"),
                        preferred_element_type=jnp.float32) + V(f"bf1{l}"))
            ff = jnp.dot(ff, W(f"w2{l}"),
                         preferred_element_type=jnp.float32) + V(f"bf2{l}")
            h = _layernorm(h1 + ff, V(f"ln2_g{l}"), V(f"ln2_b{l}"))

        # classifier head: lane-dense (padded-to-128) logits; padded columns carry
        # a -1e9 bias so they contribute nothing to softmax / logsumexp.
        logits = jnp.dot(h, W("cls_w"),
                         preferred_element_type=jnp.float32) + V("cls_b")

        if with_loss:
            y_ids = y_ref[...]                                      # [BS, 1] int32
            m = jnp.max(logits, axis=-1, keepdims=True)
            lse = m + jnp.log(jnp.sum(jnp.exp(logits - m), axis=-1, keepdims=True))
            tgt = jnp.sum(_one_hot(y_ids, VOCAB_PAD) * logits,
                          axis=-1, keepdims=True)
            per_tok = lse - tgt                                     # [BS, 1]
            # mean over ALL token positions — matches F.cross_entropy default
            o_ref[...] = jnp.sum(per_tok, axis=0, keepdims=True) * (1.0 / BS)
        else:
            # user-visible output: EXACT softmax (no approx reciprocal here)
            e = jnp.exp(logits - jnp.max(logits, axis=-1, keepdims=True))
            o_ref[...] = e / jnp.sum(e, axis=-1, keepdims=True)     # [BS, VOCAB_PAD]

    return kernel


@functools.lru_cache(maxsize=None)
def _get_forward_fn(num_layers, with_loss, seq):
    """Built (and Mosaic-compiled) once per configuration; jit-cached thereafter."""
    kernel = _make_fused_kernel(num_layers, with_loss, seq)
    vmem = pl.BlockSpec(memory_space=pltpu.MemorySpace.VMEM)

    def fwd(*args):
        bs = args[0].shape[0]
        out_shape = (jax.ShapeDtypeStruct((1, 1), jnp.float32) if with_loss
                     else jax.ShapeDtypeStruct((bs, VOCAB_PAD), jnp.float32))
        return pl.pallas_call(
            kernel,
            out_shape=out_shape,
            in_specs=[vmem] * len(args),
            out_specs=vmem,
        )(*args)

    return jax.jit(fwd)


# ------------------------------- parameter init ------------------------------
def init_params(key):
    def nrm(k, shape):
        return 0.02 * jax.random.normal(k, shape, jnp.float32)

    keys = iter(jax.random.split(key, 8 + NUM_LAYERS * 16))
    params = {
        "word_emb": nrm(next(keys), (VOCAB, HIDDEN)),
        "pos_emb": nrm(next(keys), (MAX_POS, HIDDEN)),
        "type_emb": nrm(next(keys), (2, HIDDEN)),
        "emb_ln_g": jnp.ones((HIDDEN,), jnp.float32),
        "emb_ln_b": jnp.zeros((HIDDEN,), jnp.float32),
        "classify_w": nrm(next(keys), (HIDDEN, VOCAB)),
        "classify_b": jnp.zeros((VOCAB,), jnp.float32),
        "layers": [],
    }
    for _ in range(NUM_LAYERS):
        layer = {
            "wq": nrm(next(keys), (HIDDEN, HIDDEN)), "bq": jnp.zeros((HIDDEN,)),
            "wk": nrm(next(keys), (HIDDEN, HIDDEN)), "bk": jnp.zeros((HIDDEN,)),
            "wv": nrm(next(keys), (HIDDEN, HIDDEN)), "bv": jnp.zeros((HIDDEN,)),
            "wo": nrm(next(keys), (HIDDEN, HIDDEN)), "bo": jnp.zeros((HIDDEN,)),
            "ln1_g": jnp.ones((HIDDEN,)), "ln1_b": jnp.zeros((HIDDEN,)),
            "w1": nrm(next(keys), (HIDDEN, INTERMEDIATE)),
            "b1": jnp.zeros((INTERMEDIATE,)),
            "w2": nrm(next(keys), (INTERMEDIATE, HIDDEN)),
            "b2": jnp.zeros((HIDDEN,)),
            "ln2_g": jnp.ones((HIDDEN,)), "ln2_b": jnp.zeros((HIDDEN,)),
        }
        params["layers"].append(jax.tree.map(lambda a: a.astype(jnp.float32), layer))
    return params


def pack_params(params, seq_len):
    """One-time packing: fuse QKV, pad vocab to 128 lanes, and pack ALL weights
    into two lane-dense [R,128] f32 slabs (matrix slab + vector slab)."""
    H = HIDDEN
    nl = len(params["layers"])
    mlay, mrows = _mat_layout(nl, seq_len)
    vlay, vrows = _vec_layout(nl)
    mat = jnp.zeros((mrows, LANES), jnp.float32)
    vec = jnp.zeros((vrows, LANES), jnp.float32)

    def put_m(name, a):
        nonlocal mat
        off, rows, cols = mlay[name]
        mat = mat.at[off:off + rows, :cols].set(a.astype(jnp.float32))

    def put_v(name, a):
        nonlocal vec
        off, cols = vlay[name]
        vec = vec.at[off, :cols].set(a.reshape(-1).astype(jnp.float32))

    word_pad = jnp.zeros((VOCAB_PAD, H), jnp.float32).at[:VOCAB].set(params["word_emb"])
    put_m("word", word_pad)
    put_m("pos", params["pos_emb"][:seq_len])
    put_v("typ", params["type_emb"][0])
    put_v("emb_g", params["emb_ln_g"])
    put_v("emb_b", params["emb_ln_b"])
    for l, p in enumerate(params["layers"]):
        put_m(f"wqkv{l}", jnp.concatenate([p["wq"], p["wk"], p["wv"]], axis=1))
        put_v(f"bqkv{l}", jnp.concatenate([p["bq"], p["bk"], p["bv"]]))
        put_m(f"wo{l}", p["wo"])
        put_v(f"bo{l}", p["bo"])
        put_v(f"ln1_g{l}", p["ln1_g"])
        put_v(f"ln1_b{l}", p["ln1_b"])
        put_m(f"w1{l}", p["w1"])
        put_v(f"bf1{l}", p["b1"])
        put_m(f"w2{l}", p["w2"])
        put_v(f"bf2{l}", p["b2"])
        put_v(f"ln2_g{l}", p["ln2_g"])
        put_v(f"ln2_b{l}", p["ln2_b"])
    cls_w = jnp.zeros((H, VOCAB_PAD), jnp.float32).at[:, :VOCAB].set(params["classify_w"])
    put_m("cls_w", cls_w)
    cls_b = jnp.full((VOCAB_PAD,), NEG_INF, jnp.float32).at[:VOCAB].set(params["classify_b"])
    put_v("cls_b", cls_b)
    return {"mat": mat, "vec": vec, "num_layers": nl, "seq": seq_len}


# ---------------------------------- forward ----------------------------------
def get_model_forward(packed, x, y=None, mask=None):
    """Mirrors getModel.forward(x, y=None, mask=None)."""
    B, S = x.shape
    assert S == packed["seq"], "packed position embeddings expect this seq length"
    if mask is None:
        mask = jnp.ones((B, S), jnp.float32)
    mask = mask.astype(jnp.float32)
    x_ids = x.reshape(B * S, 1).astype(jnp.int32)
    nl = packed["num_layers"]

    if y is not None:
        y_ids = y.reshape(B * S, 1).astype(jnp.int32)
        fwd = _get_forward_fn(nl, True, S)
        loss = fwd(x_ids, mask, y_ids, packed["mat"], packed["vec"])
        return loss[0, 0]                                    # scalar mean CE loss

    fwd = _get_forward_fn(nl, False, S)
    probs = fwd(x_ids, mask, packed["mat"], packed["vec"])
    return probs[:, :VOCAB].reshape(B, S, VOCAB)             # slice away padding


# ------------------------------------ main ------------------------------------
if __name__ == "__main__":
    key = jax.random.PRNGKey(0)
    k_param, k_x, k_y = jax.random.split(key, 3)

    params = init_params(k_param)
    packed = pack_params(params, SEQ)
    x = jax.random.randint(k_x, (BATCH, SEQ), 0, VOCAB, dtype=jnp.int32)
    y = jax.random.randint(k_y, (BATCH, SEQ), 0, VOCAB, dtype=jnp.int32)
    mask = jnp.ones((BATCH, SEQ), jnp.float32).at[:, -2:].set(0.0)

    probs = get_model_forward(packed, x, mask=mask)       # inference path
    loss = get_model_forward(packed, x, y=y, mask=mask)   # training-loss path
    probs2 = get_model_forward(packed, x, mask=mask)      # hits jit/lru caches
    jax.block_until_ready((probs, loss, probs2))

    assert probs.shape == (BATCH, SEQ, VOCAB)
    # exact-divide output softmax => tight tolerance
    assert jnp.allclose(jnp.sum(probs, axis=-1), 1.0, atol=1e-5)
    assert jnp.allclose(probs, probs2)
    assert bool(jnp.isfinite(loss))
    print("KERNEL_OK")
</pallas_src>

<mosaic_0001>
module attributes {stable_mosaic.version = 11 : i64} {
  func.func @kernel(%arg0: memref<16x1xi32, #tpu.memory_space<vmem>>, %arg1: memref<2x8xf32, #tpu.memory_space<vmem>>, %arg2: memref<488x128xf32, #tpu.memory_space<vmem>>, %arg3: memref<24x128xf32, #tpu.memory_space<vmem>>, %arg4: memref<16x128xf32, #tpu.memory_space<vmem>>) attributes {dimension_semantics = [], scalar_prefetch = 0 : i64, scratch_operands = 0 : i64, tpu.core_type = #tpu.core_type<tc>} {
    %c0 = arith.constant 0 : index
    %c0_0 = arith.constant 0 : index
    %0 = vector.load %arg0[%c0, %c0_0] : memref<16x1xi32, #tpu.memory_space<vmem>>, vector<16x1xi32>
    %c0_1 = arith.constant 0 : index
    %c0_2 = arith.constant 0 : index
    %1 = vector.load %arg1[%c0_1, %c0_2] : memref<2x8xf32, #tpu.memory_space<vmem>>, vector<2x8xf32>
    %2 = tpu.iota {dimensions = array<i32: 1>} : vector<16x128xi32>
    %3 = vector.broadcast %0 : vector<16x1xi32> to vector<16x128xi32>
    %4 = arith.cmpi eq, %2, %3 : vector<16x128xi32>
    %5 = arith.extui %4 : vector<16x128xi1> to vector<16x128xi32>
    %6 = arith.sitofp %5 : vector<16x128xi32> to vector<16x128xf32>
    %c0_3 = arith.constant 0 : index
    %c0_4 = arith.constant 0 : index
    %7 = vector.load %arg2[%c0_3, %c0_4] : memref<488x128xf32, #tpu.memory_space<vmem>>, vector<128x32xf32>
    %cst = arith.constant dense<0.000000e+00> : vector<16x32xf32>
    %8 = tpu.matmul %6, %7, %cst {dimension_numbers = #tpu.dot_dimension_numbers<[1], [0], [0], [1], [0, 0, 1, 1], [], []>} : vector<16x128xf32>, vector<128x32xf32>, vector<16x32xf32> -> vector<16x32xf32>
    %c0_5 = arith.constant 0 : index
    %c0_6 = arith.constant 0 : index
    %9 = vector.load %arg3[%c0_5, %c0_6] : memref<24x128xf32, #tpu.memory_space<vmem>>, vector<1x32xf32>
    %10 = vector.broadcast %9 : vector<1x32xf32> to vector<16x32xf32>
    %11 = arith.addf %8, %10 : vector<16x32xf32>
    %12 = vector.shape_cast %11 : vector<16x32xf32> to vector<2x8x32xf32>
    %c128 = arith.constant 128 : index
    %c0_7 = arith.constant 0 : index
    %13 = vector.load %arg2[%c128, %c0_7] : memref<488x128xf32, #tpu.memory_space<vmem>>, vector<8x32xf32>
    %14 = vector.shape_cast %13 : vector<8x32xf32> to vector<1x8x32xf32>
    %15 = vector.broadcast %14 : vector<1x8x32xf32> to vector<2x8x32xf32>
    %16 = arith.addf %12, %15 : vector<2x8x32xf32>
    %17 = vector.shape_cast %16 : vector<2x8x32xf32> to vector<16x32xf32>
    %c1 = arith.constant 1 : index
    %c0_8 = arith.constant 0 : index
    %18 = vector.load %arg3[%c1, %c0_8] : memref<24x128xf32, #tpu.memory_space<vmem>>, vector<1x32xf32>
    %c2 = arith.constant 2 : index
    %c0_9 = arith.constant 0 : index
    %19 = vector.load %arg3[%c2, %c0_9] : memref<24x128xf32, #tpu.memory_space<vmem>>, vector<1x32xf32>
    %cst_10 = arith.constant dense<0.000000e+00> : vector<16xf32>
    %20 = vector.multi_reduction <add>, %17, %cst_10 [1] : vector<16x32xf32> to vector<16xf32>
    %21 = vector.shape_cast %20 : vector<16xf32> to vector<16x1xf32>
    %cst_11 = arith.constant 3.200000e+01 : f32
    %22 = vector.broadcast %cst_11 : f32 to vector<16x1xf32>
    %23 = arith.divf %21, %22 : vector<16x1xf32>
    %24 = vector.broadcast %23 : vector<16x1xf32> to vector<16x32xf32>
    %25 = arith.subf %17, %24 : vector<16x32xf32>
    %26 = arith.mulf %25, %25 : vector<16x32xf32>
    %cst_12 = arith.constant dense<0.000000e+00> : vector<16xf32>
    %27 = vector.multi_reduction <add>, %26, %cst_12 [1] : vector<16x32xf32> to vector<16xf32>
    %28 = vector.shape_cast %27 : vector<16xf32> to vector<16x1xf32>
    %cst_13 = arith.constant 3.200000e+01 : f32
    %29 = vector.broadcast %cst_13 : f32 to vector<16x1xf32>
    %30 = arith.divf %28, %29 : vector<16x1xf32>
    %31 = vector.broadcast %23 : vector<16x1xf32> to vector<16x32xf32>
    %32 = arith.subf %17, %31 : vector<16x32xf32>
    %cst_14 = arith.constant 9.99999996E-13 : f32
    %33 = vector.broadcast %cst_14 : f32 to vector<16x1xf32>
    %34 = arith.addf %30, %33 : vector<16x1xf32>
    %35 = math.rsqrt %34 : vector<16x1xf32>
    %36 = vector.broadcast %35 : vector<16x1xf32> to vector<16x32xf32>
    %37 = arith.mulf %32, %36 : vector<16x32xf32>
    %38 = vector.broadcast %18 : vector<1x32xf32> to vector<16x32xf32>
    %39 = arith.mulf %37, %38 : vector<16x32xf32>
    %40 = vector.broadcast %19 : vector<1x32xf32> to vector<16x32xf32>
    %41 = arith.addf %39, %40 : vector<16x32xf32>
    %cst_15 = arith.constant 1.000000e+00 : f32
    %42 = vector.broadcast %cst_15 : f32 to vector<2x8xf32>
    %43 = arith.subf %42, %1 : vector<2x8xf32>
    %cst_16 = arith.constant -1.000000e+09 : f32
    %44 = vector.broadcast %cst_16 : f32 to vector<2x8xf32>
    %45 = arith.mulf %43, %44 : vector<2x8xf32>
    %46 = vector.shape_cast %45 : vector<2x8xf32> to vector<2x1x8xf32>
    %c136 = arith.constant 136 : index
    %c0_17 = arith.constant 0 : index
    %47 = vector.load %arg2[%c136, %c0_17] : memref<488x128xf32, #tpu.memory_space<vmem>>, vector<32x96xf32>
    %cst_18 = arith.constant dense<0.000000e+00> : vector<16x96xf32>
    %48 = tpu.matmul %41, %47, %cst_18 {dimension_numbers = #tpu.dot_dimension_numbers<[1], [0], [0], [1], [0, 0, 1, 1], [], []>} : vector<16x32xf32>, vector<32x96xf32>, vector<16x96xf32> -> vector<16x96xf32>
    %c3 = arith.constant 3 : index
    %c0_19 = arith.constant 0 : index
    %49 = vector.load %arg3[%c3, %c0_19] : memref<24x128xf32, #tpu.memory_space<vmem>>, vector<1x96xf32>
    %50 = vector.broadcast %49 : vector<1x96xf32> to vector<16x96xf32>
    %51 = arith.addf %48, %50 : vector<16x96xf32>
    %52 = vector.extract_strided_slice %51 {offsets = [0, 0], sizes = [16, 8], strides = [1, 1]} : vector<16x96xf32> to vector<16x8xf32>
    %53 = vector.shape_cast %52 : vector<16x8xf32> to vector<2x8x8xf32>
    %54 = vector.extract_strided_slice %51 {offsets = [0, 32], sizes = [16, 8], strides = [1, 1]} : vector<16x96xf32> to vector<16x8xf32>
    %55 = vector.shape_cast %54 : vector<16x8xf32> to vector<2x8x8xf32>
    %56 = vector.extract_strided_slice %51 {offsets = [0, 64], sizes = [16, 8], strides = [1, 1]} : vector<16x96xf32> to vector<16x8xf32>
    %57 = vector.shape_cast %56 : vector<16x8xf32> to vector<2x8x8xf32>
    "tpu.trace_start"() <{level = 10 : i32, message = "bqd,bkd->bqk"}> : () -> ()
    %cst_20 = arith.constant dense<0.000000e+00> : vector<2x8x8xf32>
    %58 = tpu.matmul %53, %55, %cst_20 {dimension_numbers = #tpu.dot_dimension_numbers<[2], [2], [1], [1], [0, 0, 0, 1, 1, 1], [0], [0]>} : vector<2x8x8xf32>, vector<2x8x8xf32>, vector<2x8x8xf32> -> vector<2x8x8xf32>
    "tpu.trace_stop"() : () -> ()
    %cst_21 = arith.constant 0.353553385 : f32
    %59 = vector.broadcast %cst_21 : f32 to vector<2x8x8xf32>
    %60 = arith.mulf %58, %59 : vector<2x8x8xf32>
    %61 = vector.broadcast %46 : vector<2x1x8xf32> to vector<2x8x8xf32>
    %62 = arith.addf %60, %61 : vector<2x8x8xf32>
    %cst_22 = arith.constant dense<0xFF800000> : vector<2x8xf32>
    %63 = vector.multi_reduction <maximumf>, %62, %cst_22 [2] : vector<2x8x8xf32> to vector<2x8xf32>
    %64 = vector.shape_cast %63 : vector<2x8xf32> to vector<2x8x1xf32>
    %65 = vector.broadcast %64 : vector<2x8x1xf32> to vector<2x8x8xf32>
    %66 = arith.subf %62, %65 : vector<2x8x8xf32>
    %67 = math.exp %66 : vector<2x8x8xf32>
    %cst_23 = arith.constant dense<0.000000e+00> : vector<2x8xf32>
    %68 = vector.multi_reduction <add>, %67, %cst_23 [2] : vector<2x8x8xf32> to vector<2x8xf32>
    %69 = vector.shape_cast %68 : vector<2x8xf32> to vector<2x8x1xf32>
    %70 = tpu.reciprocal %69 {approx = true} : vector<2x8x1xf32> -> vector<2x8x1xf32>
    %71 = vector.broadcast %70 : vector<2x8x1xf32> to vector<2x8x8xf32>
    %72 = arith.mulf %67, %71 : vector<2x8x8xf32>
    "tpu.trace_start"() <{level = 10 : i32, message = "bqk,bkd->bqd"}> : () -> ()
    %cst_24 = arith.constant dense<0.000000e+00> : vector<2x8x8xf32>
    %73 = tpu.matmul %72, %57, %cst_24 {dimension_numbers = #tpu.dot_dimension_numbers<[2], [1], [1], [2], [0, 0, 0, 1, 1, 2], [0], [0]>} : vector<2x8x8xf32>, vector<2x8x8xf32>, vector<2x8x8xf32> -> vector<2x8x8xf32>
    "tpu.trace_stop"() : () -> ()
    %74 = vector.shape_cast %73 : vector<2x8x8xf32> to vector<16x8xf32>
    %75 = vector.extract_strided_slice %51 {offsets = [0, 8], sizes = [16, 8], strides = [1, 1]} : vector<16x96xf32> to vector<16x8xf32>
    %76 = vector.shape_cast %75 : vector<16x8xf32> to vector<2x8x8xf32>
    %77 = vector.extract_strided_slice %51 {offsets = [0, 40], sizes = [16, 8], strides = [1, 1]} : vector<16x96xf32> to vector<16x8xf32>
    %78 = vector.shape_cast %77 : vector<16x8xf32> to vector<2x8x8xf32>
    %79 = vector.extract_strided_slice %51 {offsets = [0, 72], sizes = [16, 8], strides = [1, 1]} : vector<16x96xf32> to vector<16x8xf32>
    %80 = vector.shape_cast %79 : vector<16x8xf32> to vector<2x8x8xf32>
    "tpu.trace_start"() <{level = 10 : i32, message = "bqd,bkd->bqk"}> : () -> ()
    %cst_25 = arith.constant dense<0.000000e+00> : vector<2x8x8xf32>
    %81 = tpu.matmul %76, %78, %cst_25 {dimension_numbers = #tpu.dot_dimension_numbers<[2], [2], [1], [1], [0, 0, 0, 1, 1, 1], [0], [0]>} : vector<2x8x8xf32>, vector<2x8x8xf32>, vector<2x8x8xf32> -> vector<2x8x8xf32>
    "tpu.trace_stop"() : () -> ()
    %cst_26 = arith.constant 0.353553385 : f32
    %82 = vector.broadcast %cst_26 : f32 to vector<2x8x8xf32>
    %83 = arith.mulf %81, %82 : vector<2x8x8xf32>
    %84 = vector.broadcast %46 : vector<2x1x8xf32> to vector<2x8x8xf32>
    %85 = arith.addf %83, %84 : vector<2x8x8xf32>
    %cst_27 = arith.constant dense<0xFF800000> : vector<2x8xf32>
    %86 = vector.multi_reduction <maximumf>, %85, %cst_27 [2] : vector<2x8x8xf32> to vector<2x8xf32>
    %87 = vector.shape_cast %86 : vector<2x8xf32> to vector<2x8x1xf32>
    %88 = vector.broadcast %87 : vector<2x8x1xf32> to vector<2x8x8xf32>
    %89 = arith.subf %85, %88 : vector<2x8x8xf32>
    %90 = math.exp %89 : vector<2x8x8xf32>
    %cst_28 = arith.constant dense<0.000000e+00> : vector<2x8xf32>
    %91 = vector.multi_reduction <add>, %90, %cst_28 [2] : vector<2x8x8xf32> to vector<2x8xf32>
    %92 = vector.shape_cast %91 : vector<2x8xf32> to vector<2x8x1xf32>
    %93 = tpu.reciprocal %92 {approx = true} : vector<2x8x1xf32> -> vector<2x8x1xf32>
    %94 = vector.broadcast %93 : vector<2x8x1xf32> to vector<2x8x8xf32>
    %95 = arith.mulf %90, %94 : vector<2x8x8xf32>
    "tpu.trace_start"() <{level = 10 : i32, message = "bqk,bkd->bqd"}> : () -> ()
    %cst_29 = arith.constant dense<0.000000e+00> : vector<2x8x8xf32>
    %96 = tpu.matmul %95, %80, %cst_29 {dimension_numbers = #tpu.dot_dimension_numbers<[2], [1], [1], [2], [0, 0, 0, 1, 1, 2], [0], [0]>} : vector<2x8x8xf32>, vector<2x8x8xf32>, vector<2x8x8xf32> -> vector<2x8x8xf32>
    "tpu.trace_stop"() : () -> ()
    %97 = vector.shape_cast %96 : vector<2x8x8xf32> to vector<16x8xf32>
    %98 = vector.extract_strided_slice %51 {offsets = [0, 16], sizes = [16, 8], strides = [1, 1]} : vector<16x96xf32> to vector<16x8xf32>
    %99 = vector.shape_cast %98 : vector<16x8xf32> to vector<2x8x8xf32>
    %100 = vector.extract_strided_slice %51 {offsets = [0, 48], sizes = [16, 8], strides = [1, 1]} : vector<16x96xf32> to vector<16x8xf32>
    %101 = vector.shape_cast %100 : vector<16x8xf32> to vector<2x8x8xf32>
    %102 = vector.extract_strided_slice %51 {offsets = [0, 80], sizes = [16, 8], strides = [1, 1]} : vector<16x96xf32> to vector<16x8xf32>
    %103 = vector.shape_cast %102 : vector<16x8xf32> to vector<2x8x8xf32>
    "tpu.trace_start"() <{level = 10 : i32, message = "bqd,bkd->bqk"}> : () -> ()
    %cst_30 = arith.constant dense<0.000000e+00> : vector<2x8x8xf32>
    %104 = tpu.matmul %99, %101, %cst_30 {dimension_numbers = #tpu.dot_dimension_numbers<[2], [2], [1], [1], [0, 0, 0, 1, 1, 1], [0], [0]>} : vector<2x8x8xf32>, vector<2x8x8xf32>, vector<2x8x8xf32> -> vector<2x8x8xf32>
    "tpu.trace_stop"() : () -> ()
    %cst_31 = arith.constant 0.353553385 : f32
    %105 = vector.broadcast %cst_31 : f32 to vector<2x8x8xf32>
    %106 = arith.mulf %104, %105 : vector<2x8x8xf32>
    %107 = vector.broadcast %46 : vector<2x1x8xf32> to vector<2x8x8xf32>
    %108 = arith.addf %106, %107 : vector<2x8x8xf32>
    %cst_32 = arith.constant dense<0xFF800000> : vector<2x8xf32>
    %109 = vector.multi_reduction <maximumf>, %108, %cst_32 [2] : vector<2x8x8xf32> to vector<2x8xf32>
    %110 = vector.shape_cast %109 : vector<2x8xf32> to vector<2x8x1xf32>
    %111 = vector.broadcast %110 : vector<2x8x1xf32> to vector<2x8x8xf32>
    %112 = arith.subf %108, %111 : vector<2x8x8xf32>
    %113 = math.exp %112 : vector<2x8x8xf32>
    %cst_33 = arith.constant dense<0.000000e+00> : vector<2x8xf32>
    %114 = vector.multi_reduction <add>, %113, %cst_33 [2] : vector<2x8x8xf32> to vector<2x8xf32>
    %115 = vector.shape_cast %114 : vector<2x8xf32> to vector<2x8x1xf32>
    %116 = tpu.reciprocal %115 {approx = true} : vector<2x8x1xf32> -> vector<2x8x1xf32>
    %117 = vector.broadcast %116 : vector<2x8x1xf32> to vector<2x8x8xf32>
    %118 = arith.mulf %113, %117 : vector<2x8x8xf32>
    "tpu.trace_start"() <{level = 10 : i32, message = "bqk,bkd->bqd"}> : () -> ()
    %cst_34 = arith.constant dense<0.000000e+00> : vector<2x8x8xf32>
    %119 = tpu.matmul %118, %103, %cst_34 {dimension_numbers = #tpu.dot_dimension_numbers<[2], [1], [1], [2], [0, 0, 0, 1, 1, 2], [0], [0]>} : vector<2x8x8xf32>, vector<2x8x8xf32>, vector<2x8x8xf32> -> vector<2x8x8xf32>
    "tpu.trace_stop"() : () -> ()
    %120 = vector.shape_cast %119 : vector<2x8x8xf32> to vector<16x8xf32>
    %121 = vector.extract_strided_slice %51 {offsets = [0, 24], sizes = [16, 8], strides = [1, 1]} : vector<16x96xf32> to vector<16x8xf32>
    %122 = vector.shape_cast %121 : vector<16x8xf32> to vector<2x8x8xf32>
    %123 = vector.extract_strided_slice %51 {offsets = [0, 56], sizes = [16, 8], strides = [1, 1]} : vector<16x96xf32> to vector<16x8xf32>
    %124 = vector.shape_cast %123 : vector<16x8xf32> to vector<2x8x8xf32>
    %125 = vector.extract_strided_slice %51 {offsets = [0, 88], sizes = [16, 8], strides = [1, 1]} : vector<16x96xf32> to vector<16x8xf32>
    %126 = vector.shape_cast %125 : vector<16x8xf32> to vector<2x8x8xf32>
    "tpu.trace_start"() <{level = 10 : i32, message = "bqd,bkd->bqk"}> : () -> ()
    %cst_35 = arith.constant dense<0.000000e+00> : vector<2x8x8xf32>
    %127 = tpu.matmul %122, %124, %cst_35 {dimension_numbers = #tpu.dot_dimension_numbers<[2], [2], [1], [1], [0, 0, 0, 1, 1, 1], [0], [0]>} : vector<2x8x8xf32>, vector<2x8x8xf32>, vector<2x8x8xf32> -> vector<2x8x8xf32>
    "tpu.trace_stop"() : () -> ()
    %cst_36 = arith.constant 0.353553385 : f32
    %128 = vector.broadcast %cst_36 : f32 to vector<2x8x8xf32>
    %129 = arith.mulf %127, %128 : vector<2x8x8xf32>
    %130 = vector.broadcast %46 : vector<2x1x8xf32> to vector<2x8x8xf32>
    %131 = arith.addf %129, %130 : vector<2x8x8xf32>
    %cst_37 = arith.constant dense<0xFF800000> : vector<2x8xf32>
    %132 = vector.multi_reduction <maximumf>, %131, %cst_37 [2] : vector<2x8x8xf32> to vector<2x8xf32>
    %133 = vector.shape_cast %132 : vector<2x8xf32> to vector<2x8x1xf32>
    %134 = vector.broadcast %133 : vector<2x8x1xf32> to vector<2x8x8xf32>
    %135 = arith.subf %131, %134 : vector<2x8x8xf32>
    %136 = math.exp %135 : vector<2x8x8xf32>
    %cst_38 = arith.constant dense<0.000000e+00> : vector<2x8xf32>
    %137 = vector.multi_reduction <add>, %136, %cst_38 [2] : vector<2x8x8xf32> to vector<2x8xf32>
    %138 = vector.shape_cast %137 : vector<2x8xf32> to vector<2x8x1xf32>
    %139 = tpu.reciprocal %138 {approx = true} : vector<2x8x1xf32> -> vector<2x8x1xf32>
    %140 = vector.broadcast %139 : vector<2x8x1xf32> to vector<2x8x8xf32>
    %141 = arith.mulf %136, %140 : vector<2x8x8xf32>
    "tpu.trace_start"() <{level = 10 : i32, message = "bqk,bkd->bqd"}> : () -> ()
    %cst_39 = arith.constant dense<0.000000e+00> : vector<2x8x8xf32>
    %142 = tpu.matmul %141, %126, %cst_39 {dimension_numbers = #tpu.dot_dimension_numbers<[2], [1], [1], [2], [0, 0, 0, 1, 1, 2], [0], [0]>} : vector<2x8x8xf32>, vector<2x8x8xf32>, vector<2x8x8xf32> -> vector<2x8x8xf32>
    "tpu.trace_stop"() : () -> ()
    %143 = vector.shape_cast %142 : vector<2x8x8xf32> to vector<16x8xf32>
    %144 = tpu.concatenate %74, %97, %120, %143 in 1 : vector<16x8xf32>, vector<16x8xf32>, vector<16x8xf32>, vector<16x8xf32> -> vector<16x32xf32>
    %c168 = arith.constant 168 : index
    %c0_40 = arith.constant 0 : index
    %145 = vector.load %arg2[%c168, %c0_40] : memref<488x128xf32, #tpu.memory_space<vmem>>, vector<32x32xf32>
    %cst_41 = arith.constant dense<0.000000e+00> : vector<16x32xf32>
    %146 = tpu.matmul %144, %145, %cst_41 {dimension_numbers = #tpu.dot_dimension_numbers<[1], [0], [0], [1], [0, 0, 1, 1], [], []>} : vector<16x32xf32>, vector<32x32xf32>, vector<16x32xf32> -> vector<16x32xf32>
    %147 = arith.addf %41, %146 : vector<16x32xf32>
    %c4 = arith.constant 4 : index
    %c0_42 = arith.constant 0 : index
    %148 = vector.load %arg3[%c4, %c0_42] : memref<24x128xf32, #tpu.memory_space<vmem>>, vector<1x32xf32>
    %149 = vector.broadcast %148 : vector<1x32xf32> to vector<16x32xf32>
    %150 = arith.addf %147, %149 : vector<16x32xf32>
    %c5 = arith.constant 5 : index
    %c0_43 = arith.constant 0 : index
    %151 = vector.load %arg3[%c5, %c0_43] : memref<24x128xf32, #tpu.memory_space<vmem>>, vector<1x32xf32>
    %c6 = arith.constant 6 : index
    %c0_44 = arith.constant 0 : index
    %152 = vector.load %arg3[%c6, %c0_44] : memref<24x128xf32, #tpu.memory_space<vmem>>, vector<1x32xf32>
    %cst_45 = arith.constant dense<0.000000e+00> : vector<16xf32>
    %153 = vector.multi_reduction <add>, %150, %cst_45 [1] : vector<16x32xf32> to vector<16xf32>
    %154 = vector.shape_cast %153 : vector<16xf32> to vector<16x1xf32>
    %cst_46 = arith.constant 3.200000e+01 : f32
    %155 = vector.broadcast %cst_46 : f32 to vector<16x1xf32>
    %156 = arith.divf %154, %155 : vector<16x1xf32>
    %157 = vector.broadcast %156 : vector<16x1xf32> to vector<16x32xf32>
    %158 = arith.subf %150, %157 : vector<16x32xf32>
    %159 = arith.mulf %158, %158 : vector<16x32xf32>
    %cst_47 = arith.constant dense<0.000000e+00> : vector<16xf32>
    %160 = vector.multi_reduction <add>, %159, %cst_47 [1] : vector<16x32xf32> to vector<16xf32>
    %161 = vector.shape_cast %160 : vector<16xf32> to vector<16x1xf32>
    %cst_48 = arith.constant 3.200000e+01 : f32
    %162 = vector.broadcast %cst_48 : f32 to vector<16x1xf32>
    %163 = arith.divf %161, %162 : vector<16x1xf32>
    %164 = vector.broadcast %156 : vector<16x1xf32> to vector<16x32xf32>
    %165 = arith.subf %150, %164 : vector<16x32xf32>
    %cst_49 = arith.constant 9.99999996E-13 : f32
    %166 = vector.broadcast %cst_49 : f32 to vector<16x1xf32>
    %167 = arith.addf %163, %166 : vector<16x1xf32>
    %168 = math.rsqrt %167 : vector<16x1xf32>
    %169 = vector.broadcast %168 : vector<16x1xf32> to vector<16x32xf32>
    %170 = arith.mulf %165, %169 : vector<16x32xf32>
    %171 = vector.broadcast %151 : vector<1x32xf32> to vector<16x32xf32>
    %172 = arith.mulf %170, %171 : vector<16x32xf32>
    %173 = vector.broadcast %152 : vector<1x32xf32> to vector<16x32xf32>
    %174 = arith.addf %172, %173 : vector<16x32xf32>
    %c200 = arith.constant 200 : index
    %c0_50 = arith.constant 0 : index
    %175 = vector.load %arg2[%c200, %c0_50] : memref<488x128xf32, #tpu.memory_space<vmem>>, vector<32x64xf32>
    %cst_51 = arith.constant dense<0.000000e+00> : vector<16x64xf32>
    %176 = tpu.matmul %174, %175, %cst_51 {dimension_numbers = #tpu.dot_dimension_numbers<[1], [0], [0], [1], [0, 0, 1, 1], [], []>} : vector<16x32xf32>, vector<32x64xf32>, vector<16x64xf32> -> vector<16x64xf32>
    %c7 = arith.constant 7 : index
    %c0_52 = arith.constant 0 : index
    %177 = vector.load %arg3[%c7, %c0_52] : memref<24x128xf32, #tpu.memory_space<vmem>>, vector<1x64xf32>
    %178 = vector.broadcast %177 : vector<1x64xf32> to vector<16x64xf32>
    %179 = arith.addf %176, %178 : vector<16x64xf32>
    %180 = arith.mulf %179, %179 : vector<16x64xf32>
    %181 = arith.mulf %179, %180 : vector<16x64xf32>
    %cst_53 = arith.constant 4.471500e-02 : f32
    %182 = vector.broadcast %cst_53 : f32 to vector<16x64xf32>
    %183 = arith.mulf %182, %181 : vector<16x64xf32>
    %184 = arith.addf %179, %183 : vector<16x64xf32>
    %cst_54 = arith.constant 0.797884583 : f32
    %185 = vector.broadcast %cst_54 : f32 to vector<16x64xf32>
    %186 = arith.mulf %185, %184 : vector<16x64xf32>
    %187 = math.tanh %186 : vector<16x64xf32>
    %cst_55 = arith.constant 1.000000e+00 : f32
    %188 = vector.broadcast %cst_55 : f32 to vector<16x64xf32>
    %189 = arith.addf %188, %187 : vector<16x64xf32>
    %cst_56 = arith.constant 5.000000e-01 : f32
    %190 = vector.broadcast %cst_56 : f32 to vector<16x64xf32>
    %191 = arith.mulf %190, %189 : vector<16x64xf32>
    %192 = arith.mulf %179, %191 : vector<16x64xf32>
    %c232 = arith.constant 232 : index
    %c0_57 = arith.constant 0 : index
    %193 = vector.load %arg2[%c232, %c0_57] : memref<488x128xf32, #tpu.memory_space<vmem>>, vector<64x32xf32>
    %cst_58 = arith.constant dense<0.000000e+00> : vector<16x32xf32>
    %194 = tpu.matmul %192, %193, %cst_58 {dimension_numbers = #tpu.dot_dimension_numbers<[1], [0], [0], [1], [0, 0, 1, 1], [], []>} : vector<16x64xf32>, vector<64x32xf32>, vector<16x32xf32> -> vector<16x32xf32>
    %c8 = arith.constant 8 : index
    %c0_59 = arith.constant 0 : index
    %195 = vector.load %arg3[%c8, %c0_59] : memref<24x128xf32, #tpu.memory_space<vmem>>, vector<1x32xf32>
    %196 = vector.broadcast %195 : vector<1x32xf32> to vector<16x32xf32>
    %197 = arith.addf %194, %196 : vector<16x32xf32>
    %198 = arith.addf %174, %197 : vector<16x32xf32>
    %c9 = arith.constant 9 : index
    %c0_60 = arith.constant 0 : index
    %199 = vector.load %arg3[%c9, %c0_60] : memref<24x128xf32, #tpu.memory_space<vmem>>, vector<1x32xf32>
    %c10 = arith.constant 10 : index
    %c0_61 = arith.constant 0 : index
    %200 = vector.load %arg3[%c10, %c0_61] : memref<24x128xf32, #tpu.memory_space<vmem>>, vector<1x32xf32>
    %cst_62 = arith.constant dense<0.000000e+00> : vector<16xf32>
    %201 = vector.multi_reduction <add>, %198, %cst_62 [1] : vector<16x32xf32> to vector<16xf32>
    %202 = vector.shape_cast %201 : vector<16xf32> to vector<16x1xf32>
    %cst_63 = arith.constant 3.200000e+01 : f32
    %203 = vector.broadcast %cst_63 : f32 to vector<16x1xf32>
    %204 = arith.divf %202, %203 : vector<16x1xf32>
    %205 = vector.broadcast %204 : vector<16x1xf32> to vector<16x32xf32>
    %206 = arith.subf %198, %205 : vector<16x32xf32>
    %207 = arith.mulf %206, %206 : vector<16x32xf32>
    %cst_64 = arith.constant dense<0.000000e+00> : vector<16xf32>
    %208 = vector.multi_reduction <add>, %207, %cst_64 [1] : vector<16x32xf32> to vector<16xf32>
    %209 = vector.shape_cast %208 : vector<16xf32> to vector<16x1xf32>
    %cst_65 = arith.constant 3.200000e+01 : f32
    %210 = vector.broadcast %cst_65 : f32 to vector<16x1xf32>
    %211 = arith.divf %209, %210 : vector<16x1xf32>
    %212 = vector.broadcast %204 : vector<16x1xf32> to vector<16x32xf32>
    %213 = arith.subf %198, %212 : vector<16x32xf32>
    %cst_66 = arith.constant 9.99999996E-13 : f32
    %214 = vector.broadcast %cst_66 : f32 to vector<16x1xf32>
    %215 = arith.addf %211, %214 : vector<16x1xf32>
    %216 = math.rsqrt %215 : vector<16x1xf32>
    %217 = vector.broadcast %216 : vector<16x1xf32> to vector<16x32xf32>
    %218 = arith.mulf %213, %217 : vector<16x32xf32>
    %219 = vector.broadcast %199 : vector<1x32xf32> to vector<16x32xf32>
    %220 = arith.mulf %218, %219 : vector<16x32xf32>
    %221 = vector.broadcast %200 : vector<1x32xf32> to vector<16x32xf32>
    %222 = arith.addf %220, %221 : vector<16x32xf32>
    %c296 = arith.constant 296 : index
    %c0_67 = arith.constant 0 : index
    %223 = vector.load %arg2[%c296, %c0_67] : memref<488x128xf32, #tpu.memory_space<vmem>>, vector<32x96xf32>
    %cst_68 = arith.constant dense<0.000000e+00> : vector<16x96xf32>
    %224 = tpu.matmul %222, %223, %cst_68 {dimension_numbers = #tpu.dot_dimension_numbers<[1], [0], [0], [1], [0, 0, 1, 1], [], []>} : vector<16x32xf32>, vector<32x96xf32>, vector<16x96xf32> -> vector<16x96xf32>
    %c11 = arith.constant 11 : index
    %c0_69 = arith.constant 0 : index
    %225 = vector.load %arg3[%c11, %c0_69] : memref<24x128xf32, #tpu.memory_space<vmem>>, vector<1x96xf32>
    %226 = vector.broadcast %225 : vector<1x96xf32> to vector<16x96xf32>
    %227 = arith.addf %224, %226 : vector<16x96xf32>
    %228 = vector.extract_strided_slice %227 {offsets = [0, 0], sizes = [16, 8], strides = [1, 1]} : vector<16x96xf32> to vector<16x8xf32>
    %229 = vector.shape_cast %228 : vector<16x8xf32> to vector<2x8x8xf32>
    %230 = vector.extract_strided_slice %227 {offsets = [0, 32], sizes = [16, 8], strides = [1, 1]} : vector<16x96xf32> to vector<16x8xf32>
    %231 = vector.shape_cast %230 : vector<16x8xf32> to vector<2x8x8xf32>
    %232 = vector.extract_strided_slice %227 {offsets = [0, 64], sizes = [16, 8], strides = [1, 1]} : vector<16x96xf32> to vector<16x8xf32>
    %233 = vector.shape_cast %232 : vector<16x8xf32> to vector<2x8x8xf32>
    "tpu.trace_start"() <{level = 10 : i32, message = "bqd,bkd->bqk"}> : () -> ()
    %cst_70 = arith.constant dense<0.000000e+00> : vector<2x8x8xf32>
    %234 = tpu.matmul %229, %231, %cst_70 {dimension_numbers = #tpu.dot_dimension_numbers<[2], [2], [1], [1], [0, 0, 0, 1, 1, 1], [0], [0]>} : vector<2x8x8xf32>, vector<2x8x8xf32>, vector<2x8x8xf32> -> vector<2x8x8xf32>
    "tpu.trace_stop"() : () -> ()
    %cst_71 = arith.constant 0.353553385 : f32
    %235 = vector.broadcast %cst_71 : f32 to vector<2x8x8xf32>
    %236 = arith.mulf %234, %235 : vector<2x8x8xf32>
    %237 = vector.broadcast %46 : vector<2x1x8xf32> to vector<2x8x8xf32>
    %238 = arith.addf %236, %237 : vector<2x8x8xf32>
    %cst_72 = arith.constant dense<0xFF800000> : vector<2x8xf32>
    %239 = vector.multi_reduction <maximumf>, %238, %cst_72 [2] : vector<2x8x8xf32> to vector<2x8xf32>
    %240 = vector.shape_cast %239 : vector<2x8xf32> to vector<2x8x1xf32>
    %241 = vector.broadcast %240 : vector<2x8x1xf32> to vector<2x8x8xf32>
    %242 = arith.subf %238, %241 : vector<2x8x8xf32>
    %243 = math.exp %242 : vector<2x8x8xf32>
    %cst_73 = arith.constant dense<0.000000e+00> : vector<2x8xf32>
    %244 = vector.multi_reduction <add>, %243, %cst_73 [2] : vector<2x8x8xf32> to vector<2x8xf32>
    %245 = vector.shape_cast %244 : vector<2x8xf32> to vector<2x8x1xf32>
    %246 = tpu.reciprocal %245 {approx = true} : vector<2x8x1xf32> -> vector<2x8x1xf32>
    %247 = vector.broadcast %246 : vector<2x8x1xf32> to vector<2x8x8xf32>
    %248 = arith.mulf %243, %247 : vector<2x8x8xf32>
    "tpu.trace_start"() <{level = 10 : i32, message = "bqk,bkd->bqd"}> : () -> ()
    %cst_74 = arith.constant dense<0.000000e+00> : vector<2x8x8xf32>
    %249 = tpu.matmul %248, %233, %cst_74 {dimension_numbers = #tpu.dot_dimension_numbers<[2], [1], [1], [2], [0, 0, 0, 1, 1, 2], [0], [0]>} : vector<2x8x8xf32>, vector<2x8x8xf32>, vector<2x8x8xf32> -> vector<2x8x8xf32>
    "tpu.trace_stop"() : () -> ()
    %250 = vector.shape_cast %249 : vector<2x8x8xf32> to vector<16x8xf32>
    %251 = vector.extract_strided_slice %227 {offsets = [0, 8], sizes = [16, 8], strides = [1, 1]} : vector<16x96xf32> to vector<16x8xf32>
    %252 = vector.shape_cast %251 : vector<16x8xf32> to vector<2x8x8xf32>
    %253 = vector.extract_strided_slice %227 {offsets = [0, 40], sizes = [16, 8], strides = [1, 1]} : vector<16x96xf32> to vector<16x8xf32>
    %254 = vector.shape_cast %253 : vector<16x8xf32> to vector<2x8x8xf32>
    %255 = vector.extract_strided_slice %227 {offsets = [0, 72], sizes = [16, 8], strides = [1, 1]} : vector<16x96xf32> to vector<16x8xf32>
    %256 = vector.shape_cast %255 : vector<16x8xf32> to vector<2x8x8xf32>
    "tpu.trace_start"() <{level = 10 : i32, message = "bqd,bkd->bqk"}> : () -> ()
    %cst_75 = arith.constant dense<0.000000e+00> : vector<2x8x8xf32>
    %257 = tpu.matmul %252, %254, %cst_75 {dimension_numbers = #tpu.dot_dimension_numbers<[2], [2], [1], [1], [0, 0, 0, 1, 1, 1], [0], [0]>} : vector<2x8x8xf32>, vector<2x8x8xf32>, vector<2x8x8xf32> -> vector<2x8x8xf32>
    "tpu.trace_stop"() : () -> ()
    %cst_76 = arith.constant 0.353553385 : f32
    %258 = vector.broadcast %cst_76 : f32 to vector<2x8x8xf32>
    %259 = arith.mulf %257, %258 : vector<2x8x8xf32>
    %260 = vector.broadcast %46 : vector<2x1x8xf32> to vector<2x8x8xf32>
    %261 = arith.addf %259, %260 : vector<2x8x8xf32>
    %cst_77 = arith.constant dense<0xFF800000> : vector<2x8xf32>
    %262 = vector.multi_reduction <maximumf>, %261, %cst_77 [2] : vector<2x8x8xf32> to vector<2x8xf32>
    %263 = vector.shape_cast %262 : vector<2x8xf32> to vector<2x8x1xf32>
    %264 = vector.broadcast %263 : vector<2x8x1xf32> to vector<2x8x8xf32>
    %265 = arith.subf %261, %264 : vector<2x8x8xf32>
    %266 = math.exp %265 : vector<2x8x8xf32>
    %cst_78 = arith.constant dense<0.000000e+00> : vector<2x8xf32>
    %267 = vector.multi_reduction <add>, %266, %cst_78 [2] : vector<2x8x8xf32> to vector<2x8xf32>
    %268 = vector.shape_cast %267 : vector<2x8xf32> to vector<2x8x1xf32>
    %269 = tpu.reciprocal %268 {approx = true} : vector<2x8x1xf32> -> vector<2x8x1xf32>
    %270 = vector.broadcast %269 : vector<2x8x1xf32> to vector<2x8x8xf32>
    %271 = arith.mulf %266, %270 : vector<2x8x8xf32>
    "tpu.trace_start"() <{level = 10 : i32, message = "bqk,bkd->bqd"}> : () -> ()
    %cst_79 = arith.constant dense<0.000000e+00> : vector<2x8x8xf32>
    %272 = tpu.matmul %271, %256, %cst_79 {dimension_numbers = #tpu.dot_dimension_numbers<[2], [1], [1], [2], [0, 0, 0, 1, 1, 2], [0], [0]>} : vector<2x8x8xf32>, vector<2x8x8xf32>, vector<2x8x8xf32> -> vector<2x8x8xf32>
    "tpu.trace_stop"() : () -> ()
    %273 = vector.shape_cast %272 : vector<2x8x8xf32> to vector<16x8xf32>
    %274 = vector.extract_strided_slice %227 {offsets = [0, 16], sizes = [16, 8], strides = [1, 1]} : vector<16x96xf32> to vector<16x8xf32>
    %275 = vector.shape_cast %274 : vector<16x8xf32> to vector<2x8x8xf32>
    %276 = vector.extract_strided_slice %227 {offsets = [0, 48], sizes = [16, 8], strides = [1, 1]} : vector<16x96xf32> to vector<16x8xf32>
    %277 = vector.shape_cast %276 : vector<16x8xf32> to vector<2x8x8xf32>
    %278 = vector.extract_strided_slice %227 {offsets = [0, 80], sizes = [16, 8], strides = [1, 1]} : vector<16x96xf32> to vector<16x8xf32>
    %279 = vector.shape_cast %278 : vector<16x8xf32> to vector<2x8x8xf32>
    "tpu.trace_start"() <{level = 10 : i32, message = "bqd,bkd->bqk"}> : () -> ()
    %cst_80 = arith.constant dense<0.000000e+00> : vector<2x8x8xf32>
    %280 = tpu.matmul %275, %277, %cst_80 {dimension_numbers = #tpu.dot_dimension_numbers<[2], [2], [1], [1], [0, 0, 0, 1, 1, 1], [0], [0]>} : vector<2x8x8xf32>, vector<2x8x8xf32>, vector<2x8x8xf32> -> vector<2x8x8xf32>
    "tpu.trace_stop"() : () -> ()
    %cst_81 = arith.constant 0.353553385 : f32
    %281 = vector.broadcast %cst_81 : f32 to vector<2x8x8xf32>
    %282 = arith.mulf %280, %281 : vector<2x8x8xf32>
    %283 = vector.broadcast %46 : vector<2x1x8xf32> to vector<2x8x8xf32>
    %284 = arith.addf %282, %283 : vector<2x8x8xf32>
    %cst_82 = arith.constant dense<0xFF800000> : vector<2x8xf32>
    %285 = vector.multi_reduction <maximumf>, %284, %cst_82 [2] : vector<2x8x8xf32> to vector<2x8xf32>
    %286 = vector.shape_cast %285 : vector<2x8xf32> to vector<2x8x1xf32>
    %287 = vector.broadcast %286 : vector<2x8x1xf32> to vector<2x8x8xf32>
    %288 = arith.subf %284, %287 : vector<2x8x8xf32>
    %289 = math.exp %288 : vector<2x8x8xf32>
    %cst_83 = arith.constant dense<0.000000e+00> : vector<2x8xf32>
    %290 = vector.multi_reduction <add>, %289, %cst_83 [2] : vector<2x8x8xf32> to vector<2x8xf32>
    %291 = vector.shape_cast %290 : vector<2x8xf32> to vector<2x8x1xf32>
    %292 = tpu.reciprocal %291 {approx = true} : vector<2x8x1xf32> -> vector<2x8x1xf32>
    %293 = vector.broadcast %292 : vector<2x8x1xf32> to vector<2x8x8xf32>
    %294 = arith.mulf %289, %293 : vector<2x8x8xf32>
    "tpu.trace_start"() <{level = 10 : i32, message = "bqk,bkd->bqd"}> : () -> ()
    %cst_84 = arith.constant dense<0.000000e+00> : vector<2x8x8xf32>
    %295 = tpu.matmul %294, %279, %cst_84 {dimension_numbers = #tpu.dot_dimension_numbers<[2], [1], [1], [2], [0, 0, 0, 1, 1, 2], [0], [0]>} : vector<2x8x8xf32>, vector<2x8x8xf32>, vector<2x8x8xf32> -> vector<2x8x8xf32>
    "tpu.trace_stop"() : () -> ()
    %296 = vector.shape_cast %295 : vector<2x8x8xf32> to vector<16x8xf32>
    %297 = vector.extract_strided_slice %227 {offsets = [0, 24], sizes = [16, 8], strides = [1, 1]} : vector<16x96xf32> to vector<16x8xf32>
    %298 = vector.shape_cast %297 : vector<16x8xf32> to vector<2x8x8xf32>
    %299 = vector.extract_strided_slice %227 {offsets = [0, 56], sizes = [16, 8], strides = [1, 1]} : vector<16x96xf32> to vector<16x8xf32>
    %300 = vector.shape_cast %299 : vector<16x8xf32> to vector<2x8x8xf32>
    %301 = vector.extract_strided_slice %227 {offsets = [0, 88], sizes = [16, 8], strides = [1, 1]} : vector<16x96xf32> to vector<16x8xf32>
    %302 = vector.shape_cast %301 : vector<16x8xf32> to vector<2x8x8xf32>
    "tpu.trace_start"() <{level = 10 : i32, message = "bqd,bkd->bqk"}> : () -> ()
    %cst_85 = arith.constant dense<0.000000e+00> : vector<2x8x8xf32>
    %303 = tpu.matmul %298, %300, %cst_85 {dimension_numbers = #tpu.dot_dimension_numbers<[2], [2], [1], [1], [0, 0, 0, 1, 1, 1], [0], [0]>} : vector<2x8x8xf32>, vector<2x8x8xf32>, vector<2x8x8xf32> -> vector<2x8x8xf32>
    "tpu.trace_stop"() : () -> ()
    %cst_86 = arith.constant 0.353553385 : f32
    %304 = vector.broadcast %cst_86 : f32 to vector<2x8x8xf32>
    %305 = arith.mulf %303, %304 : vector<2x8x8xf32>
    %306 = vector.broadcast %46 : vector<2x1x8xf32> to vector<2x8x8xf32>
    %307 = arith.addf %305, %306 : vector<2x8x8xf32>
    %cst_87 = arith.constant dense<0xFF800000> : vector<2x8xf32>
    %308 = vector.multi_reduction <maximumf>, %307, %cst_87 [2] : vector<2x8x8xf32> to vector<2x8xf32>
    %309 = vector.shape_cast %308 : vector<2x8xf32> to vector<2x8x1xf32>
    %310 = vector.broadcast %309 : vector<2x8x1xf32> to vector<2x8x8xf32>
    %311 = arith.subf %307, %310 : vector<2x8x8xf32>
    %312 = math.exp %311 : vector<2x8x8xf32>
    %cst_88 = arith.constant dense<0.000000e+00> : vector<2x8xf32>
    %313 = vector.multi_reduction <add>, %312, %cst_88 [2] : vector<2x8x8xf32> to vector<2x8xf32>
    %314 = vector.shape_cast %313 : vector<2x8xf32> to vector<2x8x1xf32>
    %315 = tpu.reciprocal %314 {approx = true} : vector<2x8x1xf32> -> vector<2x8x1xf32>
    %316 = vector.broadcast %315 : vector<2x8x1xf32> to vector<2x8x8xf32>
    %317 = arith.mulf %312, %316 : vector<2x8x8xf32>
    "tpu.trace_start"() <{level = 10 : i32, message = "bqk,bkd->bqd"}> : () -> ()
    %cst_89 = arith.constant dense<0.000000e+00> : vector<2x8x8xf32>
    %318 = tpu.matmul %317, %302, %cst_89 {dimension_numbers = #tpu.dot_dimension_numbers<[2], [1], [1], [2], [0, 0, 0, 1, 1, 2], [0], [0]>} : vector<2x8x8xf32>, vector<2x8x8xf32>, vector<2x8x8xf32> -> vector<2x8x8xf32>
    "tpu.trace_stop"() : () -> ()
    %319 = vector.shape_cast %318 : vector<2x8x8xf32> to vector<16x8xf32>
    %320 = tpu.concatenate %250, %273, %296, %319 in 1 : vector<16x8xf32>, vector<16x8xf32>, vector<16x8xf32>, vector<16x8xf32> -> vector<16x32xf32>
    %c328 = arith.constant 328 : index
    %c0_90 = arith.constant 0 : index
    %321 = vector.load %arg2[%c328, %c0_90] : memref<488x128xf32, #tpu.memory_space<vmem>>, vector<32x32xf32>
    %cst_91 = arith.constant dense<0.000000e+00> : vector<16x32xf32>
    %322 = tpu.matmul %320, %321, %cst_91 {dimension_numbers = #tpu.dot_dimension_numbers<[1], [0], [0], [1], [0, 0, 1, 1], [], []>} : vector<16x32xf32>, vector<32x32xf32>, vector<16x32xf32> -> vector<16x32xf32>
    %323 = arith.addf %222, %322 : vector<16x32xf32>
    %c12 = arith.constant 12 : index
    %c0_92 = arith.constant 0 : index
    %324 = vector.load %arg3[%c12, %c0_92] : memref<24x128xf32, #tpu.memory_space<vmem>>, vector<1x32xf32>
    %325 = vector.broadcast %324 : vector<1x32xf32> to vector<16x32xf32>
    %326 = arith.addf %323, %325 : vector<16x32xf32>
    %c13 = arith.constant 13 : index
    %c0_93 = arith.constant 0 : index
    %327 = vector.load %arg3[%c13, %c0_93] : memref<24x128xf32, #tpu.memory_space<vmem>>, vector<1x32xf32>
    %c14 = arith.constant 14 : index
    %c0_94 = arith.constant 0 : index
    %328 = vector.load %arg3[%c14, %c0_94] : memref<24x128xf32, #tpu.memory_space<vmem>>, vector<1x32xf32>
    %cst_95 = arith.constant dense<0.000000e+00> : vector<16xf32>
    %329 = vector.multi_reduction <add>, %326, %cst_95 [1] : vector<16x32xf32> to vector<16xf32>
    %330 = vector.shape_cast %329 : vector<16xf32> to vector<16x1xf32>
    %cst_96 = arith.constant 3.200000e+01 : f32
    %331 = vector.broadcast %cst_96 : f32 to vector<16x1xf32>
    %332 = arith.divf %330, %331 : vector<16x1xf32>
    %333 = vector.broadcast %332 : vector<16x1xf32> to vector<16x32xf32>
    %334 = arith.subf %326, %333 : vector<16x32xf32>
    %335 = arith.mulf %334, %334 : vector<16x32xf32>
    %cst_97 = arith.constant dense<0.000000e+00> : vector<16xf32>
    %336 = vector.multi_reduction <add>, %335, %cst_97 [1] : vector<16x32xf32> to vector<16xf32>
    %337 = vector.shape_cast %336 : vector<16xf32> to vector<16x1xf32>
    %cst_98 = arith.constant 3.200000e+01 : f32
    %338 = vector.broadcast %cst_98 : f32 to vector<16x1xf32>
    %339 = arith.divf %337, %338 : vector<16x1xf32>
    %340 = vector.broadcast %332 : vector<16x1xf32> to vector<16x32xf32>
    %341 = arith.subf %326, %340 : vector<16x32xf32>
    %cst_99 = arith.constant 9.99999996E-13 : f32
    %342 = vector.broadcast %cst_99 : f32 to vector<16x1xf32>
    %343 = arith.addf %339, %342 : vector<16x1xf32>
    %344 = math.rsqrt %343 : vector<16x1xf32>
    %345 = vector.broadcast %344 : vector<16x1xf32> to vector<16x32xf32>
    %346 = arith.mulf %341, %345 : vector<16x32xf32>
    %347 = vector.broadcast %327 : vector<1x32xf32> to vector<16x32xf32>
    %348 = arith.mulf %346, %347 : vector<16x32xf32>
    %349 = vector.broadcast %328 : vector<1x32xf32> to vector<16x32xf32>
    %350 = arith.addf %348, %349 : vector<16x32xf32>
    %c360 = arith.constant 360 : index
    %c0_100 = arith.constant 0 : index
    %351 = vector.load %arg2[%c360, %c0_100] : memref<488x128xf32, #tpu.memory_space<vmem>>, vector<32x64xf32>
    %cst_101 = arith.constant dense<0.000000e+00> : vector<16x64xf32>
    %352 = tpu.matmul %350, %351, %cst_101 {dimension_numbers = #tpu.dot_dimension_numbers<[1], [0], [0], [1], [0, 0, 1, 1], [], []>} : vector<16x32xf32>, vector<32x64xf32>, vector<16x64xf32> -> vector<16x64xf32>
    %c15 = arith.constant 15 : index
    %c0_102 = arith.constant 0 : index
    %353 = vector.load %arg3[%c15, %c0_102] : memref<24x128xf32, #tpu.memory_space<vmem>>, vector<1x64xf32>
    %354 = vector.broadcast %353 : vector<1x64xf32> to vector<16x64xf32>
    %355 = arith.addf %352, %354 : vector<16x64xf32>
    %356 = arith.mulf %355, %355 : vector<16x64xf32>
    %357 = arith.mulf %355, %356 : vector<16x64xf32>
    %cst_103 = arith.constant 4.471500e-02 : f32
    %358 = vector.broadcast %cst_103 : f32 to vector<16x64xf32>
    %359 = arith.mulf %358, %357 : vector<16x64xf32>
    %360 = arith.addf %355, %359 : vector<16x64xf32>
    %cst_104 = arith.constant 0.797884583 : f32
    %361 = vector.broadcast %cst_104 : f32 to vector<16x64xf32>
    %362 = arith.mulf %361, %360 : vector<16x64xf32>
    %363 = math.tanh %362 : vector<16x64xf32>
    %cst_105 = arith.constant 1.000000e+00 : f32
    %364 = vector.broadcast %cst_105 : f32 to vector<16x64xf32>
    %365 = arith.addf %364, %363 : vector<16x64xf32>
    %cst_106 = arith.constant 5.000000e-01 : f32
    %366 = vector.broadcast %cst_106 : f32 to vector<16x64xf32>
    %367 = arith.mulf %366, %365 : vector<16x64xf32>
    %368 = arith.mulf %355, %367 : vector<16x64xf32>
    %c392 = arith.constant 392 : index
    %c0_107 = arith.constant 0 : index
    %369 = vector.load %arg2[%c392, %c0_107] : memref<488x128xf32, #tpu.memory_space<vmem>>, vector<64x32xf32>
    %cst_108 = arith.constant dense<0.000000e+00> : vector<16x32xf32>
    %370 = tpu.matmul %368, %369, %cst_108 {dimension_numbers = #tpu.dot_dimension_numbers<[1], [0], [0], [1], [0, 0, 1, 1], [], []>} : vector<16x64xf32>, vector<64x32xf32>, vector<16x32xf32> -> vector<16x32xf32>
    %c16 = arith.constant 16 : index
    %c0_109 = arith.constant 0 : index
    %371 = vector.load %arg3[%c16, %c0_109] : memref<24x128xf32, #tpu.memory_space<vmem>>, vector<1x32xf32>
    %372 = vector.broadcast %371 : vector<1x32xf32> to vector<16x32xf32>
    %373 = arith.addf %370, %372 : vector<16x32xf32>
    %374 = arith.addf %350, %373 : vector<16x32xf32>
    %c17 = arith.constant 17 : index
    %c0_110 = arith.constant 0 : index
    %375 = vector.load %arg3[%c17, %c0_110] : memref<24x128xf32, #tpu.memory_space<vmem>>, vector<1x32xf32>
    %c18 = arith.constant 18 : index
    %c0_111 = arith.constant 0 : index
    %376 = vector.load %arg3[%c18, %c0_111] : memref<24x128xf32, #tpu.memory_space<vmem>>, vector<1x32xf32>
    %cst_112 = arith.constant dense<0.000000e+00> : vector<16xf32>
    %377 = vector.multi_reduction <add>, %374, %cst_112 [1] : vector<16x32xf32> to vector<16xf32>
    %378 = vector.shape_cast %377 : vector<16xf32> to vector<16x1xf32>
    %cst_113 = arith.constant 3.200000e+01 : f32
    %379 = vector.broadcast %cst_113 : f32 to vector<16x1xf32>
    %380 = arith.divf %378, %379 : vector<16x1xf32>
    %381 = vector.broadcast %380 : vector<16x1xf32> to vector<16x32xf32>
    %382 = arith.subf %374, %381 : vector<16x32xf32>
    %383 = arith.mulf %382, %382 : vector<16x32xf32>
    %cst_114 = arith.constant dense<0.000000e+00> : vector<16xf32>
    %384 = vector.multi_reduction <add>, %383, %cst_114 [1] : vector<16x32xf32> to vector<16xf32>
    %385 = vector.shape_cast %384 : vector<16xf32> to vector<16x1xf32>
    %cst_115 = arith.constant 3.200000e+01 : f32
    %386 = vector.broadcast %cst_115 : f32 to vector<16x1xf32>
    %387 = arith.divf %385, %386 : vector<16x1xf32>
    %388 = vector.broadcast %380 : vector<16x1xf32> to vector<16x32xf32>
    %389 = arith.subf %374, %388 : vector<16x32xf32>
    %cst_116 = arith.constant 9.99999996E-13 : f32
    %390 = vector.broadcast %cst_116 : f32 to vector<16x1xf32>
    %391 = arith.addf %387, %390 : vector<16x1xf32>
    %392 = math.rsqrt %391 : vector<16x1xf32>
    %393 = vector.broadcast %392 : vector<16x1xf32> to vector<16x32xf32>
    %394 = arith.mulf %389, %393 : vector<16x32xf32>
    %395 = vector.broadcast %375 : vector<1x32xf32> to vector<16x32xf32>
    %396 = arith.mulf %394, %395 : vector<16x32xf32>
    %397 = vector.broadcast %376 : vector<1x32xf32> to vector<16x32xf32>
    %398 = arith.addf %396, %397 : vector<16x32xf32>
    %c456 = arith.constant 456 : index
    %c0_117 = arith.constant 0 : index
    %399 = vector.load %arg2[%c456, %c0_117] : memref<488x128xf32, #tpu.memory_space<vmem>>, vector<32x128xf32>
    %cst_118 = arith.constant dense<0.000000e+00> : vector<16x128xf32>
    %400 = tpu.matmul %398, %399, %cst_118 {dimension_numbers = #tpu.dot_dimension_numbers<[1], [0], [0], [1], [0, 0, 1, 1], [], []>} : vector<16x32xf32>, vector<32x128xf32>, vector<16x128xf32> -> vector<16x128xf32>
    %c19 = arith.constant 19 : index
    %c0_119 = arith.constant 0 : index
    %401 = vector.load %arg3[%c19, %c0_119] : memref<24x128xf32, #tpu.memory_space<vmem>>, vector<1x128xf32>
    %402 = vector.broadcast %401 : vector<1x128xf32> to vector<16x128xf32>
    %403 = arith.addf %400, %402 : vector<16x128xf32>
    %cst_120 = arith.constant dense<0xFF800000> : vector<16xf32>
    %404 = vector.multi_reduction <maximumf>, %403, %cst_120 [1] : vector<16x128xf32> to vector<16xf32>
    %405 = vector.shape_cast %404 : vector<16xf32> to vector<16x1xf32>
    %406 = vector.broadcast %405 : vector<16x1xf32> to vector<16x128xf32>
    %407 = arith.subf %403, %406 : vector<16x128xf32>
    %408 = math.exp %407 : vector<16x128xf32>
    %cst_121 = arith.constant dense<0.000000e+00> : vector<16xf32>
    %409 = vector.multi_reduction <add>, %408, %cst_121 [1] : vector<16x128xf32> to vector<16xf32>
    %410 = vector.shape_cast %409 : vector<16xf32> to vector<16x1xf32>
    %411 = vector.broadcast %410 : vector<16x1xf32> to vector<16x128xf32>
    %412 = arith.divf %408, %411 : vector<16x128xf32>
    %c0_122 = arith.constant 0 : index
    %c0_123 = arith.constant 0 : index
    %413 = vector.load %arg4[%c0_122, %c0_123] : memref<16x128xf32, #tpu.memory_space<vmem>>, vector<16x128xf32>
    tpu.vector_store %arg4[%c0_122, %c0_123], %412 {strides = array<i32>} : memref<16x128xf32, #tpu.memory_space<vmem>>, vector<16x128xf32>,
    return
  }
}

</mosaic_0001>

<llo_original>
// kernel: fwd.1
$region0: #{fwd.1}
  #allocation0 [shape = 'u32[]', space=smem, size = 0x4, offset = 0x4, fixed_abs, tag = 'smem constant byte address 0x4 - core index']
  #allocation1 [shape = 'u32[144,128]{1,0:T(1,128)}', space=vmem, size = 0x12000, scoped, tag = 'internal scratch']
  %s0 = inlined_call_operand.vmem [shape: s32[16,1], index: 0, kind: input, shape index: {}]
  %s1 = inlined_call_operand.vmem [shape: f32[2,8], index: 1, kind: input, shape index: {}]
  %s2 = inlined_call_operand.hbm [shape: f32[488,128], index: 2, kind: input, shape index: {}]
  %s3 = inlined_call_operand.vmem [shape: f32[24,128], index: 3, kind: input, shape index: {}]
  %s4 = inlined_call_operand.hbm [shape: f32[16,128], index: 4, kind: output, shape index: {}]
  %s5 = sld [smem:[#allocation0]]
  $region30: #{fwd.1} parent=0
    _
  %s7 = ssub.s32 1, %s5
  %s8 = scalar_select 0, %s7, %s5
  $region1: #{fwd.1} parent=0
    #allocation2 [shape = 'u8[249856]{0}', space=vmem, size = 0x3d000, scoped, tag = 'input window, operand 2, single buffered']
    #allocation3 [shape = 's32[1]{0}', space=sflag, size = 0x4, scoped, tag = 'scoped memory for fwd.1']
    #allocation4 [shape = 's32[1]{0}', space=sflag, size = 0x4, scoped, tag = 'scoped memory for fwd.1']
    #allocation5 [shape = 'u8[8192]{0}', space=vmem, size = 0x2000, scoped, tag = 'output window, operand 0, single buffered']
    %9 = vsyncpa [#allocation3], 0
    %10 = vsyncpa [#allocation4], 0
    // Predicated region
    $region2: #{fwd.1} parent=1 // pred_check
      _
    $region3: #{fwd.1} parent=1 // pred_check_branch
      %12 = sbr.rel (0) target = $region5
    $region4: #{fwd.1} parent=1 // pred_region
      _
    $region5: #{fwd.1} parent=1 // pred_fallthru
      _
    // Predicated region
    $region6: #{fwd.1} parent=1 // pred_check
      _
    $region7: #{fwd.1} parent=1 // pred_check_branch
      %14 = sbr.rel (0) target = $region9
    $region8: #{fwd.1} parent=1 // pred_region
      _
    $region9: #{fwd.1} parent=1 // pred_fallthru
      _
    // Predicated region
    $region10: #{fwd.1} parent=1 // pred_check
      _
    $region11: #{fwd.1} parent=1 // pred_check_branch
      %16 = sbr.rel (0) target = $region13
    $region12: #{fwd.1} parent=1 // pred_region
      %s18 = ssub.s32 7808, 7808
      %19 = vsyncadd [#allocation3], %s18
      %s20 = sshll.u32 [#allocation2], 4
      %s21 = int_to_ptr.vmem [resolvable:$true] %s20
      %26 = dma.hbm_to_vmem [thread:$0]  %s2, 7808, %s21, [#allocation3], 128, 128, 8
    $region13: #{fwd.1} parent=1 // pred_fallthru
      _
    // Predicated region
    $region14: #{fwd.1} parent=1 // pred_check
      _
    $region15: #{fwd.1} parent=1 // pred_check_branch
      %28 = sbr.rel (0) target = $region17
    $region16: #{fwd.1} parent=1 // pred_region
      _
    $region17: #{fwd.1} parent=1 // pred_fallthru
      _
    // Predicated region
    $region18: #{fwd.1} parent=1 // pred_check
      _
    $region19: #{fwd.1} parent=1 // pred_check_branch
      %30 = sbr.rel (0) target = $region21
    $region20: #{fwd.1} parent=1 // pred_region
      %31 = dma.done [#allocation3], 7808
    $region21: #{fwd.1} parent=1 // pred_fallthru
      _
    %v32 = vld [vmem:[%s0] sm:$0xff]
    %v33 = vld [vmem:[%s0 + $0x8] sm:$0xff]
    %v34 = vld [vmem:[%s1] sm:$0x3]
    %v35 = vlaneseq
    %v36 = vand.u32 %v35, 127
    %37 = vset.pattern.permute.xlu0 0
    %38 = vperm.xlu0 %37, %v32
    %v39 = vpop.permute.xlu0 %38
    %40 = vset.pattern.permute.xlu0 0
    %41 = vperm.xlu0 %40, %v33
    %v42 = vpop.permute.xlu0 %41
    %vm43 = vcmp.eq.s32.totalorder %v36, %v39
    %vm44 = vcmp.eq.s32.totalorder %v36, %v42
    %v45 = vsel %vm43, 1, 0
    %v46 = vsel %vm44, 1, 0
    %v47 = vcvt.s32.f32 %v45
    %v48 = vcvt.s32.f32 %v46
    %v49 = vld [vmem:[#allocation2] sm:$0xff]
    %v50 = vld [vmem:[#allocation2 + $0x8] sm:$0xff]
    %v51 = vld [vmem:[#allocation2 + $0x10] sm:$0xff]
    %v52 = vld [vmem:[#allocation2 + $0x18] sm:$0xff]
    %v53 = vld [vmem:[#allocation2 + $0x20] sm:$0xff]
    %v54 = vld [vmem:[#allocation2 + $0x28] sm:$0xff]
    %v55 = vld [vmem:[#allocation2 + $0x30] sm:$0xff]
    %v56 = vld [vmem:[#allocation2 + $0x38] sm:$0xff]
    %v57 = vld [vmem:[#allocation2 + $0x40] sm:$0xff]
    %v58 = vld [vmem:[#allocation2 + $0x48] sm:$0xff]
    %v59 = vld [vmem:[#allocation2 + $0x50] sm:$0xff]
    %v60 = vld [vmem:[#allocation2 + $0x58] sm:$0xff]
    %v61 = vld [vmem:[#allocation2 + $0x60] sm:$0xff]
    %v62 = vld [vmem:[#allocation2 + $0x68] sm:$0xff]
    %v63 = vld [vmem:[#allocation2 + $0x70] sm:$0xff]
    %v64 = vld [vmem:[#allocation2 + $0x78] sm:$0xff]
    %v65 = vld [vmem:[%s3] sm:$0x1]
    %v66 = vlaneseq
    %v67 = vshrl.u32 %v66, 7
    %v68 = vsub.s32 0, %v67
    %v69 = vrot.slane %v65, %v68
    %70 = vmatprep.subr.mxu0 0.0
    %71 = vmatpush1.msra.mxu0 %v49
    %72 = vmatprep.subr.mxu0 0.0
    %73 = vmatpush1.msra.mxu0 %v50
    %74 = vmatprep.subr.mxu0 0.0
    %75 = vmatpush1.msra.mxu0 %v51
    %76 = vmatprep.subr.mxu0 0.0
    %77 = vmatpush1.msra.mxu0 %v52
    %78 = vmatprep.subr.mxu0 0.0
    %79 = vmatpush1.msra.mxu0 %v53
    %80 = vmatprep.subr.mxu0 0.0
    %81 = vmatpush1.msra.mxu0 %v54
    %82 = vmatprep.subr.mxu0 0.0
    %83 = vmatpush1.msra.mxu0 %v55
    %84 = vmatprep.subr.mxu0 0.0
    %85 = vmatpush1.msra.mxu0 %v56
    %86 = vmatprep.subr.mxu0 0.0
    %87 = vmatpush1.msra.mxu0 %v57
    %88 = vmatprep.subr.mxu0 0.0
    %89 = vmatpush1.msra.mxu0 %v58
    %90 = vmatprep.subr.mxu0 0.0
    %91 = vmatpush1.msra.mxu0 %v59
    %92 = vmatprep.subr.mxu0 0.0
    %93 = vmatpush1.msra.mxu0 %v60
    %94 = vmatprep.subr.mxu0 0.0
    %95 = vmatpush1.msra.mxu0 %v61
    %96 = vmatprep.subr.mxu0 0.0
    %97 = vmatpush1.msra.mxu0 %v62
    %98 = vmatprep.subr.mxu0 0.0
    %99 = vmatpush1.msra.mxu0 %v63
    %100 = vmatprep.subr.mxu0 0.0
    %101 = vmatpush1.msra.mxu0 %v64
    %102 = vmatprep.subr.mxu0 0.0
    %103 = vmatpush1.msra.mxu0 0.0
    %104 = vmatprep.subr.mxu0 0.0
    %105 = vmatpush1.msra.mxu0 0.0
    %106 = vmatprep.subr.mxu0 0.0
    %107 = vmatpush1.msra.mxu0 0.0
    %108 = vmatprep.subr.mxu0 0.0
    %109 = vmatpush1.msra.mxu0 0.0
    %110 = vmatprep.subr.mxu0 0.0
    %111 = vmatpush1.msra.mxu0 0.0
    %112 = vmatprep.subr.mxu0 0.0
    %113 = vmatpush1.msra.mxu0 0.0
    %114 = vmatprep.subr.mxu0 0.0
    %115 = vmatpush1.msra.mxu0 0.0
    %116 = vmatprep.subr.mxu0 0.0
    %117 = vmatpush1.msra.mxu0 0.0
    %118 = vmatprep.subr.mxu0 0.0
    %119 = vmatpush1.msra.mxu0 0.0
    %120 = vmatprep.subr.mxu0 0.0
    %121 = vmatpush1.msra.mxu0 0.0
    %122 = vmatprep.subr.mxu0 0.0
    %123 = vmatpush1.msra.mxu0 0.0
    %124 = vmatprep.subr.mxu0 0.0
    %125 = vmatpush1.msra.mxu0 0.0
    %126 = vmatprep.subr.mxu0 0.0
    %127 = vmatpush1.msra.mxu0 0.0
    %128 = vmatprep.subr.mxu0 0.0
    %129 = vmatpush1.msra.mxu0 0.0
    %130 = vmatprep.subr.mxu0 0.0
    %131 = vmatpush1.msra.mxu0 0.0
    %132 = vmatprep.subr.mxu0 0.0
    %133 = vmatpush1.msra.mxu0 0.0
    %134 = vmatprep.mubr.f32.mxu0 0.0
    %135 = vmatmul.mubr.f32.gmra.mrb[0].mxu0 %v47
    %v136 = vpop.f32.mrb[0].mxu0
    %v137 = vadd.f32 %v69, %v136
    %v138 = vpop.f32.mrb[0].mxu0
    %139 = vmatprep.mubr.f32.mxu0 0.0
    %140 = vmatmul.mubr.f32.gmra.mrb[0].mxu0 %v48
    %v141 = vpop.f32.mrb[0].mxu0
    %v142 = vadd.f32 %v69, %v141
    %v143 = vpop.f32.mrb[0].mxu0
    %144 = vdwg.mxu0
    %v145 = vld [vmem:[#allocation2 + $0x80] sm:$0xff]
    %v146 = vadd.f32 %v137, %v145
    %v147 = vadd.f32 %v142, %v145
    %v148 = vld [vmem:[%s3 + $0x1] sm:$0x1]
    %v149 = vld [vmem:[%s3 + $0x2] sm:$0x1]
    %vm150 = vcmask 261120
    %v151 = vsel %vm150, %v146, 0.0
    %152 = vadd.xlane.f32.xlu0 %v151
    %v153 = vpop.xlane.xlu0 %152
    %v154 = vsel %vm150, %v147, 0.0
    %155 = vadd.xlane.f32.xlu0 %v154
    %v156 = vpop.xlane.xlu0 %155
    %v157 = vrcp.pop 32.0
    %v158 = vmul.f32 %v153, %v157
    %v159 = vmul.f32 %v156, %v157
    %v160 = vsub.f32 %v146, %v158
    %v161 = vsub.f32 %v147, %v159
    %v162 = vmul.f32 %v160, %v160
    %v163 = vmul.f32 %v161, %v161
    %v164 = vsel %vm150, %v162, 0.0
    %165 = vadd.xlane.f32.xlu0 %v164
    %v166 = vpop.xlane.xlu0 %165
    %v167 = vsel %vm150, %v163, 0.0
    %168 = vadd.xlane.f32.xlu0 %v167
    %v169 = vpop.xlane.xlu0 %168
    %v170 = vmul.f32 %v166, %v157
    %v171 = vmul.f32 %v169, %v157
    %v172 = vadd.f32 %v170, 1e-12
    %v173 = vadd.f32 %v171, 1e-12
    %v174 = vrsqrt.pop %v172
    %v175 = vrsqrt.pop %v173
    %v176 = vmul.f32 %v160, %v174
    %v177 = vmul.f32 %v161, %v175
    %v178 = vlaneseq
    %v179 = vshrl.u32 %v178, 7
    %v180 = vsub.s32 0, %v179
    %v181 = vrot.slane %v148, %v180
    %v182 = vmul.f32 %v176, %v181
    %v183 = vmul.f32 %v177, %v181
    %v184 = vlaneseq
    %v185 = vshrl.u32 %v184, 7
    %v186 = vsub.s32 0, %v185
    %v187 = vrot.slane %v149, %v186
    %v188 = vadd.f32 %v182, %v187
    %v189 = vadd.f32 %v183, %v187
    %v190 = vsub.f32 1.0, %v34
    %v191 = vmul.f32 %v190, -1e+09
    %v194 = vunpack.c.l.s4 1966171168
    %v195 = vunpack.c.0.s8 %v194
    %v196 = vlaneseq
    %v197 = vshrl.u32 %v196, 7
    %v198 = vsub.s32 %v195, %v197
    %v199 = vrot.slane %v191, %v198
    %v200 = vcombine.high %v199, %v199
    %v202 = vunpack.c.l.s4 1966171168
    %v203 = vunpack.c.0.s8 %v202
    %v204 = vlaneseq
    %v205 = vshrl.u32 %v204, 7
    %v206 = vsub.s32 %v203, %v205
    %v207 = vrot.slane %v199, %v206
    %v209 = vunpack.c.l.s4 1966171168
    %v210 = vunpack.c.0.s8 %v209
    %v211 = vlaneseq
    %v212 = vshrl.u32 %v211, 7
    %v213 = vsub.s32 %v210, %v212
    %v214 = vrot.slane %v200, %v213
    %v215 = vld [vmem:[#allocation2 + $0x88] sm:$0xff]
    %v216 = vld [vmem:[#allocation2 + $0x90] sm:$0xff]
    %v217 = vld [vmem:[#allocation2 + $0x98] sm:$0xff]
    %v218 = vld [vmem:[#allocation2 + $0xa0] sm:$0xff]
    %v219 = vld [vmem:[%s3 + $0x3] sm:$0x1]
    %v220 = vlaneseq
    %v221 = vshrl.u32 %v220, 7
    %v222 = vsub.s32 0, %v221
    %v223 = vrot.slane %v219, %v222
    %v225 = vsel %vm150, %v188, 0
    %v228 = vsel %vm150, %v189, 0
    %230 = vmatprep.subr.mxu0 0.0
    %231 = vmatpush1.msra.mxu0 %v215
    %232 = vmatprep.subr.mxu0 0.0
    %233 = vmatpush1.msra.mxu0 %v216
    %234 = vmatprep.subr.mxu0 0.0
    %235 = vmatpush1.msra.mxu0 %v217
    %236 = vmatprep.subr.mxu0 0.0
    %237 = vmatpush1.msra.mxu0 %v218
    %238 = vmatprep.subr.mxu0 0.0
    %239 = vmatpush1.msra.mxu0 0.0
    %240 = vmatprep.subr.mxu0 0.0
    %241 = vmatpush1.msra.mxu0 0.0
    %242 = vmatprep.subr.mxu0 0.0
    %243 = vmatpush1.msra.mxu0 0.0
    %244 = vmatprep.subr.mxu0 0.0
    %245 = vmatpush1.msra.mxu0 0.0
    %246 = vmatprep.subr.mxu0 0.0
    %247 = vmatpush1.msra.mxu0 0.0
    %248 = vmatprep.subr.mxu0 0.0
    %249 = vmatpush1.msra.mxu0 0.0
    %250 = vmatprep.subr.mxu0 0.0
    %251 = vmatpush1.msra.mxu0 0.0
    %252 = vmatprep.subr.mxu0 0.0
    %253 = vmatpush1.msra.mxu0 0.0
    %254 = vmatprep.subr.mxu0 0.0
    %255 = vmatpush1.msra.mxu0 0.0
    %256 = vmatprep.subr.mxu0 0.0
    %257 = vmatpush1.msra.mxu0 0.0
    %258 = vmatprep.subr.mxu0 0.0
    %259 = vmatpush1.msra.mxu0 0.0
    %260 = vmatprep.subr.mxu0 0.0
    %261 = vmatpush1.msra.mxu0 0.0
    %262 = vmatprep.subr.mxu0 0.0
    %263 = vmatpush1.msra.mxu0 0.0
    %264 = vmatprep.subr.mxu0 0.0
    %265 = vmatpush1.msra.mxu0 0.0
    %266 = vmatprep.subr.mxu0 0.0
    %267 = vmatpush1.msra.mxu0 0.0
    %268 = vmatprep.subr.mxu0 0.0
    %269 = vmatpush1.msra.mxu0 0.0
    %270 = vmatprep.subr.mxu0 0.0
    %271 = vmatpush1.msra.mxu0 0.0
    %272 = vmatprep.subr.mxu0 0.0
    %273 = vmatpush1.msra.mxu0 0.0
    %274 = vmatprep.subr.mxu0 0.0
    %275 = vmatpush1.msra.mxu0 0.0
    %276 = vmatprep.subr.mxu0 0.0
    %277 = vmatpush1.msra.mxu0 0.0
    %278 = vmatprep.subr.mxu0 0.0
    %279 = vmatpush1.msra.mxu0 0.0
    %280 = vmatprep.subr.mxu0 0.0
    %281 = vmatpush1.msra.mxu0 0.0
    %282 = vmatprep.subr.mxu0 0.0
    %283 = vmatpush1.msra.mxu0 0.0
    %284 = vmatprep.subr.mxu0 0.0
    %285 = vmatpush1.msra.mxu0 0.0
    %286 = vmatprep.subr.mxu0 0.0
    %287 = vmatpush1.msra.mxu0 0.0
    %288 = vmatprep.subr.mxu0 0.0
    %289 = vmatpush1.msra.mxu0 0.0
    %290 = vmatprep.subr.mxu0 0.0
    %291 = vmatpush1.msra.mxu0 0.0
    %292 = vmatprep.subr.mxu0 0.0
    %293 = vmatpush1.msra.mxu0 0.0
    %294 = vmatprep.mubr.f32.mxu0 0.0
    %295 = vmatmul.mubr.f32.gmra.mrb[0].mxu0 %v225
    %v296 = vpop.f32.mrb[0].mxu0
    %v297 = vadd.f32 %v223, %v296
    %v298 = vpop.f32.mrb[0].mxu0
    %299 = vmatprep.mubr.f32.mxu0 0.0
    %300 = vmatmul.mubr.f32.gmra.mrb[0].mxu0 %v228
    %v301 = vpop.f32.mrb[0].mxu0
    %v302 = vadd.f32 %v223, %v301
    %v303 = vpop.f32.mrb[0].mxu0
    %304 = vdwg.mxu0
    %306 = vrot.lane.b32.xlu0 %v297, 96
    %v307 = vpop.permute.xlu0 %306
    %vm308 = vcmask 64512
    %v309 = vsel %vm308, %v297, 0
    %v311 = vsel %vm308, %v307, 0
    %313 = vmatprep.subr.mxu0 0.0
    %314 = vmatpush1.xpose.msra.mxu0 %v311
    %315 = vmatprep.subr.mxu0 0.0
    %316 = vmatpush1.xpose.msra.mxu0 0.0
    %317 = vmatprep.subr.mxu0 0.0
    %318 = vmatpush1.xpose.msra.mxu0 0.0
    %319 = vmatprep.subr.mxu0 0.0
    %320 = vmatpush1.xpose.msra.mxu0 0.0
    %321 = vmatprep.subr.mxu0 0.0
    %322 = vmatpush1.xpose.msra.mxu0 0.0
    %323 = vmatprep.subr.mxu0 0.0
    %324 = vmatpush1.xpose.msra.mxu0 0.0
    %325 = vmatprep.subr.mxu0 0.0
    %326 = vmatpush1.xpose.msra.mxu0 0.0
    %327 = vmatprep.subr.mxu0 0.0
    %328 = vmatpush1.xpose.msra.mxu0 0.0
    %329 = vmatprep.subr.mxu0 0.0
    %330 = vmatpush1.xpose.msra.mxu0 0.0
    %331 = vmatprep.subr.mxu0 0.0
    %332 = vmatpush1.xpose.msra.mxu0 0.0
    %333 = vmatprep.subr.mxu0 0.0
    %334 = vmatpush1.xpose.msra.mxu0 0.0
    %335 = vmatprep.subr.mxu0 0.0
    %336 = vmatpush1.xpose.msra.mxu0 0.0
    %337 = vmatprep.subr.mxu0 0.0
    %338 = vmatpush1.xpose.msra.mxu0 0.0
    %339 = vmatprep.subr.mxu0 0.0
    %340 = vmatpush1.xpose.msra.mxu0 0.0
    %341 = vmatprep.subr.mxu0 0.0
    %342 = vmatpush1.xpose.msra.mxu0 0.0
    %343 = vmatprep.subr.mxu0 0.0
    %344 = vmatpush1.xpose.msra.mxu0 0.0
    %345 = vmatprep.subr.mxu0 0.0
    %346 = vmatpush1.xpose.msra.mxu0 0.0
    %347 = vmatprep.subr.mxu0 0.0
    %348 = vmatpush1.xpose.msra.mxu0 0.0
    %349 = vmatprep.subr.mxu0 0.0
    %350 = vmatpush1.xpose.msra.mxu0 0.0
    %351 = vmatprep.subr.mxu0 0.0
    %352 = vmatpush1.xpose.msra.mxu0 0.0
    %353 = vmatprep.subr.mxu0 0.0
    %354 = vmatpush1.xpose.msra.mxu0 0.0
    %355 = vmatprep.subr.mxu0 0.0
    %356 = vmatpush1.xpose.msra.mxu0 0.0
    %357 = vmatprep.subr.mxu0 0.0
    %358 = vmatpush1.xpose.msra.mxu0 0.0
    %359 = vmatprep.subr.mxu0 0.0
    %360 = vmatpush1.xpose.msra.mxu0 0.0
    %361 = vmatprep.subr.mxu0 0.0
    %362 = vmatpush1.xpose.msra.mxu0 0.0
    %363 = vmatprep.subr.mxu0 0.0
    %364 = vmatpush1.xpose.msra.mxu0 0.0
    %365 = vmatprep.subr.mxu0 0.0
    %366 = vmatpush1.xpose.msra.mxu0 0.0
    %367 = vmatprep.subr.mxu0 0.0
    %368 = vmatpush1.xpose.msra.mxu0 0.0
    %369 = vmatprep.subr.mxu0 0.0
    %370 = vmatpush1.xpose.msra.mxu0 0.0
    %371 = vmatprep.subr.mxu0 0.0
    %372 = vmatpush1.xpose.msra.mxu0 0.0
    %373 = vmatprep.subr.mxu0 0.0
    %374 = vmatpush1.xpose.msra.mxu0 0.0
    %375 = vmatprep.subr.mxu0 0.0
    %376 = vmatpush1.xpose.msra.mxu0 0.0
    %377 = vmatprep.mubr.f32.mxu0 0.0
    %378 = vmatmul.mubr.f32.gmra.mrb[0].mxu0 %v309
    %v379 = vpop.f32.mrb[0].mxu0
    %v380 = vadd.f32 0.0, %v379
    %v381 = vpop.f32.mrb[0].mxu0
    %382 = vdwg.mxu0
    %384 = vrot.lane.b32.xlu0 %v302, 96
    %v385 = vpop.permute.xlu0 %384
    %v386 = vsel %vm308, %v302, 0
    %v388 = vsel %vm308, %v385, 0
    %390 = vmatprep.subr.mxu0 0.0
    %391 = vmatpush1.xpose.msra.mxu0 %v388
    %392 = vmatprep.subr.mxu0 0.0
    %393 = vmatpush1.xpose.msra.mxu0 0.0
    %394 = vmatprep.subr.mxu0 0.0
    %395 = vmatpush1.xpose.msra.mxu0 0.0
    %396 = vmatprep.subr.mxu0 0.0
    %397 = vmatpush1.xpose.msra.mxu0 0.0
    %398 = vmatprep.subr.mxu0 0.0
    %399 = vmatpush1.xpose.msra.mxu0 0.0
    %400 = vmatprep.subr.mxu0 0.0
    %401 = vmatpush1.xpose.msra.mxu0 0.0
    %402 = vmatprep.subr.mxu0 0.0
    %403 = vmatpush1.xpose.msra.mxu0 0.0
    %404 = vmatprep.subr.mxu0 0.0
    %405 = vmatpush1.xpose.msra.mxu0 0.0
    %406 = vmatprep.subr.mxu0 0.0
    %407 = vmatpush1.xpose.msra.mxu0 0.0
    %408 = vmatprep.subr.mxu0 0.0
    %409 = vmatpush1.xpose.msra.mxu0 0.0
    %410 = vmatprep.subr.mxu0 0.0
    %411 = vmatpush1.xpose.msra.mxu0 0.0
    %412 = vmatprep.subr.mxu0 0.0
    %413 = vmatpush1.xpose.msra.mxu0 0.0
    %414 = vmatprep.subr.mxu0 0.0
    %415 = vmatpush1.xpose.msra.mxu0 0.0
    %416 = vmatprep.subr.mxu0 0.0
    %417 = vmatpush1.xpose.msra.mxu0 0.0
    %418 = vmatprep.subr.mxu0 0.0
    %419 = vmatpush1.xpose.msra.mxu0 0.0
    %420 = vmatprep.subr.mxu0 0.0
    %421 = vmatpush1.xpose.msra.mxu0 0.0
    %422 = vmatprep.subr.mxu0 0.0
    %423 = vmatpush1.xpose.msra.mxu0 0.0
    %424 = vmatprep.subr.mxu0 0.0
    %425 = vmatpush1.xpose.msra.mxu0 0.0
    %426 = vmatprep.subr.mxu0 0.0
    %427 = vmatpush1.xpose.msra.mxu0 0.0
    %428 = vmatprep.subr.mxu0 0.0
    %429 = vmatpush1.xpose.msra.mxu0 0.0
    %430 = vmatprep.subr.mxu0 0.0
    %431 = vmatpush1.xpose.msra.mxu0 0.0
    %432 = vmatprep.subr.mxu0 0.0
    %433 = vmatpush1.xpose.msra.mxu0 0.0
    %434 = vmatprep.subr.mxu0 0.0
    %435 = vmatpush1.xpose.msra.mxu0 0.0
    %436 = vmatprep.subr.mxu0 0.0
    %437 = vmatpush1.xpose.msra.mxu0 0.0
    %438 = vmatprep.subr.mxu0 0.0
    %439 = vmatpush1.xpose.msra.mxu0 0.0
    %440 = vmatprep.subr.mxu0 0.0
    %441 = vmatpush1.xpose.msra.mxu0 0.0
    %442 = vmatprep.subr.mxu0 0.0
    %443 = vmatpush1.xpose.msra.mxu0 0.0
    %444 = vmatprep.subr.mxu0 0.0
    %445 = vmatpush1.xpose.msra.mxu0 0.0
    %446 = vmatprep.subr.mxu0 0.0
    %447 = vmatpush1.xpose.msra.mxu0 0.0
    %448 = vmatprep.subr.mxu0 0.0
    %449 = vmatpush1.xpose.msra.mxu0 0.0
    %450 = vmatprep.subr.mxu0 0.0
    %451 = vmatpush1.xpose.msra.mxu0 0.0
    %452 = vmatprep.subr.mxu0 0.0
    %453 = vmatpush1.xpose.msra.mxu0 0.0
    %454 = vmatprep.mubr.f32.mxu0 0.0
    %455 = vmatmul.mubr.f32.gmra.mrb[0].mxu0 %v386
    %v456 = vpop.f32.mrb[0].mxu0
    %v457 = vadd.f32 0.0, %v456
    %v458 = vpop.f32.mrb[0].mxu0
    %459 = vdwg.mxu0
    %v460 = vmul.f32 %v380, 0.35355338
    %v461 = vmul.f32 %v457, 0.35355338
    %v462 = vlaneseq
    %v463 = vshrl.u32 %v462, 7
    %v464 = vsub.s32 0, %v463
    %v465 = vrot.slane %v207, %v464
    %v466 = vlaneseq
    %v467 = vshrl.u32 %v466, 7
    %v468 = vsub.s32 0, %v467
    %v469 = vrot.slane %v214, %v468
    %v472 = vadd.f32 %v460, %v465
    %v473 = vadd.f32 %v461, %v469
    %v474 = vsel %vm308, %v472, -inf
    %475 = vmax.xlane.f32.xlu0 %v474
    %v476 = vpop.xlane.xlu0 %475
    %v477 = vsel %vm308, %v473, -inf
    %478 = vmax.xlane.f32.xlu0 %v477
    %v479 = vpop.xlane.xlu0 %478
    %v480 = vsub.f32 %v472, %v476
    %v481 = vsub.f32 %v473, %v479
    %v482 = vmul.f32 %v480, 1.442695
    %v483 = vpow.pop %v482
    %v484 = vmul.f32 %v481, 1.442695
    %v485 = vpow.pop %v484
    %v486 = vsel %vm308, %v483, 0.0
    %487 = vadd.xlane.f32.xlu0 %v486
    %v488 = vpop.xlane.xlu0 %487
    %v489 = vsel %vm308, %v485, 0.0
    %490 = vadd.xlane.f32.xlu0 %v489
    %v491 = vpop.xlane.xlu0 %490
    %v492 = vrcp.pop %v488
    %v493 = vrcp.pop %v491
    %v494 = vmul.f32 %v483, %v492
    %v495 = vmul.f32 %v485, %v493
    %496 = vrot.lane.b32.xlu0 %v297, 64
    %v497 = vpop.permute.xlu0 %496
    %v500 = vsel %vm308, %v494, 0
    %502 = vmatprep.subr.mxu0 0.0
    %503 = vmatpush1.msra.mxu0 %v497
    %504 = vmatprep.subr.mxu0 0.0
    %505 = vmatpush1.msra.mxu0 0.0
    %506 = vmatprep.subr.mxu0 0.0
    %507 = vmatpush1.msra.mxu0 0.0
    %508 = vmatprep.subr.mxu0 0.0
    %509 = vmatpush1.msra.mxu0 0.0
    %510 = vmatprep.subr.mxu0 0.0
    %511 = vmatpush1.msra.mxu0 0.0
    %512 = vmatprep.subr.mxu0 0.0
    %513 = vmatpush1.msra.mxu0 0.0
    %514 = vmatprep.subr.mxu0 0.0
    %515 = vmatpush1.msra.mxu0 0.0
    %516 = vmatprep.subr.mxu0 0.0
    %517 = vmatpush1.msra.mxu0 0.0
    %518 = vmatprep.subr.mxu0 0.0
    %519 = vmatpush1.msra.mxu0 0.0
    %520 = vmatprep.subr.mxu0 0.0
    %521 = vmatpush1.msra.mxu0 0.0
    %522 = vmatprep.subr.mxu0 0.0
    %523 = vmatpush1.msra.mxu0 0.0
    %524 = vmatprep.subr.mxu0 0.0
    %525 = vmatpush1.msra.mxu0 0.0
    %526 = vmatprep.subr.mxu0 0.0
    %527 = vmatpush1.msra.mxu0 0.0
    %528 = vmatprep.subr.mxu0 0.0
    %529 = vmatpush1.msra.mxu0 0.0
    %530 = vmatprep.subr.mxu0 0.0
    %531 = vmatpush1.msra.mxu0 0.0
    %532 = vmatprep.subr.mxu0 0.0
    %533 = vmatpush1.msra.mxu0 0.0
    %534 = vmatprep.subr.mxu0 0.0
    %535 = vmatpush1.msra.mxu0 0.0
    %536 = vmatprep.subr.mxu0 0.0
    %537 = vmatpush1.msra.mxu0 0.0
    %538 = vmatprep.subr.mxu0 0.0
    %539 = vmatpush1.msra.mxu0 0.0
    %540 = vmatprep.subr.mxu0 0.0
    %541 = vmatpush1.msra.mxu0 0.0
    %542 = vmatprep.subr.mxu0 0.0
    %543 = vmatpush1.msra.mxu0 0.0
    %544 = vmatprep.subr.mxu0 0.0
    %545 = vmatpush1.msra.mxu0 0.0
    %546 = vmatprep.subr.mxu0 0.0
    %547 = vmatpush1.msra.mxu0 0.0
    %548 = vmatprep.subr.mxu0 0.0
    %549 = vmatpush1.msra.mxu0 0.0
    %550 = vmatprep.subr.mxu0 0.0
    %551 = vmatpush1.msra.mxu0 0.0
    %552 = vmatprep.subr.mxu0 0.0
    %553 = vmatpush1.msra.mxu0 0.0
    %554 = vmatprep.subr.mxu0 0.0
    %555 = vmatpush1.msra.mxu0 0.0
    %556 = vmatprep.subr.mxu0 0.0
    %557 = vmatpush1.msra.mxu0 0.0
    %558 = vmatprep.subr.mxu0 0.0
    %559 = vmatpush1.msra.mxu0 0.0
    %560 = vmatprep.subr.mxu0 0.0
    %561 = vmatpush1.msra.mxu0 0.0
    %562 = vmatprep.subr.mxu0 0.0
    %563 = vmatpush1.msra.mxu0 0.0
    %564 = vmatprep.subr.mxu0 0.0
    %565 = vmatpush1.msra.mxu0 0.0
    %566 = vmatprep.mubr.f32.mxu0 0.0
    %567 = vmatmul.mubr.f32.gmra.mrb[0].mxu0 %v500
    %v568 = vpop.f32.mrb[0].mxu0
    %v569 = vadd.f32 0.0, %v568
    %v570 = vpop.f32.mrb[0].mxu0
    %571 = vdwg.mxu0
    %572 = vrot.lane.b32.xlu0 %v302, 64
    %v573 = vpop.permute.xlu0 %572
    %v576 = vsel %vm308, %v495, 0
    %578 = vmatprep.subr.mxu0 0.0
    %579 = vmatpush1.msra.mxu0 %v573
    %580 = vmatprep.subr.mxu0 0.0
    %581 = vmatpush1.msra.mxu0 0.0
    %582 = vmatprep.subr.mxu0 0.0
    %583 = vmatpush1.msra.mxu0 0.0
    %584 = vmatprep.subr.mxu0 0.0
    %585 = vmatpush1.msra.mxu0 0.0
    %586 = vmatprep.subr.mxu0 0.0
    %587 = vmatpush1.msra.mxu0 0.0
    %588 = vmatprep.subr.mxu0 0.0
    %589 = vmatpush1.msra.mxu0 0.0
    %590 = vmatprep.subr.mxu0 0.0
    %591 = vmatpush1.msra.mxu0 0.0
    %592 = vmatprep.subr.mxu0 0.0
    %593 = vmatpush1.msra.mxu0 0.0
    %594 = vmatprep.subr.mxu0 0.0
    %595 = vmatpush1.msra.mxu0 0.0
    %596 = vmatprep.subr.mxu0 0.0
    %597 = vmatpush1.msra.mxu0 0.0
    %598 = vmatprep.subr.mxu0 0.0
    %599 = vmatpush1.msra.mxu0 0.0
    %600 = vmatprep.subr.mxu0 0.0
    %601 = vmatpush1.msra.mxu0 0.0
    %602 = vmatprep.subr.mxu0 0.0
    %603 = vmatpush1.msra.mxu0 0.0
    %604 = vmatprep.subr.mxu0 0.0
    %605 = vmatpush1.msra.mxu0 0.0
    %606 = vmatprep.subr.mxu0 0.0
    %607 = vmatpush1.msra.mxu0 0.0
    %608 = vmatprep.subr.mxu0 0.0
    %609 = vmatpush1.msra.mxu0 0.0
    %610 = vmatprep.subr.mxu0 0.0
    %611 = vmatpush1.msra.mxu0 0.0
    %612 = vmatprep.subr.mxu0 0.0
    %613 = vmatpush1.msra.mxu0 0.0
    %614 = vmatprep.subr.mxu0 0.0
    %615 = vmatpush1.msra.mxu0 0.0
    %616 = vmatprep.subr.mxu0 0.0
    %617 = vmatpush1.msra.mxu0 0.0
    %618 = vmatprep.subr.mxu0 0.0
    %619 = vmatpush1.msra.mxu0 0.0
    %620 = vmatprep.subr.mxu0 0.0
    %621 = vmatpush1.msra.mxu0 0.0
    %622 = vmatprep.subr.mxu0 0.0
    %623 = vmatpush1.msra.mxu0 0.0
    %624 = vmatprep.subr.mxu0 0.0
    %625 = vmatpush1.msra.mxu0 0.0
    %626 = vmatprep.subr.mxu0 0.0
    %627 = vmatpush1.msra.mxu0 0.0
    %628 = vmatprep.subr.mxu0 0.0
    %629 = vmatpush1.msra.mxu0 0.0
    %630 = vmatprep.subr.mxu0 0.0
    %631 = vmatpush1.msra.mxu0 0.0
    %632 = vmatprep.subr.mxu0 0.0
    %633 = vmatpush1.msra.mxu0 0.0
    %634 = vmatprep.subr.mxu0 0.0
    %635 = vmatpush1.msra.mxu0 0.0
    %636 = vmatprep.subr.mxu0 0.0
    %637 = vmatpush1.msra.mxu0 0.0
    %638 = vmatprep.subr.mxu0 0.0
    %639 = vmatpush1.msra.mxu0 0.0
    %640 = vmatprep.subr.mxu0 0.0
    %641 = vmatpush1.msra.mxu0 0.0
    %642 = vmatprep.mubr.f32.mxu0 0.0
    %643 = vmatmul.mubr.f32.gmra.mrb[0].mxu0 %v576
    %v644 = vpop.f32.mrb[0].mxu0
    %v645 = vadd.f32 0.0, %v644
    %v646 = vpop.f32.mrb[0].mxu0
    %647 = vdwg.mxu0
    %648 = vrot.lane.b32.xlu0 %v297, 120
    %v649 = vpop.permute.xlu0 %648
    %650 = vrot.lane.b32.xlu0 %v297, 88
    %v651 = vpop.permute.xlu0 %650
    %v652 = vsel %vm308, %v649, 0
    %v654 = vsel %vm308, %v651, 0
    %656 = vmatprep.subr.mxu0 0.0
    %657 = vmatpush1.xpose.msra.mxu0 %v654
    %658 = vmatprep.subr.mxu0 0.0
    %659 = vmatpush1.xpose.msra.mxu0 0.0
    %660 = vmatprep.subr.mxu0 0.0
    %661 = vmatpush1.xpose.msra.mxu0 0.0
    %662 = vmatprep.subr.mxu0 0.0
    %663 = vmatpush1.xpose.msra.mxu0 0.0
    %664 = vmatprep.subr.mxu0 0.0
    %665 = vmatpush1.xpose.msra.mxu0 0.0
    %666 = vmatprep.subr.mxu0 0.0
    %667 = vmatpush1.xpose.msra.mxu0 0.0
    %668 = vmatprep.subr.mxu0 0.0
    %669 = vmatpush1.xpose.msra.mxu0 0.0
    %670 = vmatprep.subr.mxu0 0.0
    %671 = vmatpush1.xpose.msra.mxu0 0.0
    %672 = vmatprep.subr.mxu0 0.0
    %673 = vmatpush1.xpose.msra.mxu0 0.0
    %674 = vmatprep.subr.mxu0 0.0
    %675 = vmatpush1.xpose.msra.mxu0 0.0
    %676 = vmatprep.subr.mxu0 0.0
    %677 = vmatpush1.xpose.msra.mxu0 0.0
    %678 = vmatprep.subr.mxu0 0.0
    %679 = vmatpush1.xpose.msra.mxu0 0.0
    %680 = vmatprep.subr.mxu0 0.0
    %681 = vmatpush1.xpose.msra.mxu0 0.0
    %682 = vmatprep.subr.mxu0 0.0
    %683 = vmatpush1.xpose.msra.mxu0 0.0
    %684 = vmatprep.subr.mxu0 0.0
    %685 = vmatpush1.xpose.msra.mxu0 0.0
    %686 = vmatprep.subr.mxu0 0.0
    %687 = vmatpush1.xpose.msra.mxu0 0.0
    %688 = vmatprep.subr.mxu0 0.0
    %689 = vmatpush1.xpose.msra.mxu0 0.0
    %690 = vmatprep.subr.mxu0 0.0
    %691 = vmatpush1.xpose.msra.mxu0 0.0
    %692 = vmatprep.subr.mxu0 0.0
    %693 = vmatpush1.xpose.msra.mxu0 0.0
    %694 = vmatprep.subr.mxu0 0.0
    %695 = vmatpush1.xpose.msra.mxu0 0.0
    %696 = vmatprep.subr.mxu0 0.0
    %697 = vmatpush1.xpose.msra.mxu0 0.0
    %698 = vmatprep.subr.mxu0 0.0
    %699 = vmatpush1.xpose.msra.mxu0 0.0
    %700 = vmatprep.subr.mxu0 0.0
    %701 = vmatpush1.xpose.msra.mxu0 0.0
    %702 = vmatprep.subr.mxu0 0.0
    %703 = vmatpush1.xpose.msra.mxu0 0.0
    %704 = vmatprep.subr.mxu0 0.0
    %705 = vmatpush1.xpose.msra.mxu0 0.0
    %706 = vmatprep.subr.mxu0 0.0
    %707 = vmatpush1.xpose.msra.mxu0 0.0
    %708 = vmatprep.subr.mxu0 0.0
    %709 = vmatpush1.xpose.msra.mxu0 0.0
    %710 = vmatprep.subr.mxu0 0.0
    %711 = vmatpush1.xpose.msra.mxu0 0.0
    %712 = vmatprep.subr.mxu0 0.0
    %713 = vmatpush1.xpose.msra.mxu0 0.0
    %714 = vmatprep.subr.mxu0 0.0
    %715 = vmatpush1.xpose.msra.mxu0 0.0
    %716 = vmatprep.subr.mxu0 0.0
    %717 = vmatpush1.xpose.msra.mxu0 0.0
    %718 = vmatprep.subr.mxu0 0.0
    %719 = vmatpush1.xpose.msra.mxu0 0.0
    %720 = vmatprep.mubr.f32.mxu0 0.0
    %721 = vmatmul.mubr.f32.gmra.mrb[0].mxu0 %v652
    %v722 = vpop.f32.mrb[0].mxu0
    %v723 = vadd.f32 0.0, %v722
    %v724 = vpop.f32.mrb[0].mxu0
    %725 = vdwg.mxu0
    %726 = vrot.lane.b32.xlu0 %v302, 120
    %v727 = vpop.permute.xlu0 %726
    %728 = vrot.lane.b32.xlu0 %v302, 88
    %v729 = vpop.permute.xlu0 %728
    %v730 = vsel %vm308, %v727, 0
    %v732 = vsel %vm308, %v729, 0
    %734 = vmatprep.subr.mxu0 0.0
    %735 = vmatpush1.xpose.msra.mxu0 %v732
    %736 = vmatprep.subr.mxu0 0.0
    %737 = vmatpush1.xpose.msra.mxu0 0.0
    %738 = vmatprep.subr.mxu0 0.0
    %739 = vmatpush1.xpose.msra.mxu0 0.0
    %740 = vmatprep.subr.mxu0 0.0
    %741 = vmatpush1.xpose.msra.mxu0 0.0
    %742 = vmatprep.subr.mxu0 0.0
    %743 = vmatpush1.xpose.msra.mxu0 0.0
    %744 = vmatprep.subr.mxu0 0.0
    %745 = vmatpush1.xpose.msra.mxu0 0.0
    %746 = vmatprep.subr.mxu0 0.0
    %747 = vmatpush1.xpose.msra.mxu0 0.0
    %748 = vmatprep.subr.mxu0 0.0
    %749 = vmatpush1.xpose.msra.mxu0 0.0
    %750 = vmatprep.subr.mxu0 0.0
    %751 = vmatpush1.xpose.msra.mxu0 0.0
    %752 = vmatprep.subr.mxu0 0.0
    %753 = vmatpush1.xpose.msra.mxu0 0.0
    %754 = vmatprep.subr.mxu0 0.0
    %755 = vmatpush1.xpose.msra.mxu0 0.0
    %756 = vmatprep.subr.mxu0 0.0
    %757 = vmatpush1.xpose.msra.mxu0 0.0
    %758 = vmatprep.subr.mxu0 0.0
    %759 = vmatpush1.xpose.msra.mxu0 0.0
    %760 = vmatprep.subr.mxu0 0.0
    %761 = vmatpush1.xpose.msra.mxu0 0.0
    %762 = vmatprep.subr.mxu0 0.0
    %763 = vmatpush1.xpose.msra.mxu0 0.0
    %764 = vmatprep.subr.mxu0 0.0
    %765 = vmatpush1.xpose.msra.mxu0 0.0
    %766 = vmatprep.subr.mxu0 0.0
    %767 = vmatpush1.xpose.msra.mxu0 0.0
    %768 = vmatprep.subr.mxu0 0.0
    %769 = vmatpush1.xpose.msra.mxu0 0.0
    %770 = vmatprep.subr.mxu0 0.0
    %771 = vmatpush1.xpose.msra.mxu0 0.0
    %772 = vmatprep.subr.mxu0 0.0
    %773 = vmatpush1.xpose.msra.mxu0 0.0
    %774 = vmatprep.subr.mxu0 0.0
    %775 = vmatpush1.xpose.msra.mxu0 0.0
    %776 = vmatprep.subr.mxu0 0.0
    %777 = vmatpush1.xpose.msra.mxu0 0.0
    %778 = vmatprep.subr.mxu0 0.0
    %779 = vmatpush1.xpose.msra.mxu0 0.0
    %780 = vmatprep.subr.mxu0 0.0
    %781 = vmatpush1.xpose.msra.mxu0 0.0
    %782 = vmatprep.subr.mxu0 0.0
    %783 = vmatpush1.xpose.msra.mxu0 0.0
    %784 = vmatprep.subr.mxu0 0.0
    %785 = vmatpush1.xpose.msra.mxu0 0.0
    %786 = vmatprep.subr.mxu0 0.0
    %787 = vmatpush1.xpose.msra.mxu0 0.0
    %788 = vmatprep.subr.mxu0 0.0
    %789 = vmatpush1.xpose.msra.mxu0 0.0
    %790 = vmatprep.subr.mxu0 0.0
    %791 = vmatpush1.xpose.msra.mxu0 0.0
    %792 = vmatprep.subr.mxu0 0.0
    %793 = vmatpush1.xpose.msra.mxu0 0.0
    %794 = vmatprep.subr.mxu0 0.0
    %795 = vmatpush1.xpose.msra.mxu0 0.0
    %796 = vmatprep.subr.mxu0 0.0
    %797 = vmatpush1.xpose.msra.mxu0 0.0
    %798 = vmatprep.mubr.f32.mxu0 0.0
    %799 = vmatmul.mubr.f32.gmra.mrb[0].mxu0 %v730
    %v800 = vpop.f32.mrb[0].mxu0
    %v801 = vadd.f32 0.0, %v800
    %v802 = vpop.f32.mrb[0].mxu0
    %803 = vdwg.mxu0
    %v804 = vmul.f32 %v723, 0.35355338
    %v805 = vmul.f32 %v801, 0.35355338
    %v806 = vadd.f32 %v804, %v465
    %v807 = vadd.f32 %v805, %v469
    %v808 = vsel %vm308, %v806, -inf
    %809 = vmax.xlane.f32.xlu0 %v808
    %v810 = vpop.xlane.xlu0 %809
    %v811 = vsel %vm308, %v807, -inf
    %812 = vmax.xlane.f32.xlu0 %v811
    %v813 = vpop.xlane.xlu0 %812
    %v814 = vsub.f32 %v806, %v810
    %v815 = vsub.f32 %v807, %v813
    %v816 = vmul.f32 %v814, 1.442695
    %v817 = vpow.pop %v816
    %v818 = vmul.f32 %v815, 1.442695
    %v819 = vpow.pop %v818
    %v820 = vsel %vm308, %v817, 0.0
    %821 = vadd.xlane.f32.xlu0 %v820
    %v822 = vpop.xlane.xlu0 %821
    %v823 = vsel %vm308, %v819, 0.0
    %824 = vadd.xlane.f32.xlu0 %v823
    %v825 = vpop.xlane.xlu0 %824
    %v826 = vrcp.pop %v822
    %v827 = vrcp.pop %v825
    %v828 = vmul.f32 %v817, %v826
    %v829 = vmul.f32 %v819, %v827
    %830 = vrot.lane.b32.xlu0 %v297, 56
    %v831 = vpop.permute.xlu0 %830
    %v834 = vsel %vm308, %v828, 0
    %836 = vmatprep.subr.mxu0 0.0
    %837 = vmatpush1.msra.mxu0 %v831
    %838 = vmatprep.subr.mxu0 0.0
    %839 = vmatpush1.msra.mxu0 0.0
    %840 = vmatprep.subr.mxu0 0.0
    %841 = vmatpush1.msra.mxu0 0.0
    %842 = vmatprep.subr.mxu0 0.0
    %843 = vmatpush1.msra.mxu0 0.0
    %844 = vmatprep.subr.mxu0 0.0
    %845 = vmatpush1.msra.mxu0 0.0
    %846 = vmatprep.subr.mxu0 0.0
    %847 = vmatpush1.msra.mxu0 0.0
    %848 = vmatprep.subr.mxu0 0.0
    %849 = vmatpush1.msra.mxu0 0.0
    %850 = vmatprep.subr.mxu0 0.0
    %851 = vmatpush1.msra.mxu0 0.0
    %852 = vmatprep.subr.mxu0 0.0
    %853 = vmatpush1.msra.mxu0 0.0
    %854 = vmatprep.subr.mxu0 0.0
    %855 = vmatpush1.msra.mxu0 0.0
    %856 = vmatprep.subr.mxu0 0.0
    %857 = vmatpush1.msra.mxu0 0.0
    %858 = vmatprep.subr.mxu0 0.0
    %859 = vmatpush1.msra.mxu0 0.0
    %860 = vmatprep.subr.mxu0 0.0
    %861 = vmatpush1.msra.mxu0 0.0
    %862 = vmatprep.subr.mxu0 0.0
    %863 = vmatpush1.msra.mxu0 0.0
    %864 = vmatprep.subr.mxu0 0.0
    %865 = vmatpush1.msra.mxu0 0.0
    %866 = vmatprep.subr.mxu0 0.0
    %867 = vmatpush1.msra.mxu0 0.0
    %868 = vmatprep.subr.mxu0 0.0
    %869 = vmatpush1.msra.mxu0 0.0
    %870 = vmatprep.subr.mxu0 0.0
    %871 = vmatpush1.msra.mxu0 0.0
    %872 = vmatprep.subr.mxu0 0.0
    %873 = vmatpush1.msra.mxu0 0.0
    %874 = vmatprep.subr.mxu0 0.0
    %875 = vmatpush1.msra.mxu0 0.0
    %876 = vmatprep.subr.mxu0 0.0
    %877 = vmatpush1.msra.mxu0 0.0
    %878 = vmatprep.subr.mxu0 0.0
    %879 = vmatpush1.msra.mxu0 0.0
    %880 = vmatprep.subr.mxu0 0.0
    %881 = vmatpush1.msra.mxu0 0.0
    %882 = vmatprep.subr.mxu0 0.0
    %883 = vmatpush1.msra.mxu0 0.0
    %884 = vmatprep.subr.mxu0 0.0
    %885 = vmatpush1.msra.mxu0 0.0
    %886 = vmatprep.subr.mxu0 0.0
    %887 = vmatpush1.msra.mxu0 0.0
    %888 = vmatprep.subr.mxu0 0.0
    %889 = vmatpush1.msra.mxu0 0.0
    %890 = vmatprep.subr.mxu0 0.0
    %891 = vmatpush1.msra.mxu0 0.0
    %892 = vmatprep.subr.mxu0 0.0
    %893 = vmatpush1.msra.mxu0 0.0
    %894 = vmatprep.subr.mxu0 0.0
    %895 = vmatpush1.msra.mxu0 0.0
    %896 = vmatprep.subr.mxu0 0.0
    %897 = vmatpush1.msra.mxu0 0.0
    %898 = vmatprep.subr.mxu0 0.0
    %899 = vmatpush1.msra.mxu0 0.0
    %900 = vmatprep.mubr.f32.mxu0 0.0
    %901 = vmatmul.mubr.f32.gmra.mrb[0].mxu0 %v834
    %v902 = vpop.f32.mrb[0].mxu0
    %v903 = vadd.f32 0.0, %v902
    %v904 = vpop.f32.mrb[0].mxu0
    %905 = vdwg.mxu0
    %906 = vrot.lane.b32.xlu0 %v302, 56
    %v907 = vpop.permute.xlu0 %906
    %v910 = vsel %vm308, %v829, 0
    %912 = vmatprep.subr.mxu0 0.0
    %913 = vmatpush1.msra.mxu0 %v907
    %914 = vmatprep.subr.mxu0 0.0
    %915 = vmatpush1.msra.mxu0 0.0
    %916 = vmatprep.subr.mxu0 0.0
    %917 = vmatpush1.msra.mxu0 0.0
    %918 = vmatprep.subr.mxu0 0.0
    %919 = vmatpush1.msra.mxu0 0.0
    %920 = vmatprep.subr.mxu0 0.0
    %921 = vmatpush1.msra.mxu0 0.0
    %922 = vmatprep.subr.mxu0 0.0
    %923 = vmatpush1.msra.mxu0 0.0
    %924 = vmatprep.subr.mxu0 0.0
    %925 = vmatpush1.msra.mxu0 0.0
    %926 = vmatprep.subr.mxu0 0.0
    %927 = vmatpush1.msra.mxu0 0.0
    %928 = vmatprep.subr.mxu0 0.0
    %929 = vmatpush1.msra.mxu0 0.0
    %930 = vmatprep.subr.mxu0 0.0
    %931 = vmatpush1.msra.mxu0 0.0
    %932 = vmatprep.subr.mxu0 0.0
    %933 = vmatpush1.msra.mxu0 0.0
    %934 = vmatprep.subr.mxu0 0.0
    %935 = vmatpush1.msra.mxu0 0.0
    %936 = vmatprep.subr.mxu0 0.0
    %937 = vmatpush1.msra.mxu0 0.0
    %938 = vmatprep.subr.mxu0 0.0
    %939 = vmatpush1.msra.mxu0 0.0
    %940 = vmatprep.subr.mxu0 0.0
    %941 = vmatpush1.msra.mxu0 0.0
    %942 = vmatprep.subr.mxu0 0.0
    %943 = vmatpush1.msra.mxu0 0.0
    %944 = vmatprep.subr.mxu0 0.0
    %945 = vmatpush1.msra.mxu0 0.0
    %946 = vmatprep.subr.mxu0 0.0
    %947 = vmatpush1.msra.mxu0 0.0
    %948 = vmatprep.subr.mxu0 0.0
    %949 = vmatpush1.msra.mxu0 0.0
    %950 = vmatprep.subr.mxu0 0.0
    %951 = vmatpush1.msra.mxu0 0.0
    %952 = vmatprep.subr.mxu0 0.0
    %953 = vmatpush1.msra.mxu0 0.0
    %954 = vmatprep.subr.mxu0 0.0
    %955 = vmatpush1.msra.mxu0 0.0
    %956 = vmatprep.subr.mxu0 0.0
    %957 = vmatpush1.msra.mxu0 0.0
    %958 = vmatprep.subr.mxu0 0.0
    %959 = vmatpush1.msra.mxu0 0.0
    %960 = vmatprep.subr.mxu0 0.0
    %961 = vmatpush1.msra.mxu0 0.0
    %962 = vmatprep.subr.mxu0 0.0
    %963 = vmatpush1.msra.mxu0 0.0
    %964 = vmatprep.subr.mxu0 0.0
    %965 = vmatpush1.msra.mxu0 0.0
    %966 = vmatprep.subr.mxu0 0.0
    %967 = vmatpush1.msra.mxu0 0.0
    %968 = vmatprep.subr.mxu0 0.0
    %969 = vmatpush1.msra.mxu0 0.0
    %970 = vmatprep.subr.mxu0 0.0
    %971 = vmatpush1.msra.mxu0 0.0
    %972 = vmatprep.subr.mxu0 0.0
    %973 = vmatpush1.msra.mxu0 0.0
    %974 = vmatprep.subr.mxu0 0.0
    %975 = vmatpush1.msra.mxu0 0.0
    %976 = vmatprep.mubr.f32.mxu0 0.0
    %977 = vmatmul.mubr.f32.gmra.mrb[0].mxu0 %v910
    %v978 = vpop.f32.mrb[0].mxu0
    %v979 = vadd.f32 0.0, %v978
    %v980 = vpop.f32.mrb[0].mxu0
    %981 = vdwg.mxu0
    %982 = vrot.lane.b32.xlu0 %v297, 112
    %v983 = vpop.permute.xlu0 %982
    %984 = vrot.lane.b32.xlu0 %v297, 80
    %v985 = vpop.permute.xlu0 %984
    %v986 = vsel %vm308, %v983, 0
    %v988 = vsel %vm308, %v985, 0
    %990 = vmatprep.subr.mxu0 0.0
    %991 = vmatpush1.xpose.msra.mxu0 %v988
    %992 = vmatprep.subr.mxu0 0.0
    %993 = vmatpush1.xpose.msra.mxu0 0.0
    %994 = vmatprep.subr.mxu0 0.0
    %995 = vmatpush1.xpose.msra.mxu0 0.0
    %996 = vmatprep.subr.mxu0 0.0
    %997 = vmatpush1.xpose.msra.mxu0 0.0
    %998 = vmatprep.subr.mxu0 0.0
    %999 = vmatpush1.xpose.msra.mxu0 0.0
    %1000 = vmatprep.subr.mxu0 0.0
    %1001 = vmatpush1.xpose.msra.mxu0 0.0
    %1002 = vmatprep.subr.mxu0 0.0
    %1003 = vmatpush1.xpose.msra.mxu0 0.0
    %1004 = vmatprep.subr.mxu0 0.0
    %1005 = vmatpush1.xpose.msra.mxu0 0.0
    %1006 = vmatprep.subr.mxu0 0.0
    %1007 = vmatpush1.xpose.msra.mxu0 0.0
    %1008 = vmatprep.subr.mxu0 0.0
    %1009 = vmatpush1.xpose.msra.mxu0 0.0
    %1010 = vmatprep.subr.mxu0 0.0
    %1011 = vmatpush1.xpose.msra.mxu0 0.0
    %1012 = vmatprep.subr.mxu0 0.0
    %1013 = vmatpush1.xpose.msra.mxu0 0.0
    %1014 = vmatprep.subr.mxu0 0.0
    %1015 = vmatpush1.xpose.msra.mxu0 0.0
    %1016 = vmatprep.subr.mxu0 0.0
    %1017 = vmatpush1.xpose.msra.mxu0 0.0
    %1018 = vmatprep.subr.mxu0 0.0
    %1019 = vmatpush1.xpose.msra.mxu0 0.0
    %1020 = vmatprep.subr.mxu0 0.0
    %1021 = vmatpush1.xpose.msra.mxu0 0.0
    %1022 = vmatprep.subr.mxu0 0.0
    %1023 = vmatpush1.xpose.msra.mxu0 0.0
    %1024 = vmatprep.subr.mxu0 0.0
    %1025 = vmatpush1.xpose.msra.mxu0 0.0
    %1026 = vmatprep.subr.mxu0 0.0
    %1027 = vmatpush1.xpose.msra.mxu0 0.0
    %1028 = vmatprep.subr.mxu0 0.0
    %1029 = vmatpush1.xpose.msra.mxu0 0.0
    %1030 = vmatprep.subr.mxu0 0.0
    %1031 = vmatpush1.xpose.msra.mxu0 0.0
    %1032 = vmatprep.subr.mxu0 0.0
    %1033 = vmatpush1.xpose.msra.mxu0 0.0
    %1034 = vmatprep.subr.mxu0 0.0
    %1035 = vmatpush1.xpose.msra.mxu0 0.0
    %1036 = vmatprep.subr.mxu0 0.0
    %1037 = vmatpush1.xpose.msra.mxu0 0.0
    %1038 = vmatprep.subr.mxu0 0.0
    %1039 = vmatpush1.xpose.msra.mxu0 0.0
    %1040 = vmatprep.subr.mxu0 0.0
    %1041 = vmatpush1.xpose.msra.mxu0 0.0
    %1042 = vmatprep.subr.mxu0 0.0
    %1043 = vmatpush1.xpose.msra.mxu0 0.0
    %1044 = vmatprep.subr.mxu0 0.0
    %1045 = vmatpush1.xpose.msra.mxu0 0.0
    %1046 = vmatprep.subr.mxu0 0.0
    %1047 = vmatpush1.xpose.msra.mxu0 0.0
    %1048 = vmatprep.subr.mxu0 0.0
    %1049 = vmatpush1.xpose.msra.mxu0 0.0
    %1050 = vmatprep.subr.mxu0 0.0
    %1051 = vmatpush1.xpose.msra.mxu0 0.0
    %1052 = vmatprep.subr.mxu0 0.0
    %1053 = vmatpush1.xpose.msra.mxu0 0.0
    %1054 = vmatprep.mubr.f32.mxu0 0.0
    %1055 = vmatmul.mubr.f32.gmra.mrb[0].mxu0 %v986
    %v1056 = vpop.f32.mrb[0].mxu0
    %v1057 = vadd.f32 0.0, %v1056
    %v1058 = vpop.f32.mrb[0].mxu0
    %1059 = vdwg.mxu0
    %1060 = vrot.lane.b32.xlu0 %v302, 112
    %v1061 = vpop.permute.xlu0 %1060
    %1062 = vrot.lane.b32.xlu0 %v302, 80
    %v1063 = vpop.permute.xlu0 %1062
    %v1064 = vsel %vm308, %v1061, 0
    %v1066 = vsel %vm308, %v1063, 0
    %1068 = vmatprep.subr.mxu0 0.0
    %1069 = vmatpush1.xpose.msra.mxu0 %v1066
    %1070 = vmatprep.subr.mxu0 0.0
    %1071 = vmatpush1.xpose.msra.mxu0 0.0
    %1072 = vmatprep.subr.mxu0 0.0
    %1073 = vmatpush1.xpose.msra.mxu0 0.0
    %1074 = vmatprep.subr.mxu0 0.0
    %1075 = vmatpush1.xpose.msra.mxu0 0.0
    %1076 = vmatprep.subr.mxu0 0.0
    %1077 = vmatpush1.xpose.msra.mxu0 0.0
    %1078 = vmatprep.subr.mxu0 0.0
    %1079 = vmatpush1.xpose.msra.mxu0 0.0
    %1080 = vmatprep.subr.mxu0 0.0
    %1081 = vmatpush1.xpose.msra.mxu0 0.0
    %1082 = vmatprep.subr.mxu0 0.0
    %1083 = vmatpush1.xpose.msra.mxu0 0.0
    %1084 = vmatprep.subr.mxu0 0.0
    %1085 = vmatpush1.xpose.msra.mxu0 0.0
    %1086 = vmatprep.subr.mxu0 0.0
    %1087 = vmatpush1.xpose.msra.mxu0 0.0
    %1088 = vmatprep.subr.mxu0 0.0
    %1089 = vmatpush1.xpose.msra.mxu0 0.0
    %1090 = vmatprep.subr.mxu0 0.0
    %1091 = vmatpush1.xpose.msra.mxu0 0.0
    %1092 = vmatprep.subr.mxu0 0.0
    %1093 = vmatpush1.xpose.msra.mxu0 0.0
    %1094 = vmatprep.subr.mxu0 0.0
    %1095 = vmatpush1.xpose.msra.mxu0 0.0
    %1096 = vmatprep.subr.mxu0 0.0
    %1097 = vmatpush1.xpose.msra.mxu0 0.0
    %1098 = vmatprep.subr.mxu0 0.0
    %1099 = vmatpush1.xpose.msra.mxu0 0.0
    %1100 = vmatprep.subr.mxu0 0.0
    %1101 = vmatpush1.xpose.msra.mxu0 0.0
    %1102 = vmatprep.subr.mxu0 0.0
    %1103 = vmatpush1.xpose.msra.mxu0 0.0
    %1104 = vmatprep.subr.mxu0 0.0
    %1105 = vmatpush1.xpose.msra.mxu0 0.0
    %1106 = vmatprep.subr.mxu0 0.0
    %1107 = vmatpush1.xpose.msra.mxu0 0.0
    %1108 = vmatprep.subr.mxu0 0.0
    %1109 = vmatpush1.xpose.msra.mxu0 0.0
    %1110 = vmatprep.subr.mxu0 0.0
    %1111 = vmatpush1.xpose.msra.mxu0 0.0
    %1112 = vmatprep.subr.mxu0 0.0
    %1113 = vmatpush1.xpose.msra.mxu0 0.0
    %1114 = vmatprep.subr.mxu0 0.0
    %1115 = vmatpush1.xpose.msra.mxu0 0.0
    %1116 = vmatprep.subr.mxu0 0.0
    %1117 = vmatpush1.xpose.msra.mxu0 0.0
    %1118 = vmatprep.subr.mxu0 0.0
    %1119 = vmatpush1.xpose.msra.mxu0 0.0
    %1120 = vmatprep.subr.mxu0 0.0
    %1121 = vmatpush1.xpose.msra.mxu0 0.0
    %1122 = vmatprep.subr.mxu0 0.0
    %1123 = vmatpush1.xpose.msra.mxu0 0.0
    %1124 = vmatprep.subr.mxu0 0.0
    %1125 = vmatpush1.xpose.msra.mxu0 0.0
    %1126 = vmatprep.subr.mxu0 0.0
    %1127 = vmatpush1.xpose.msra.mxu0 0.0
    %1128 = vmatprep.subr.mxu0 0.0
    %1129 = vmatpush1.xpose.msra.mxu0 0.0
    %1130 = vmatprep.subr.mxu0 0.0
    %1131 = vmatpush1.xpose.msra.mxu0 0.0
    %1132 = vmatprep.mubr.f32.mxu0 0.0
    %1133 = vmatmul.mubr.f32.gmra.mrb[0].mxu0 %v1064
    %v1134 = vpop.f32.mrb[0].mxu0
    %v1135 = vadd.f32 0.0, %v1134
    %v1136 = vpop.f32.mrb[0].mxu0
    %1137 = vdwg.mxu0
    %v1138 = vmul.f32 %v1057, 0.35355338
    %v1139 = vmul.f32 %v1135, 0.35355338
    %v1140 = vadd.f32 %v1138, %v465
    %v1141 = vadd.f32 %v1139, %v469
    %v1142 = vsel %vm308, %v1140, -inf
    %1143 = vmax.xlane.f32.xlu0 %v1142
    %v1144 = vpop.xlane.xlu0 %1143
    %v1145 = vsel %vm308, %v1141, -inf
    %1146 = vmax.xlane.f32.xlu0 %v1145
    %v1147 = vpop.xlane.xlu0 %1146
    %v1148 = vsub.f32 %v1140, %v1144
    %v1149 = vsub.f32 %v1141, %v1147
    %v1150 = vmul.f32 %v1148, 1.442695
    %v1151 = vpow.pop %v1150
    %v1152 = vmul.f32 %v1149, 1.442695
    %v1153 = vpow.pop %v1152
    %v1154 = vsel %vm308, %v1151, 0.0
    %1155 = vadd.xlane.f32.xlu0 %v1154
    %v1156 = vpop.xlane.xlu0 %1155
    %v1157 = vsel %vm308, %v1153, 0.0
    %1158 = vadd.xlane.f32.xlu0 %v1157
    %v1159 = vpop.xlane.xlu0 %1158
    %v1160 = vrcp.pop %v1156
    %v1161 = vrcp.pop %v1159
    %v1162 = vmul.f32 %v1151, %v1160
    %v1163 = vmul.f32 %v1153, %v1161
    %1164 = vrot.lane.b32.xlu0 %v297, 48
    %v1165 = vpop.permute.xlu0 %1164
    %v1168 = vsel %vm308, %v1162, 0
    %1170 = vmatprep.subr.mxu0 0.0
    %1171 = vmatpush1.msra.mxu0 %v1165
    %1172 = vmatprep.subr.mxu0 0.0
    %1173 = vmatpush1.msra.mxu0 0.0
    %1174 = vmatprep.subr.mxu0 0.0
    %1175 = vmatpush1.msra.mxu0 0.0
    %1176 = vmatprep.subr.mxu0 0.0
    %1177 = vmatpush1.msra.mxu0 0.0
    %1178 = vmatprep.subr.mxu0 0.0
    %1179 = vmatpush1.msra.mxu0 0.0
    %1180 = vmatprep.subr.mxu0 0.0
    %1181 = vmatpush1.msra.mxu0 0.0
    %1182 = vmatprep.subr.mxu0 0.0
    %1183 = vmatpush1.msra.mxu0 0.0
    %1184 = vmatprep.subr.mxu0 0.0
    %1185 = vmatpush1.msra.mxu0 0.0
    %1186 = vmatprep.subr.mxu0 0.0
    %1187 = vmatpush1.msra.mxu0 0.0
    %1188 = vmatprep.subr.mxu0 0.0
    %1189 = vmatpush1.msra.mxu0 0.0
    %1190 = vmatprep.subr.mxu0 0.0
    %1191 = vmatpush1.msra.mxu0 0.0
    %1192 = vmatprep.subr.mxu0 0.0
    %1193 = vmatpush1.msra.mxu0 0.0
    %1194 = vmatprep.subr.mxu0 0.0
    %1195 = vmatpush1.msra.mxu0 0.0
    %1196 = vmatprep.subr.mxu0 0.0
    %1197 = vmatpush1.msra.mxu0 0.0
    %1198 = vmatprep.subr.mxu0 0.0
    %1199 = vmatpush1.msra.mxu0 0.0
    %1200 = vmatprep.subr.mxu0 0.0
    %1201 = vmatpush1.msra.mxu0 0.0
    %1202 = vmatprep.subr.mxu0 0.0
    %1203 = vmatpush1.msra.mxu0 0.0
    %1204 = vmatprep.subr.mxu0 0.0
    %1205 = vmatpush1.msra.mxu0 0.0
    %1206 = vmatprep.subr.mxu0 0.0
    %1207 = vmatpush1.msra.mxu0 0.0
    %1208 = vmatprep.subr.mxu0 0.0
    %1209 = vmatpush1.msra.mxu0 0.0
    %1210 = vmatprep.subr.mxu0 0.0
    %1211 = vmatpush1.msra.mxu0 0.0
    %1212 = vmatprep.subr.mxu0 0.0
    %1213 = vmatpush1.msra.mxu0 0.0
    %1214 = vmatprep.subr.mxu0 0.0
    %1215 = vmatpush1.msra.mxu0 0.0
    %1216 = vmatprep.subr.mxu0 0.0
    %1217 = vmatpush1.msra.mxu0 0.0
    %1218 = vmatprep.subr.mxu0 0.0
    %1219 = vmatpush1.msra.mxu0 0.0
    %1220 = vmatprep.subr.mxu0 0.0
    %1221 = vmatpush1.msra.mxu0 0.0
    %1222 = vmatprep.subr.mxu0 0.0
    %1223 = vmatpush1.msra.mxu0 0.0
    %1224 = vmatprep.subr.mxu0 0.0
    %1225 = vmatpush1.msra.mxu0 0.0
    %1226 = vmatprep.subr.mxu0 0.0
    %1227 = vmatpush1.msra.mxu0 0.0
    %1228 = vmatprep.subr.mxu0 0.0
    %1229 = vmatpush1.msra.mxu0 0.0
    %1230 = vmatprep.subr.mxu0 0.0
    %1231 = vmatpush1.msra.mxu0 0.0
    %1232 = vmatprep.subr.mxu0 0.0
    %1233 = vmatpush1.msra.mxu0 0.0
    %1234 = vmatprep.mubr.f32.mxu0 0.0
    %1235 = vmatmul.mubr.f32.gmra.mrb[0].mxu0 %v1168
    %v1236 = vpop.f32.mrb[0].mxu0
    %v1237 = vadd.f32 0.0, %v1236
    %v1238 = vpop.f32.mrb[0].mxu0
    %1239 = vdwg.mxu0
    %1240 = vrot.lane.b32.xlu0 %v302, 48
    %v1241 = vpop.permute.xlu0 %1240
    %v1244 = vsel %vm308, %v1163, 0
    %1246 = vmatprep.subr.mxu0 0.0
    %1247 = vmatpush1.msra.mxu0 %v1241
    %1248 = vmatprep.subr.mxu0 0.0
    %1249 = vmatpush1.msra.mxu0 0.0
    %1250 = vmatprep.subr.mxu0 0.0
    %1251 = vmatpush1.msra.mxu0 0.0
    %1252 = vmatprep.subr.mxu0 0.0
    %1253 = vmatpush1.msra.mxu0 0.0
    %1254 = vmatprep.subr.mxu0 0.0
    %1255 = vmatpush1.msra.mxu0 0.0
    %1256 = vmatprep.subr.mxu0 0.0
    %1257 = vmatpush1.msra.mxu0 0.0
    %1258 = vmatprep.subr.mxu0 0.0
    %1259 = vmatpush1.msra.mxu0 0.0
    %1260 = vmatprep.subr.mxu0 0.0
    %1261 = vmatpush1.msra.mxu0 0.0
    %1262 = vmatprep.subr.mxu0 0.0
    %1263 = vmatpush1.msra.mxu0 0.0
    %1264 = vmatprep.subr.mxu0 0.0
    %1265 = vmatpush1.msra.mxu0 0.0
    %1266 = vmatprep.subr.mxu0 0.0
    %1267 = vmatpush1.msra.mxu0 0.0
    %1268 = vmatprep.subr.mxu0 0.0
    %1269 = vmatpush1.msra.mxu0 0.0
    %1270 = vmatprep.subr.mxu0 0.0
    %1271 = vmatpush1.msra.mxu0 0.0
    %1272 = vmatprep.subr.mxu0 0.0
    %1273 = vmatpush1.msra.mxu0 0.0
    %1274 = vmatprep.subr.mxu0 0.0
    %1275 = vmatpush1.msra.mxu0 0.0
    %1276 = vmatprep.subr.mxu0 0.0
    %1277 = vmatpush1.msra.mxu0 0.0
    %1278 = vmatprep.subr.mxu0 0.0
    %1279 = vmatpush1.msra.mxu0 0.0
    %1280 = vmatprep.subr.mxu0 0.0
    %1281 = vmatpush1.msra.mxu0 0.0
    %1282 = vmatprep.subr.mxu0 0.0
    %1283 = vmatpush1.msra.mxu0 0.0
    %1284 = vmatprep.subr.mxu0 0.0
    %1285 = vmatpush1.msra.mxu0 0.0
    %1286 = vmatprep.subr.mxu0 0.0
    %1287 = vmatpush1.msra.mxu0 0.0
    %1288 = vmatprep.subr.mxu0 0.0
    %1289 = vmatpush1.msra.mxu0 0.0
    %1290 = vmatprep.subr.mxu0 0.0
    %1291 = vmatpush1.msra.mxu0 0.0
    %1292 = vmatprep.subr.mxu0 0.0
    %1293 = vmatpush1.msra.mxu0 0.0
    %1294 = vmatprep.subr.mxu0 0.0
    %1295 = vmatpush1.msra.mxu0 0.0
    %1296 = vmatprep.subr.mxu0 0.0
    %1297 = vmatpush1.msra.mxu0 0.0
    %1298 = vmatprep.subr.mxu0 0.0
    %1299 = vmatpush1.msra.mxu0 0.0
    %1300 = vmatprep.subr.mxu0 0.0
    %1301 = vmatpush1.msra.mxu0 0.0
    %1302 = vmatprep.subr.mxu0 0.0
    %1303 = vmatpush1.msra.mxu0 0.0
    %1304 = vmatprep.subr.mxu0 0.0
    %1305 = vmatpush1.msra.mxu0 0.0
    %1306 = vmatprep.subr.mxu0 0.0
    %1307 = vmatpush1.msra.mxu0 0.0
    %1308 = vmatprep.subr.mxu0 0.0
    %1309 = vmatpush1.msra.mxu0 0.0
    %1310 = vmatprep.mubr.f32.mxu0 0.0
    %1311 = vmatmul.mubr.f32.gmra.mrb[0].mxu0 %v1244
    %v1312 = vpop.f32.mrb[0].mxu0
    %v1313 = vadd.f32 0.0, %v1312
    %v1314 = vpop.f32.mrb[0].mxu0
    %1315 = vdwg.mxu0
    %1316 = vrot.lane.b32.xlu0 %v297, 104
    %v1317 = vpop.permute.xlu0 %1316
    %1318 = vrot.lane.b32.xlu0 %v297, 72
    %v1319 = vpop.permute.xlu0 %1318
    %v1320 = vsel %vm308, %v1317, 0
    %v1322 = vsel %vm308, %v1319, 0
    %1324 = vmatprep.subr.mxu0 0.0
    %1325 = vmatpush1.xpose.msra.mxu0 %v1322
    %1326 = vmatprep.subr.mxu0 0.0
    %1327 = vmatpush1.xpose.msra.mxu0 0.0
    %1328 = vmatprep.subr.mxu0 0.0
    %1329 = vmatpush1.xpose.msra.mxu0 0.0
    %1330 = vmatprep.subr.mxu0 0.0
    %1331 = vmatpush1.xpose.msra.mxu0 0.0
    %1332 = vmatprep.subr.mxu0 0.0
    %1333 = vmatpush1.xpose.msra.mxu0 0.0
    %1334 = vmatprep.subr.mxu0 0.0
    %1335 = vmatpush1.xpose.msra.mxu0 0.0
    %1336 = vmatprep.subr.mxu0 0.0
    %1337 = vmatpush1.xpose.msra.mxu0 0.0
    %1338 = vmatprep.subr.mxu0 0.0
    %1339 = vmatpush1.xpose.msra.mxu0 0.0
    %1340 = vmatprep.subr.mxu0 0.0
    %1341 = vmatpush1.xpose.msra.mxu0 0.0
    %1342 = vmatprep.subr.mxu0 0.0
    %1343 = vmatpush1.xpose.msra.mxu0 0.0
    %1344 = vmatprep.subr.mxu0 0.0
    %1345 = vmatpush1.xpose.msra.mxu0 0.0
    %1346 = vmatprep.subr.mxu0 0.0
    %1347 = vmatpush1.xpose.msra.mxu0 0.0
    %1348 = vmatprep.subr.mxu0 0.0
    %1349 = vmatpush1.xpose.msra.mxu0 0.0
    %1350 = vmatprep.subr.mxu0 0.0
    %1351 = vmatpush1.xpose.msra.mxu0 0.0
    %1352 = vmatprep.subr.mxu0 0.0
    %1353 = vmatpush1.xpose.msra.mxu0 0.0
    %1354 = vmatprep.subr.mxu0 0.0
    %1355 = vmatpush1.xpose.msra.mxu0 0.0
    %1356 = vmatprep.subr.mxu0 0.0
    %1357 = vmatpush1.xpose.msra.mxu0 0.0
    %1358 = vmatprep.subr.mxu0 0.0
    %1359 = vmatpush1.xpose.msra.mxu0 0.0
    %1360 = vmatprep.subr.mxu0 0.0
    %1361 = vmatpush1.xpose.msra.mxu0 0.0
    %1362 = vmatprep.subr.mxu0 0.0
    %1363 = vmatpush1.xpose.msra.mxu0 0.0
    %1364 = vmatprep.subr.mxu0 0.0
    %1365 = vmatpush1.xpose.msra.mxu0 0.0
    %1366 = vmatprep.subr.mxu0 0.0
    %1367 = vmatpush1.xpose.msra.mxu0 0.0
    %1368 = vmatprep.subr.mxu0 0.0
    %1369 = vmatpush1.xpose.msra.mxu0 0.0
    %1370 = vmatprep.subr.mxu0 0.0
    %1371 = vmatpush1.xpose.msra.mxu0 0.0
    %1372 = vmatprep.subr.mxu0 0.0
    %1373 = vmatpush1.xpose.msra.mxu0 0.0
    %1374 = vmatprep.subr.mxu0 0.0
    %1375 = vmatpush1.xpose.msra.mxu0 0.0
    %1376 = vmatprep.subr.mxu0 0.0
    %1377 = vmatpush1.xpose.msra.mxu0 0.0
    %1378 = vmatprep.subr.mxu0 0.0
    %1379 = vmatpush1.xpose.msra.mxu0 0.0
    %1380 = vmatprep.subr.mxu0 0.0
    %1381 = vmatpush1.xpose.msra.mxu0 0.0
    %1382 = vmatprep.subr.mxu0 0.0
    %1383 = vmatpush1.xpose.msra.mxu0 0.0
    %1384 = vmatprep.subr.mxu0 0.0
    %1385 = vmatpush1.xpose.msra.mxu0 0.0
    %1386 = vmatprep.subr.mxu0 0.0
    %1387 = vmatpush1.xpose.msra.mxu0 0.0
    %1388 = vmatprep.mubr.f32.mxu0 0.0
    %1389 = vmatmul.mubr.f32.gmra.mrb[0].mxu0 %v1320
    %v1390 = vpop.f32.mrb[0].mxu0
    %v1391 = vadd.f32 0.0, %v1390
    %v1392 = vpop.f32.mrb[0].mxu0
    %1393 = vdwg.mxu0
    %1394 = vrot.lane.b32.xlu0 %v302, 104
    %v1395 = vpop.permute.xlu0 %1394
    %1396 = vrot.lane.b32.xlu0 %v302, 72
    %v1397 = vpop.permute.xlu0 %1396
    %v1398 = vsel %vm308, %v1395, 0
    %v1400 = vsel %vm308, %v1397, 0
    %1402 = vmatprep.subr.mxu0 0.0
    %1403 = vmatpush1.xpose.msra.mxu0 %v1400
    %1404 = vmatprep.subr.mxu0 0.0
    %1405 = vmatpush1.xpose.msra.mxu0 0.0
    %1406 = vmatprep.subr.mxu0 0.0
    %1407 = vmatpush1.xpose.msra.mxu0 0.0
    %1408 = vmatprep.subr.mxu0 0.0
    %1409 = vmatpush1.xpose.msra.mxu0 0.0
    %1410 = vmatprep.subr.mxu0 0.0
    %1411 = vmatpush1.xpose.msra.mxu0 0.0
    %1412 = vmatprep.subr.mxu0 0.0
    %1413 = vmatpush1.xpose.msra.mxu0 0.0
    %1414 = vmatprep.subr.mxu0 0.0
    %1415 = vmatpush1.xpose.msra.mxu0 0.0
    %1416 = vmatprep.subr.mxu0 0.0
    %1417 = vmatpush1.xpose.msra.mxu0 0.0
    %1418 = vmatprep.subr.mxu0 0.0
    %1419 = vmatpush1.xpose.msra.mxu0 0.0
    %1420 = vmatprep.subr.mxu0 0.0
    %1421 = vmatpush1.xpose.msra.mxu0 0.0
    %1422 = vmatprep.subr.mxu0 0.0
    %1423 = vmatpush1.xpose.msra.mxu0 0.0
    %1424 = vmatprep.subr.mxu0 0.0
    %1425 = vmatpush1.xpose.msra.mxu0 0.0
    %1426 = vmatprep.subr.mxu0 0.0
    %1427 = vmatpush1.xpose.msra.mxu0 0.0
    %1428 = vmatprep.subr.mxu0 0.0
    %1429 = vmatpush1.xpose.msra.mxu0 0.0
    %1430 = vmatprep.subr.mxu0 0.0
    %1431 = vmatpush1.xpose.msra.mxu0 0.0
    %1432 = vmatprep.subr.mxu0 0.0
    %1433 = vmatpush1.xpose.msra.mxu0 0.0
    %1434 = vmatprep.subr.mxu0 0.0
    %1435 = vmatpush1.xpose.msra.mxu0 0.0
    %1436 = vmatprep.subr.mxu0 0.0
    %1437 = vmatpush1.xpose.msra.mxu0 0.0
    %1438 = vmatprep.subr.mxu0 0.0
    %1439 = vmatpush1.xpose.msra.mxu0 0.0
    %1440 = vmatprep.subr.mxu0 0.0
    %1441 = vmatpush1.xpose.msra.mxu0 0.0
    %1442 = vmatprep.subr.mxu0 0.0
    %1443 = vmatpush1.xpose.msra.mxu0 0.0
    %1444 = vmatprep.subr.mxu0 0.0
    %1445 = vmatpush1.xpose.msra.mxu0 0.0
    %1446 = vmatprep.subr.mxu0 0.0
    %1447 = vmatpush1.xpose.msra.mxu0 0.0
    %1448 = vmatprep.subr.mxu0 0.0
    %1449 = vmatpush1.xpose.msra.mxu0 0.0
    %1450 = vmatprep.subr.mxu0 0.0
    %1451 = vmatpush1.xpose.msra.mxu0 0.0
    %1452 = vmatprep.subr.mxu0 0.0
    %1453 = vmatpush1.xpose.msra.mxu0 0.0
    %1454 = vmatprep.subr.mxu0 0.0
    %1455 = vmatpush1.xpose.msra.mxu0 0.0
    %1456 = vmatprep.subr.mxu0 0.0
    %1457 = vmatpush1.xpose.msra.mxu0 0.0
    %1458 = vmatprep.subr.mxu0 0.0
    %1459 = vmatpush1.xpose.msra.mxu0 0.0
    %1460 = vmatprep.subr.mxu0 0.0
    %1461 = vmatpush1.xpose.msra.mxu0 0.0
    %1462 = vmatprep.subr.mxu0 0.0
    %1463 = vmatpush1.xpose.msra.mxu0 0.0
    %1464 = vmatprep.subr.mxu0 0.0
    %1465 = vmatpush1.xpose.msra.mxu0 0.0
    %1466 = vmatprep.mubr.f32.mxu0 0.0
    %1467 = vmatmul.mubr.f32.gmra.mrb[0].mxu0 %v1398
    %v1468 = vpop.f32.mrb[0].mxu0
    %v1469 = vadd.f32 0.0, %v1468
    %v1470 = vpop.f32.mrb[0].mxu0
    %1471 = vdwg.mxu0
    %v1472 = vmul.f32 %v1391, 0.35355338
    %v1473 = vmul.f32 %v1469, 0.35355338
    %v1474 = vadd.f32 %v1472, %v465
    %v1475 = vadd.f32 %v1473, %v469
    %v1476 = vsel %vm308, %v1474, -inf
    %1477 = vmax.xlane.f32.xlu0 %v1476
    %v1478 = vpop.xlane.xlu0 %1477
    %v1479 = vsel %vm308, %v1475, -inf
    %1480 = vmax.xlane.f32.xlu0 %v1479
    %v1481 = vpop.xlane.xlu0 %1480
    %v1482 = vsub.f32 %v1474, %v1478
    %v1483 = vsub.f32 %v1475, %v1481
    %v1484 = vmul.f32 %v1482, 1.442695
    %v1485 = vpow.pop %v1484
    %v1486 = vmul.f32 %v1483, 1.442695
    %v1487 = vpow.pop %v1486
    %v1488 = vsel %vm308, %v1485, 0.0
    %1489 = vadd.xlane.f32.xlu0 %v1488
    %v1490 = vpop.xlane.xlu0 %1489
    %v1491 = vsel %vm308, %v1487, 0.0
    %1492 = vadd.xlane.f32.xlu0 %v1491
    %v1493 = vpop.xlane.xlu0 %1492
    %v1494 = vrcp.pop %v1490
    %v1495 = vrcp.pop %v1493
    %v1496 = vmul.f32 %v1485, %v1494
    %v1497 = vmul.f32 %v1487, %v1495
    %1498 = vrot.lane.b32.xlu0 %v297, 40
    %v1499 = vpop.permute.xlu0 %1498
    %v1502 = vsel %vm308, %v1496, 0
    %1504 = vmatprep.subr.mxu0 0.0
    %1505 = vmatpush1.msra.mxu0 %v1499
    %1506 = vmatprep.subr.mxu0 0.0
    %1507 = vmatpush1.msra.mxu0 0.0
    %1508 = vmatprep.subr.mxu0 0.0
    %1509 = vmatpush1.msra.mxu0 0.0
    %1510 = vmatprep.subr.mxu0 0.0
    %1511 = vmatpush1.msra.mxu0 0.0
    %1512 = vmatprep.subr.mxu0 0.0
    %1513 = vmatpush1.msra.mxu0 0.0
    %1514 = vmatprep.subr.mxu0 0.0
    %1515 = vmatpush1.msra.mxu0 0.0
    %1516 = vmatprep.subr.mxu0 0.0
    %1517 = vmatpush1.msra.mxu0 0.0
    %1518 = vmatprep.subr.mxu0 0.0
    %1519 = vmatpush1.msra.mxu0 0.0
    %1520 = vmatprep.subr.mxu0 0.0
    %1521 = vmatpush1.msra.mxu0 0.0
    %1522 = vmatprep.subr.mxu0 0.0
    %1523 = vmatpush1.msra.mxu0 0.0
    %1524 = vmatprep.subr.mxu0 0.0
    %1525 = vmatpush1.msra.mxu0 0.0
    %1526 = vmatprep.subr.mxu0 0.0
    %1527 = vmatpush1.msra.mxu0 0.0
    %1528 = vmatprep.subr.mxu0 0.0
    %1529 = vmatpush1.msra.mxu0 0.0
    %1530 = vmatprep.subr.mxu0 0.0
    %1531 = vmatpush1.msra.mxu0 0.0
    %1532 = vmatprep.subr.mxu0 0.0
    %1533 = vmatpush1.msra.mxu0 0.0
    %1534 = vmatprep.subr.mxu0 0.0
    %1535 = vmatpush1.msra.mxu0 0.0
    %1536 = vmatprep.subr.mxu0 0.0
    %1537 = vmatpush1.msra.mxu0 0.0
    %1538 = vmatprep.subr.mxu0 0.0
    %1539 = vmatpush1.msra.mxu0 0.0
    %1540 = vmatprep.subr.mxu0 0.0
    %1541 = vmatpush1.msra.mxu0 0.0
    %1542 = vmatprep.subr.mxu0 0.0
    %1543 = vmatpush1.msra.mxu0 0.0
    %1544 = vmatprep.subr.mxu0 0.0
    %1545 = vmatpush1.msra.mxu0 0.0
    %1546 = vmatprep.subr.mxu0 0.0
    %1547 = vmatpush1.msra.mxu0 0.0
    %1548 = vmatprep.subr.mxu0 0.0
    %1549 = vmatpush1.msra.mxu0 0.0
    %1550 = vmatprep.subr.mxu0 0.0
    %1551 = vmatpush1.msra.mxu0 0.0
    %1552 = vmatprep.subr.mxu0 0.0
    %1553 = vmatpush1.msra.mxu0 0.0
    %1554 = vmatprep.subr.mxu0 0.0
    %1555 = vmatpush1.msra.mxu0 0.0
    %1556 = vmatprep.subr.mxu0 0.0
    %1557 = vmatpush1.msra.mxu0 0.0
    %1558 = vmatprep.subr.mxu0 0.0
    %1559 = vmatpush1.msra.mxu0 0.0
    %1560 = vmatprep.subr.mxu0 0.0
    %1561 = vmatpush1.msra.mxu0 0.0
    %1562 = vmatprep.subr.mxu0 0.0
    %1563 = vmatpush1.msra.mxu0 0.0
    %1564 = vmatprep.subr.mxu0 0.0
    %1565 = vmatpush1.msra.mxu0 0.0
    %1566 = vmatprep.subr.mxu0 0.0
    %1567 = vmatpush1.msra.mxu0 0.0
    %1568 = vmatprep.mubr.f32.mxu0 0.0
    %1569 = vmatmul.mubr.f32.gmra.mrb[0].mxu0 %v1502
    %v1570 = vpop.f32.mrb[0].mxu0
    %v1571 = vadd.f32 0.0, %v1570
    %v1572 = vpop.f32.mrb[0].mxu0
    %1573 = vdwg.mxu0
    %1574 = vrot.lane.b32.xlu0 %v302, 40
    %v1575 = vpop.permute.xlu0 %1574
    %v1578 = vsel %vm308, %v1497, 0
    %1580 = vmatprep.subr.mxu0 0.0
    %1581 = vmatpush1.msra.mxu0 %v1575
    %1582 = vmatprep.subr.mxu0 0.0
    %1583 = vmatpush1.msra.mxu0 0.0
    %1584 = vmatprep.subr.mxu0 0.0
    %1585 = vmatpush1.msra.mxu0 0.0
    %1586 = vmatprep.subr.mxu0 0.0
    %1587 = vmatpush1.msra.mxu0 0.0
    %1588 = vmatprep.subr.mxu0 0.0
    %1589 = vmatpush1.msra.mxu0 0.0
    %1590 = vmatprep.subr.mxu0 0.0
    %1591 = vmatpush1.msra.mxu0 0.0
    %1592 = vmatprep.subr.mxu0 0.0
    %1593 = vmatpush1.msra.mxu0 0.0
    %1594 = vmatprep.subr.mxu0 0.0
    %1595 = vmatpush1.msra.mxu0 0.0
    %1596 = vmatprep.subr.mxu0 0.0
    %1597 = vmatpush1.msra.mxu0 0.0
    %1598 = vmatprep.subr.mxu0 0.0
    %1599 = vmatpush1.msra.mxu0 0.0
    %1600 = vmatprep.subr.mxu0 0.0
    %1601 = vmatpush1.msra.mxu0 0.0
    %1602 = vmatprep.subr.mxu0 0.0
    %1603 = vmatpush1.msra.mxu0 0.0
    %1604 = vmatprep.subr.mxu0 0.0
    %1605 = vmatpush1.msra.mxu0 0.0
    %1606 = vmatprep.subr.mxu0 0.0
    %1607 = vmatpush1.msra.mxu0 0.0
    %1608 = vmatprep.subr.mxu0 0.0
    %1609 = vmatpush1.msra.mxu0 0.0
    %1610 = vmatprep.subr.mxu0 0.0
    %1611 = vmatpush1.msra.mxu0 0.0
    %1612 = vmatprep.subr.mxu0 0.0
    %1613 = vmatpush1.msra.mxu0 0.0
    %1614 = vmatprep.subr.mxu0 0.0
    %1615 = vmatpush1.msra.mxu0 0.0
    %1616 = vmatprep.subr.mxu0 0.0
    %1617 = vmatpush1.msra.mxu0 0.0
    %1618 = vmatprep.subr.mxu0 0.0
    %1619 = vmatpush1.msra.mxu0 0.0
    %1620 = vmatprep.subr.mxu0 0.0
    %1621 = vmatpush1.msra.mxu0 0.0
    %1622 = vmatprep.subr.mxu0 0.0
    %1623 = vmatpush1.msra.mxu0 0.0
    %1624 = vmatprep.subr.mxu0 0.0
    %1625 = vmatpush1.msra.mxu0 0.0
    %1626 = vmatprep.subr.mxu0 0.0
    %1627 = vmatpush1.msra.mxu0 0.0
    %1628 = vmatprep.subr.mxu0 0.0
    %1629 = vmatpush1.msra.mxu0 0.0
    %1630 = vmatprep.subr.mxu0 0.0
    %1631 = vmatpush1.msra.mxu0 0.0
    %1632 = vmatprep.subr.mxu0 0.0
    %1633 = vmatpush1.msra.mxu0 0.0
    %1634 = vmatprep.subr.mxu0 0.0
    %1635 = vmatpush1.msra.mxu0 0.0
    %1636 = vmatprep.subr.mxu0 0.0
    %1637 = vmatpush1.msra.mxu0 0.0
    %1638 = vmatprep.subr.mxu0 0.0
    %1639 = vmatpush1.msra.mxu0 0.0
    %1640 = vmatprep.subr.mxu0 0.0
    %1641 = vmatpush1.msra.mxu0 0.0
    %1642 = vmatprep.subr.mxu0 0.0
    %1643 = vmatpush1.msra.mxu0 0.0
    %1644 = vmatprep.mubr.f32.mxu0 0.0
    %1645 = vmatmul.mubr.f32.gmra.mrb[0].mxu0 %v1578
    %v1646 = vpop.f32.mrb[0].mxu0
    %v1647 = vadd.f32 0.0, %v1646
    %v1648 = vpop.f32.mrb[0].mxu0
    %1649 = vdwg.mxu0
    %1652 = vrot.lane.b32.xlu0 %v903, 8
    %v1653 = vpop.permute.xlu0 %1652
    %1654 = vrot.lane.b32.xlu0 %v979, 8
    %v1655 = vpop.permute.xlu0 %1654
    %1660 = vrot.lane.b32.xlu0 %v1237, 16
    %v1661 = vpop.permute.xlu0 %1660
    %1662 = vrot.lane.b32.xlu0 %v1313, 16
    %v1663 = vpop.permute.xlu0 %1662
    %1668 = vrot.lane.b32.xlu0 %v1571, 24
    %v1669 = vpop.permute.xlu0 %1668
    %1670 = vrot.lane.b32.xlu0 %v1647, 24
    %v1671 = vpop.permute.xlu0 %1670
    %v1674 = vsel %vm308, %v569, %v1653
    %v1675 = vsel %vm308, %v645, %v1655
    %vm1676 = vcmask 130048
    %v1677 = vsel %vm1676, %v1674, %v1661
    %v1678 = vsel %vm1676, %v1675, %v1663
    %vm1679 = vcmask 195584
    %v1680 = vsel %vm1679, %v1677, %v1669
    %v1681 = vsel %vm1679, %v1678, %v1671
    %v1682 = vld [vmem:[#allocation2 + $0xa8] sm:$0xff]
    %v1683 = vld [vmem:[#allocation2 + $0xb0] sm:$0xff]
    %v1684 = vld [vmem:[#allocation2 + $0xb8] sm:$0xff]
    %v1685 = vld [vmem:[#allocation2 + $0xc0] sm:$0xff]
    %v1687 = vsel %vm150, %v1680, 0
    %v1690 = vsel %vm150, %v1681, 0
    %1692 = vmatprep.subr.mxu0 0.0
    %1693 = vmatpush1.msra.mxu0 %v1682
    %1694 = vmatprep.subr.mxu0 0.0
    %1695 = vmatpush1.msra.mxu0 %v1683
    %1696 = vmatprep.subr.mxu0 0.0
    %1697 = vmatpush1.msra.mxu0 %v1684
    %1698 = vmatprep.subr.mxu0 0.0
    %1699 = vmatpush1.msra.mxu0 %v1685
    %1700 = vmatprep.subr.mxu0 0.0
    %1701 = vmatpush1.msra.mxu0 0.0
    %1702 = vmatprep.subr.mxu0 0.0
    %1703 = vmatpush1.msra.mxu0 0.0
    %1704 = vmatprep.subr.mxu0 0.0
    %1705 = vmatpush1.msra.mxu0 0.0
    %1706 = vmatprep.subr.mxu0 0.0
    %1707 = vmatpush1.msra.mxu0 0.0
    %1708 = vmatprep.subr.mxu0 0.0
    %1709 = vmatpush1.msra.mxu0 0.0
    %1710 = vmatprep.subr.mxu0 0.0
    %1711 = vmatpush1.msra.mxu0 0.0
    %1712 = vmatprep.subr.mxu0 0.0
    %1713 = vmatpush1.msra.mxu0 0.0
    %1714 = vmatprep.subr.mxu0 0.0
    %1715 = vmatpush1.msra.mxu0 0.0
    %1716 = vmatprep.subr.mxu0 0.0
    %1717 = vmatpush1.msra.mxu0 0.0
    %1718 = vmatprep.subr.mxu0 0.0
    %1719 = vmatpush1.msra.mxu0 0.0
    %1720 = vmatprep.subr.mxu0 0.0
    %1721 = vmatpush1.msra.mxu0 0.0
    %1722 = vmatprep.subr.mxu0 0.0
    %1723 = vmatpush1.msra.mxu0 0.0
    %1724 = vmatprep.subr.mxu0 0.0
    %1725 = vmatpush1.msra.mxu0 0.0
    %1726 = vmatprep.subr.mxu0 0.0
    %1727 = vmatpush1.msra.mxu0 0.0
    %1728 = vmatprep.subr.mxu0 0.0
    %1729 = vmatpush1.msra.mxu0 0.0
    %1730 = vmatprep.subr.mxu0 0.0
    %1731 = vmatpush1.msra.mxu0 0.0
    %1732 = vmatprep.subr.mxu0 0.0
    %1733 = vmatpush1.msra.mxu0 0.0
    %1734 = vmatprep.subr.mxu0 0.0
    %1735 = vmatpush1.msra.mxu0 0.0
    %1736 = vmatprep.subr.mxu0 0.0
    %1737 = vmatpush1.msra.mxu0 0.0
    %1738 = vmatprep.subr.mxu0 0.0
    %1739 = vmatpush1.msra.mxu0 0.0
    %1740 = vmatprep.subr.mxu0 0.0
    %1741 = vmatpush1.msra.mxu0 0.0
    %1742 = vmatprep.subr.mxu0 0.0
    %1743 = vmatpush1.msra.mxu0 0.0
    %1744 = vmatprep.subr.mxu0 0.0
    %1745 = vmatpush1.msra.mxu0 0.0
    %1746 = vmatprep.subr.mxu0 0.0
    %1747 = vmatpush1.msra.mxu0 0.0
    %1748 = vmatprep.subr.mxu0 0.0
    %1749 = vmatpush1.msra.mxu0 0.0
    %1750 = vmatprep.subr.mxu0 0.0
    %1751 = vmatpush1.msra.mxu0 0.0
    %1752 = vmatprep.subr.mxu0 0.0
    %1753 = vmatpush1.msra.mxu0 0.0
    %1754 = vmatprep.subr.mxu0 0.0
    %1755 = vmatpush1.msra.mxu0 0.0
    %1756 = vmatprep.mubr.f32.mxu0 0.0
    %1757 = vmatmul.mubr.f32.gmra.mrb[0].mxu0 %v1687
    %v1758 = vpop.f32.mrb[0].mxu0
    %v1759 = vadd.f32 0.0, %v1758
    %v1760 = vpop.f32.mrb[0].mxu0
    %1761 = vmatprep.mubr.f32.mxu0 0.0
    %1762 = vmatmul.mubr.f32.gmra.mrb[0].mxu0 %v1690
    %v1763 = vpop.f32.mrb[0].mxu0
    %v1764 = vadd.f32 0.0, %v1763
    %v1765 = vpop.f32.mrb[0].mxu0
    %1766 = vdwg.mxu0
    %v1767 = vadd.f32 %v188, %v1759
    %v1768 = vadd.f32 %v189, %v1764
    %v1769 = vld [vmem:[%s3 + $0x4] sm:$0x1]
    %v1770 = vlaneseq
    %v1771 = vshrl.u32 %v1770, 7
    %v1772 = vsub.s32 0, %v1771
    %v1773 = vrot.slane %v1769, %v1772
    %v1774 = vadd.f32 %v1767, %v1773
    %v1775 = vadd.f32 %v1768, %v1773
    %v1776 = vld [vmem:[%s3 + $0x5] sm:$0x1]
    %v1777 = vld [vmem:[%s3 + $0x6] sm:$0x1]
    %v1778 = vsel %vm150, %v1774, 0.0
    %1779 = vadd.xlane.f32.xlu0 %v1778
    %v1780 = vpop.xlane.xlu0 %1779
    %v1781 = vsel %vm150, %v1775, 0.0
    %1782 = vadd.xlane.f32.xlu0 %v1781
    %v1783 = vpop.xlane.xlu0 %1782
    %v1784 = vmul.f32 %v1780, %v157
    %v1785 = vmul.f32 %v1783, %v157
    %v1786 = vsub.f32 %v1774, %v1784
    %v1787 = vsub.f32 %v1775, %v1785
    %v1788 = vmul.f32 %v1786, %v1786
    %v1789 = vmul.f32 %v1787, %v1787
    %v1790 = vsel %vm150, %v1788, 0.0
    %1791 = vadd.xlane.f32.xlu0 %v1790
    %v1792 = vpop.xlane.xlu0 %1791
    %v1793 = vsel %vm150, %v1789, 0.0
    %1794 = vadd.xlane.f32.xlu0 %v1793
    %v1795 = vpop.xlane.xlu0 %1794
    %v1796 = vmul.f32 %v1792, %v157
    %v1797 = vmul.f32 %v1795, %v157
    %v1798 = vadd.f32 %v1796, 1e-12
    %v1799 = vadd.f32 %v1797, 1e-12
    %v1800 = vrsqrt.pop %v1798
    %v1801 = vrsqrt.pop %v1799
    %v1802 = vmul.f32 %v1786, %v1800
    %v1803 = vmul.f32 %v1787, %v1801
    %v1804 = vlaneseq
    %v1805 = vshrl.u32 %v1804, 7
    %v1806 = vsub.s32 0, %v1805
    %v1807 = vrot.slane %v1776, %v1806
    %v1808 = vmul.f32 %v1802, %v1807
    %v1809 = vmul.f32 %v1803, %v1807
    %v1810 = vlaneseq
    %v1811 = vshrl.u32 %v1810, 7
    %v1812 = vsub.s32 0, %v1811
    %v1813 = vrot.slane %v1777, %v1812
    %v1814 = vadd.f32 %v1808, %v1813
    %v1815 = vadd.f32 %v1809, %v1813
    %v1816 = vld [vmem:[#allocation2 + $0xc8] sm:$0xff]
    %v1817 = vld [vmem:[#allocation2 + $0xd0] sm:$0xff]
    %v1818 = vld [vmem:[#allocation2 + $0xd8] sm:$0xff]
    %v1819 = vld [vmem:[#allocation2 + $0xe0] sm:$0xff]
    %v1820 = vld [vmem:[%s3 + $0x7] sm:$0x1]
    %v1821 = vlaneseq
    %v1822 = vshrl.u32 %v1821, 7
    %v1823 = vsub.s32 0, %v1822
    %v1824 = vrot.slane %v1820, %v1823
    %v1826 = vsel %vm150, %v1814, 0
    %v1829 = vsel %vm150, %v1815, 0
    %1831 = vmatprep.subr.mxu0 0.0
    %1832 = vmatpush1.msra.mxu0 %v1816
    %1833 = vmatprep.subr.mxu0 0.0
    %1834 = vmatpush1.msra.mxu0 %v1817
    %1835 = vmatprep.subr.mxu0 0.0
    %1836 = vmatpush1.msra.mxu0 %v1818
    %1837 = vmatprep.subr.mxu0 0.0
    %1838 = vmatpush1.msra.mxu0 %v1819
    %1839 = vmatprep.subr.mxu0 0.0
    %1840 = vmatpush1.msra.mxu0 0.0
    %1841 = vmatprep.subr.mxu0 0.0
    %1842 = vmatpush1.msra.mxu0 0.0
    %1843 = vmatprep.subr.mxu0 0.0
    %1844 = vmatpush1.msra.mxu0 0.0
    %1845 = vmatprep.subr.mxu0 0.0
    %1846 = vmatpush1.msra.mxu0 0.0
    %1847 = vmatprep.subr.mxu0 0.0
    %1848 = vmatpush1.msra.mxu0 0.0
    %1849 = vmatprep.subr.mxu0 0.0
    %1850 = vmatpush1.msra.mxu0 0.0
    %1851 = vmatprep.subr.mxu0 0.0
    %1852 = vmatpush1.msra.mxu0 0.0
    %1853 = vmatprep.subr.mxu0 0.0
    %1854 = vmatpush1.msra.mxu0 0.0
    %1855 = vmatprep.subr.mxu0 0.0
    %1856 = vmatpush1.msra.mxu0 0.0
    %1857 = vmatprep.subr.mxu0 0.0
    %1858 = vmatpush1.msra.mxu0 0.0
    %1859 = vmatprep.subr.mxu0 0.0
    %1860 = vmatpush1.msra.mxu0 0.0
    %1861 = vmatprep.subr.mxu0 0.0
    %1862 = vmatpush1.msra.mxu0 0.0
    %1863 = vmatprep.subr.mxu0 0.0
    %1864 = vmatpush1.msra.mxu0 0.0
    %1865 = vmatprep.subr.mxu0 0.0
    %1866 = vmatpush1.msra.mxu0 0.0
    %1867 = vmatprep.subr.mxu0 0.0
    %1868 = vmatpush1.msra.mxu0 0.0
    %1869 = vmatprep.subr.mxu0 0.0
    %1870 = vmatpush1.msra.mxu0 0.0
    %1871 = vmatprep.subr.mxu0 0.0
    %1872 = vmatpush1.msra.mxu0 0.0
    %1873 = vmatprep.subr.mxu0 0.0
    %1874 = vmatpush1.msra.mxu0 0.0
    %1875 = vmatprep.subr.mxu0 0.0
    %1876 = vmatpush1.msra.mxu0 0.0
    %1877 = vmatprep.subr.mxu0 0.0
    %1878 = vmatpush1.msra.mxu0 0.0
    %1879 = vmatprep.subr.mxu0 0.0
    %1880 = vmatpush1.msra.mxu0 0.0
    %1881 = vmatprep.subr.mxu0 0.0
    %1882 = vmatpush1.msra.mxu0 0.0
    %1883 = vmatprep.subr.mxu0 0.0
    %1884 = vmatpush1.msra.mxu0 0.0
    %1885 = vmatprep.subr.mxu0 0.0
    %1886 = vmatpush1.msra.mxu0 0.0
    %1887 = vmatprep.subr.mxu0 0.0
    %1888 = vmatpush1.msra.mxu0 0.0
    %1889 = vmatprep.subr.mxu0 0.0
    %1890 = vmatpush1.msra.mxu0 0.0
    %1891 = vmatprep.subr.mxu0 0.0
    %1892 = vmatpush1.msra.mxu0 0.0
    %1893 = vmatprep.subr.mxu0 0.0
    %1894 = vmatpush1.msra.mxu0 0.0
    %1895 = vmatprep.mubr.f32.mxu0 0.0
    %1896 = vmatmul.mubr.f32.gmra.mrb[0].mxu0 %v1826
    %v1897 = vpop.f32.mrb[0].mxu0
    %v1898 = vadd.f32 %v1824, %v1897
    %v1899 = vpop.f32.mrb[0].mxu0
    %1900 = vmatprep.mubr.f32.mxu0 0.0
    %1901 = vmatmul.mubr.f32.gmra.mrb[0].mxu0 %v1829
    %v1902 = vpop.f32.mrb[0].mxu0
    %v1903 = vadd.f32 %v1824, %v1902
    %v1904 = vpop.f32.mrb[0].mxu0
    %1905 = vdwg.mxu0
    %v1906 = vmul.f32 %v1898, %v1898
    %v1907 = vmul.f32 %v1903, %v1903
    %v1908 = vmul.f32 %v1898, %v1906
    %v1909 = vmul.f32 %v1903, %v1907
    %v1910 = vmul.f32 %v1908, 0.044715
    %v1911 = vmul.f32 %v1909, 0.044715
    %v1912 = vadd.f32 %v1898, %v1910
    %v1913 = vadd.f32 %v1903, %v1911
    %v1914 = vmul.f32 %v1912, 0.7978846
    %v1915 = vmul.f32 %v1913, 0.7978846
    %v1916 = vtanh.pop %v1914
    %v1917 = vtanh.pop %v1915
    %v1918 = vadd.f32 %v1916, 1.0
    %v1919 = vadd.f32 %v1917, 1.0
    %v1920 = vmul.f32 %v1918, 0.5
    %v1921 = vmul.f32 %v1919, 0.5
    %v1922 = vmul.f32 %v1898, %v1920
    %v1923 = vmul.f32 %v1903, %v1921
    %v1924 = vld [vmem:[#allocation2 + $0xe8] sm:$0xff]
    %v1925 = vld [vmem:[#allocation2 + $0xf0] sm:$0xff]
    %v1926 = vld [vmem:[#allocation2 + $0xf8] sm:$0xff]
    %v1927 = vld [vmem:[#allocation2 + $0x100] sm:$0xff]
    %v1928 = vld [vmem:[#allocation2 + $0x108] sm:$0xff]
    %v1929 = vld [vmem:[#allocation2 + $0x110] sm:$0xff]
    %v1930 = vld [vmem:[#allocation2 + $0x118] sm:$0xff]
    %v1931 = vld [vmem:[#allocation2 + $0x120] sm:$0xff]
    %v1932 = vld [vmem:[%s3 + $0x8] sm:$0x1]
    %v1933 = vlaneseq
    %v1934 = vshrl.u32 %v1933, 7
    %v1935 = vsub.s32 0, %v1934
    %v1936 = vrot.slane %v1932, %v1935
    %vm1937 = vcmask 523264
    %v1939 = vsel %vm1937, %v1922, 0
    %v1942 = vsel %vm1937, %v1923, 0
    %1944 = vmatprep.subr.mxu0 0.0
    %1945 = vmatpush1.msra.mxu0 %v1924
    %1946 = vmatprep.subr.mxu0 0.0
    %1947 = vmatpush1.msra.mxu0 %v1925
    %1948 = vmatprep.subr.mxu0 0.0
    %1949 = vmatpush1.msra.mxu0 %v1926
    %1950 = vmatprep.subr.mxu0 0.0
    %1951 = vmatpush1.msra.mxu0 %v1927
    %1952 = vmatprep.subr.mxu0 0.0
    %1953 = vmatpush1.msra.mxu0 %v1928
    %1954 = vmatprep.subr.mxu0 0.0
    %1955 = vmatpush1.msra.mxu0 %v1929
    %1956 = vmatprep.subr.mxu0 0.0
    %1957 = vmatpush1.msra.mxu0 %v1930
    %1958 = vmatprep.subr.mxu0 0.0
    %1959 = vmatpush1.msra.mxu0 %v1931
    %1960 = vmatprep.subr.mxu0 0.0
    %1961 = vmatpush1.msra.mxu0 0.0
    %1962 = vmatprep.subr.mxu0 0.0
    %1963 = vmatpush1.msra.mxu0 0.0
    %1964 = vmatprep.subr.mxu0 0.0
    %1965 = vmatpush1.msra.mxu0 0.0
    %1966 = vmatprep.subr.mxu0 0.0
    %1967 = vmatpush1.msra.mxu0 0.0
    %1968 = vmatprep.subr.mxu0 0.0
    %1969 = vmatpush1.msra.mxu0 0.0
    %1970 = vmatprep.subr.mxu0 0.0
    %1971 = vmatpush1.msra.mxu0 0.0
    %1972 = vmatprep.subr.mxu0 0.0
    %1973 = vmatpush1.msra.mxu0 0.0
    %1974 = vmatprep.subr.mxu0 0.0
    %1975 = vmatpush1.msra.mxu0 0.0
    %1976 = vmatprep.subr.mxu0 0.0
    %1977 = vmatpush1.msra.mxu0 0.0
    %1978 = vmatprep.subr.mxu0 0.0
    %1979 = vmatpush1.msra.mxu0 0.0
    %1980 = vmatprep.subr.mxu0 0.0
    %1981 = vmatpush1.msra.mxu0 0.0
    %1982 = vmatprep.subr.mxu0 0.0
    %1983 = vmatpush1.msra.mxu0 0.0
    %1984 = vmatprep.subr.mxu0 0.0
    %1985 = vmatpush1.msra.mxu0 0.0
    %1986 = vmatprep.subr.mxu0 0.0
    %1987 = vmatpush1.msra.mxu0 0.0
    %1988 = vmatprep.subr.mxu0 0.0
    %1989 = vmatpush1.msra.mxu0 0.0
    %1990 = vmatprep.subr.mxu0 0.0
    %1991 = vmatpush1.msra.mxu0 0.0
    %1992 = vmatprep.subr.mxu0 0.0
    %1993 = vmatpush1.msra.mxu0 0.0
    %1994 = vmatprep.subr.mxu0 0.0
    %1995 = vmatpush1.msra.mxu0 0.0
    %1996 = vmatprep.subr.mxu0 0.0
    %1997 = vmatpush1.msra.mxu0 0.0
    %1998 = vmatprep.subr.mxu0 0.0
    %1999 = vmatpush1.msra.mxu0 0.0
    %2000 = vmatprep.subr.mxu0 0.0
    %2001 = vmatpush1.msra.mxu0 0.0
    %2002 = vmatprep.subr.mxu0 0.0
    %2003 = vmatpush1.msra.mxu0 0.0
    %2004 = vmatprep.subr.mxu0 0.0
    %2005 = vmatpush1.msra.mxu0 0.0
    %2006 = vmatprep.subr.mxu0 0.0
    %2007 = vmatpush1.msra.mxu0 0.0
    %2008 = vmatprep.mubr.f32.mxu0 0.0
    %2009 = vmatmul.mubr.f32.gmra.mrb[0].mxu0 %v1939
    %v2010 = vpop.f32.mrb[0].mxu0
    %v2011 = vadd.f32 %v1936, %v2010
    %v2012 = vpop.f32.mrb[0].mxu0
    %2013 = vmatprep.mubr.f32.mxu0 0.0
    %2014 = vmatmul.mubr.f32.gmra.mrb[0].mxu0 %v1942
    %v2015 = vpop.f32.mrb[0].mxu0
    %v2016 = vadd.f32 %v1936, %v2015
    %v2017 = vpop.f32.mrb[0].mxu0
    %2018 = vdwg.mxu0
    %v2019 = vadd.f32 %v1814, %v2011
    %v2020 = vadd.f32 %v1815, %v2016
    %v2021 = vld [vmem:[%s3 + $0x9] sm:$0x1]
    %v2022 = vld [vmem:[%s3 + $0xa] sm:$0x1]
    %v2023 = vsel %vm150, %v2019, 0.0
    %2024 = vadd.xlane.f32.xlu0 %v2023
    %v2025 = vpop.xlane.xlu0 %2024
    %v2026 = vsel %vm150, %v2020, 0.0
    %2027 = vadd.xlane.f32.xlu0 %v2026
    %v2028 = vpop.xlane.xlu0 %2027
    %v2029 = vmul.f32 %v2025, %v157
    %v2030 = vmul.f32 %v2028, %v157
    %v2031 = vsub.f32 %v2019, %v2029
    %v2032 = vsub.f32 %v2020, %v2030
    %v2033 = vmul.f32 %v2031, %v2031
    %v2034 = vmul.f32 %v2032, %v2032
    %v2035 = vsel %vm150, %v2033, 0.0
    %2036 = vadd.xlane.f32.xlu0 %v2035
    %v2037 = vpop.xlane.xlu0 %2036
    %v2038 = vsel %vm150, %v2034, 0.0
    %2039 = vadd.xlane.f32.xlu0 %v2038
    %v2040 = vpop.xlane.xlu0 %2039
    %v2041 = vmul.f32 %v2037, %v157
    %v2042 = vmul.f32 %v2040, %v157
    %v2043 = vadd.f32 %v2041, 1e-12
    %v2044 = vadd.f32 %v2042, 1e-12
    %v2045 = vrsqrt.pop %v2043
    %v2046 = vrsqrt.pop %v2044
    %v2047 = vmul.f32 %v2031, %v2045
    %v2048 = vmul.f32 %v2032, %v2046
    %v2049 = vlaneseq
    %v2050 = vshrl.u32 %v2049, 7
    %v2051 = vsub.s32 0, %v2050
    %v2052 = vrot.slane %v2021, %v2051
    %v2053 = vmul.f32 %v2047, %v2052
    %v2054 = vmul.f32 %v2048, %v2052
    %v2055 = vlaneseq
    %v2056 = vshrl.u32 %v2055, 7
    %v2057 = vsub.s32 0, %v2056
    %v2058 = vrot.slane %v2022, %v2057
    %v2059 = vadd.f32 %v2053, %v2058
    %v2060 = vadd.f32 %v2054, %v2058
    %v2061 = vld [vmem:[#allocation2 + $0x128] sm:$0xff]
    %v2062 = vld [vmem:[#allocation2 + $0x130] sm:$0xff]
    %v2063 = vld [vmem:[#allocation2 + $0x138] sm:$0xff]
    %v2064 = vld [vmem:[#allocation2 + $0x140] sm:$0xff]
    %v2065 = vld [vmem:[%s3 + $0xb] sm:$0x1]
    %v2066 = vlaneseq
    %v2067 = vshrl.u32 %v2066, 7
    %v2068 = vsub.s32 0, %v2067
    %v2069 = vrot.slane %v2065, %v2068
    %v2071 = vsel %vm150, %v2059, 0
    %v2074 = vsel %vm150, %v2060, 0
    %2076 = vmatprep.subr.mxu0 0.0
    %2077 = vmatpush1.msra.mxu0 %v2061
    %2078 = vmatprep.subr.mxu0 0.0
    %2079 = vmatpush1.msra.mxu0 %v2062
    %2080 = vmatprep.subr.mxu0 0.0
    %2081 = vmatpush1.msra.mxu0 %v2063
    %2082 = vmatprep.subr.mxu0 0.0
    %2083 = vmatpush1.msra.mxu0 %v2064
    %2084 = vmatprep.subr.mxu0 0.0
    %2085 = vmatpush1.msra.mxu0 0.0
    %2086 = vmatprep.subr.mxu0 0.0
    %2087 = vmatpush1.msra.mxu0 0.0
    %2088 = vmatprep.subr.mxu0 0.0
    %2089 = vmatpush1.msra.mxu0 0.0
    %2090 = vmatprep.subr.mxu0 0.0
    %2091 = vmatpush1.msra.mxu0 0.0
    %2092 = vmatprep.subr.mxu0 0.0
    %2093 = vmatpush1.msra.mxu0 0.0
    %2094 = vmatprep.subr.mxu0 0.0
    %2095 = vmatpush1.msra.mxu0 0.0
    %2096 = vmatprep.subr.mxu0 0.0
    %2097 = vmatpush1.msra.mxu0 0.0
    %2098 = vmatprep.subr.mxu0 0.0
    %2099 = vmatpush1.msra.mxu0 0.0
    %2100 = vmatprep.subr.mxu0 0.0
    %2101 = vmatpush1.msra.mxu0 0.0
    %2102 = vmatprep.subr.mxu0 0.0
    %2103 = vmatpush1.msra.mxu0 0.0
    %2104 = vmatprep.subr.mxu0 0.0
    %2105 = vmatpush1.msra.mxu0 0.0
    %2106 = vmatprep.subr.mxu0 0.0
    %2107 = vmatpush1.msra.mxu0 0.0
    %2108 = vmatprep.subr.mxu0 0.0
    %2109 = vmatpush1.msra.mxu0 0.0
    %2110 = vmatprep.subr.mxu0 0.0
    %2111 = vmatpush1.msra.mxu0 0.0
    %2112 = vmatprep.subr.mxu0 0.0
    %2113 = vmatpush1.msra.mxu0 0.0
    %2114 = vmatprep.subr.mxu0 0.0
    %2115 = vmatpush1.msra.mxu0 0.0
    %2116 = vmatprep.subr.mxu0 0.0
    %2117 = vmatpush1.msra.mxu0 0.0
    %2118 = vmatprep.subr.mxu0 0.0
    %2119 = vmatpush1.msra.mxu0 0.0
    %2120 = vmatprep.subr.mxu0 0.0
    %2121 = vmatpush1.msra.mxu0 0.0
    %2122 = vmatprep.subr.mxu0 0.0
    %2123 = vmatpush1.msra.mxu0 0.0
    %2124 = vmatprep.subr.mxu0 0.0
    %2125 = vmatpush1.msra.mxu0 0.0
    %2126 = vmatprep.subr.mxu0 0.0
    %2127 = vmatpush1.msra.mxu0 0.0
    %2128 = vmatprep.subr.mxu0 0.0
    %2129 = vmatpush1.msra.mxu0 0.0
    %2130 = vmatprep.subr.mxu0 0.0
    %2131 = vmatpush1.msra.mxu0 0.0
    %2132 = vmatprep.subr.mxu0 0.0
    %2133 = vmatpush1.msra.mxu0 0.0
    %2134 = vmatprep.subr.mxu0 0.0
    %2135 = vmatpush1.msra.mxu0 0.0
    %2136 = vmatprep.subr.mxu0 0.0
    %2137 = vmatpush1.msra.mxu0 0.0
    %2138 = vmatprep.subr.mxu0 0.0
    %2139 = vmatpush1.msra.mxu0 0.0
    %2140 = vmatprep.mubr.f32.mxu0 0.0
    %2141 = vmatmul.mubr.f32.gmra.mrb[0].mxu0 %v2071
    %v2142 = vpop.f32.mrb[0].mxu0
    %v2143 = vadd.f32 %v2069, %v2142
    %v2144 = vpop.f32.mrb[0].mxu0
    %2145 = vmatprep.mubr.f32.mxu0 0.0
    %2146 = vmatmul.mubr.f32.gmra.mrb[0].mxu0 %v2074
    %v2147 = vpop.f32.mrb[0].mxu0
    %v2148 = vadd.f32 %v2069, %v2147
    %v2149 = vpop.f32.mrb[0].mxu0
    %2150 = vdwg.mxu0
    %2152 = vrot.lane.b32.xlu0 %v2143, 96
    %v2153 = vpop.permute.xlu0 %2152
    %v2154 = vsel %vm308, %v2143, 0
    %v2156 = vsel %vm308, %v2153, 0
    %2158 = vmatprep.subr.mxu0 0.0
    %2159 = vmatpush1.xpose.msra.mxu0 %v2156
    %2160 = vmatprep.subr.mxu0 0.0
    %2161 = vmatpush1.xpose.msra.mxu0 0.0
    %2162 = vmatprep.subr.mxu0 0.0
    %2163 = vmatpush1.xpose.msra.mxu0 0.0
    %2164 = vmatprep.subr.mxu0 0.0
    %2165 = vmatpush1.xpose.msra.mxu0 0.0
    %2166 = vmatprep.subr.mxu0 0.0
    %2167 = vmatpush1.xpose.msra.mxu0 0.0
    %2168 = vmatprep.subr.mxu0 0.0
    %2169 = vmatpush1.xpose.msra.mxu0 0.0
    %2170 = vmatprep.subr.mxu0 0.0
    %2171 = vmatpush1.xpose.msra.mxu0 0.0
    %2172 = vmatprep.subr.mxu0 0.0
    %2173 = vmatpush1.xpose.msra.mxu0 0.0
    %2174 = vmatprep.subr.mxu0 0.0
    %2175 = vmatpush1.xpose.msra.mxu0 0.0
    %2176 = vmatprep.subr.mxu0 0.0
    %2177 = vmatpush1.xpose.msra.mxu0 0.0
    %2178 = vmatprep.subr.mxu0 0.0
    %2179 = vmatpush1.xpose.msra.mxu0 0.0
    %2180 = vmatprep.subr.mxu0 0.0
    %2181 = vmatpush1.xpose.msra.mxu0 0.0
    %2182 = vmatprep.subr.mxu0 0.0
    %2183 = vmatpush1.xpose.msra.mxu0 0.0
    %2184 = vmatprep.subr.mxu0 0.0
    %2185 = vmatpush1.xpose.msra.mxu0 0.0
    %2186 = vmatprep.subr.mxu0 0.0
    %2187 = vmatpush1.xpose.msra.mxu0 0.0
    %2188 = vmatprep.subr.mxu0 0.0
    %2189 = vmatpush1.xpose.msra.mxu0 0.0
    %2190 = vmatprep.subr.mxu0 0.0
    %2191 = vmatpush1.xpose.msra.mxu0 0.0
    %2192 = vmatprep.subr.mxu0 0.0
    %2193 = vmatpush1.xpose.msra.mxu0 0.0
    %2194 = vmatprep.subr.mxu0 0.0
    %2195 = vmatpush1.xpose.msra.mxu0 0.0
    %2196 = vmatprep.subr.mxu0 0.0
    %2197 = vmatpush1.xpose.msra.mxu0 0.0
    %2198 = vmatprep.subr.mxu0 0.0
    %2199 = vmatpush1.xpose.msra.mxu0 0.0
    %2200 = vmatprep.subr.mxu0 0.0
    %2201 = vmatpush1.xpose.msra.mxu0 0.0
    %2202 = vmatprep.subr.mxu0 0.0
    %2203 = vmatpush1.xpose.msra.mxu0 0.0
    %2204 = vmatprep.subr.mxu0 0.0
    %2205 = vmatpush1.xpose.msra.mxu0 0.0
    %2206 = vmatprep.subr.mxu0 0.0
    %2207 = vmatpush1.xpose.msra.mxu0 0.0
    %2208 = vmatprep.subr.mxu0 0.0
    %2209 = vmatpush1.xpose.msra.mxu0 0.0
    %2210 = vmatprep.subr.mxu0 0.0
    %2211 = vmatpush1.xpose.msra.mxu0 0.0
    %2212 = vmatprep.subr.mxu0 0.0
    %2213 = vmatpush1.xpose.msra.mxu0 0.0
    %2214 = vmatprep.subr.mxu0 0.0
    %2215 = vmatpush1.xpose.msra.mxu0 0.0
    %2216 = vmatprep.subr.mxu0 0.0
    %2217 = vmatpush1.xpose.msra.mxu0 0.0
    %2218 = vmatprep.subr.mxu0 0.0
    %2219 = vmatpush1.xpose.msra.mxu0 0.0
    %2220 = vmatprep.subr.mxu0 0.0
    %2221 = vmatpush1.xpose.msra.mxu0 0.0
    %2222 = vmatprep.mubr.f32.mxu0 0.0
    %2223 = vmatmul.mubr.f32.gmra.mrb[0].mxu0 %v2154
    %v2224 = vpop.f32.mrb[0].mxu0
    %v2225 = vadd.f32 0.0, %v2224
    %v2226 = vpop.f32.mrb[0].mxu0
    %2227 = vdwg.mxu0
    %2229 = vrot.lane.b32.xlu0 %v2148, 96
    %v2230 = vpop.permute.xlu0 %2229
    %v2231 = vsel %vm308, %v2148, 0
    %v2233 = vsel %vm308, %v2230, 0
    %2235 = vmatprep.subr.mxu0 0.0
    %2236 = vmatpush1.xpose.msra.mxu0 %v2233
    %2237 = vmatprep.subr.mxu0 0.0
    %2238 = vmatpush1.xpose.msra.mxu0 0.0
    %2239 = vmatprep.subr.mxu0 0.0
    %2240 = vmatpush1.xpose.msra.mxu0 0.0
    %2241 = vmatprep.subr.mxu0 0.0
    %2242 = vmatpush1.xpose.msra.mxu0 0.0
    %2243 = vmatprep.subr.mxu0 0.0
    %2244 = vmatpush1.xpose.msra.mxu0 0.0
    %2245 = vmatprep.subr.mxu0 0.0
    %2246 = vmatpush1.xpose.msra.mxu0 0.0
    %2247 = vmatprep.subr.mxu0 0.0
    %2248 = vmatpush1.xpose.msra.mxu0 0.0
    %2249 = vmatprep.subr.mxu0 0.0
    %2250 = vmatpush1.xpose.msra.mxu0 0.0
    %2251 = vmatprep.subr.mxu0 0.0
    %2252 = vmatpush1.xpose.msra.mxu0 0.0
    %2253 = vmatprep.subr.mxu0 0.0
    %2254 = vmatpush1.xpose.msra.mxu0 0.0
    %2255 = vmatprep.subr.mxu0 0.0
    %2256 = vmatpush1.xpose.msra.mxu0 0.0
    %2257 = vmatprep.subr.mxu0 0.0
    %2258 = vmatpush1.xpose.msra.mxu0 0.0
    %2259 = vmatprep.subr.mxu0 0.0
    %2260 = vmatpush1.xpose.msra.mxu0 0.0
    %2261 = vmatprep.subr.mxu0 0.0
    %2262 = vmatpush1.xpose.msra.mxu0 0.0
    %2263 = vmatprep.subr.mxu0 0.0
    %2264 = vmatpush1.xpose.msra.mxu0 0.0
    %2265 = vmatprep.subr.mxu0 0.0
    %2266 = vmatpush1.xpose.msra.mxu0 0.0
    %2267 = vmatprep.subr.mxu0 0.0
    %2268 = vmatpush1.xpose.msra.mxu0 0.0
    %2269 = vmatprep.subr.mxu0 0.0
    %2270 = vmatpush1.xpose.msra.mxu0 0.0
    %2271 = vmatprep.subr.mxu0 0.0
    %2272 = vmatpush1.xpose.msra.mxu0 0.0
    %2273 = vmatprep.subr.mxu0 0.0
    %2274 = vmatpush1.xpose.msra.mxu0 0.0
    %2275 = vmatprep.subr.mxu0 0.0
    %2276 = vmatpush1.xpose.msra.mxu0 0.0
    %2277 = vmatprep.subr.mxu0 0.0
    %2278 = vmatpush1.xpose.msra.mxu0 0.0
    %2279 = vmatprep.subr.mxu0 0.0
    %2280 = vmatpush1.xpose.msra.mxu0 0.0
    %2281 = vmatprep.subr.mxu0 0.0
    %2282 = vmatpush1.xpose.msra.mxu0 0.0
    %2283 = vmatprep.subr.mxu0 0.0
    %2284 = vmatpush1.xpose.msra.mxu0 0.0
    %2285 = vmatprep.subr.mxu0 0.0
    %2286 = vmatpush1.xpose.msra.mxu0 0.0
    %2287 = vmatprep.subr.mxu0 0.0
    %2288 = vmatpush1.xpose.msra.mxu0 0.0
    %2289 = vmatprep.subr.mxu0 0.0
    %2290 = vmatpush1.xpose.msra.mxu0 0.0
    %2291 = vmatprep.subr.mxu0 0.0
    %2292 = vmatpush1.xpose.msra.mxu0 0.0
    %2293 = vmatprep.subr.mxu0 0.0
    %2294 = vmatpush1.xpose.msra.mxu0 0.0
    %2295 = vmatprep.subr.mxu0 0.0
    %2296 = vmatpush1.xpose.msra.mxu0 0.0
    %2297 = vmatprep.subr.mxu0 0.0
    %2298 = vmatpush1.xpose.msra.mxu0 0.0
    %2299 = vmatprep.mubr.f32.mxu0 0.0
    %2300 = vmatmul.mubr.f32.gmra.mrb[0].mxu0 %v2231
    %v2301 = vpop.f32.mrb[0].mxu0
    %v2302 = vadd.f32 0.0, %v2301
    %v2303 = vpop.f32.mrb[0].mxu0
    %2304 = vdwg.mxu0
    %v2305 = vmul.f32 %v2225, 0.35355338
    %v2306 = vmul.f32 %v2302, 0.35355338
    %v2307 = vadd.f32 %v2305, %v465
    %v2308 = vadd.f32 %v2306, %v469
    %v2309 = vsel %vm308, %v2307, -inf
    %2310 = vmax.xlane.f32.xlu0 %v2309
    %v2311 = vpop.xlane.xlu0 %2310
    %v2312 = vsel %vm308, %v2308, -inf
    %2313 = vmax.xlane.f32.xlu0 %v2312
    %v2314 = vpop.xlane.xlu0 %2313
    %v2315 = vsub.f32 %v2307, %v2311
    %v2316 = vsub.f32 %v2308, %v2314
    %v2317 = vmul.f32 %v2315, 1.442695
    %v2318 = vpow.pop %v2317
    %v2319 = vmul.f32 %v2316, 1.442695
    %v2320 = vpow.pop %v2319
    %v2321 = vsel %vm308, %v2318, 0.0
    %2322 = vadd.xlane.f32.xlu0 %v2321
    %v2323 = vpop.xlane.xlu0 %2322
    %v2324 = vsel %vm308, %v2320, 0.0
    %2325 = vadd.xlane.f32.xlu0 %v2324
    %v2326 = vpop.xlane.xlu0 %2325
    %v2327 = vrcp.pop %v2323
    %v2328 = vrcp.pop %v2326
    %v2329 = vmul.f32 %v2318, %v2327
    %v2330 = vmul.f32 %v2320, %v2328
    %2331 = vrot.lane.b32.xlu0 %v2143, 64
    %v2332 = vpop.permute.xlu0 %2331
    %v2335 = vsel %vm308, %v2329, 0
    %2337 = vmatprep.subr.mxu0 0.0
    %2338 = vmatpush1.msra.mxu0 %v2332
    %2339 = vmatprep.subr.mxu0 0.0
    %2340 = vmatpush1.msra.mxu0 0.0
    %2341 = vmatprep.subr.mxu0 0.0
    %2342 = vmatpush1.msra.mxu0 0.0
    %2343 = vmatprep.subr.mxu0 0.0
    %2344 = vmatpush1.msra.mxu0 0.0
    %2345 = vmatprep.subr.mxu0 0.0
    %2346 = vmatpush1.msra.mxu0 0.0
    %2347 = vmatprep.subr.mxu0 0.0
    %2348 = vmatpush1.msra.mxu0 0.0
    %2349 = vmatprep.subr.mxu0 0.0
    %2350 = vmatpush1.msra.mxu0 0.0
    %2351 = vmatprep.subr.mxu0 0.0
    %2352 = vmatpush1.msra.mxu0 0.0
    %2353 = vmatprep.subr.mxu0 0.0
    %2354 = vmatpush1.msra.mxu0 0.0
    %2355 = vmatprep.subr.mxu0 0.0
    %2356 = vmatpush1.msra.mxu0 0.0
    %2357 = vmatprep.subr.mxu0 0.0
    %2358 = vmatpush1.msra.mxu0 0.0
    %2359 = vmatprep.subr.mxu0 0.0
    %2360 = vmatpush1.msra.mxu0 0.0
    %2361 = vmatprep.subr.mxu0 0.0
    %2362 = vmatpush1.msra.mxu0 0.0
    %2363 = vmatprep.subr.mxu0 0.0
    %2364 = vmatpush1.msra.mxu0 0.0
    %2365 = vmatprep.subr.mxu0 0.0
    %2366 = vmatpush1.msra.mxu0 0.0
    %2367 = vmatprep.subr.mxu0 0.0
    %2368 = vmatpush1.msra.mxu0 0.0
    %2369 = vmatprep.subr.mxu0 0.0
    %2370 = vmatpush1.msra.mxu0 0.0
    %2371 = vmatprep.subr.mxu0 0.0
    %2372 = vmatpush1.msra.mxu0 0.0
    %2373 = vmatprep.subr.mxu0 0.0
    %2374 = vmatpush1.msra.mxu0 0.0
    %2375 = vmatprep.subr.mxu0 0.0
    %2376 = vmatpush1.msra.mxu0 0.0
    %2377 = vmatprep.subr.mxu0 0.0
    %2378 = vmatpush1.msra.mxu0 0.0
    %2379 = vmatprep.subr.mxu0 0.0
    %2380 = vmatpush1.msra.mxu0 0.0
    %2381 = vmatprep.subr.mxu0 0.0
    %2382 = vmatpush1.msra.mxu0 0.0
    %2383 = vmatprep.subr.mxu0 0.0
    %2384 = vmatpush1.msra.mxu0 0.0
    %2385 = vmatprep.subr.mxu0 0.0
    %2386 = vmatpush1.msra.mxu0 0.0
    %2387 = vmatprep.subr.mxu0 0.0
    %2388 = vmatpush1.msra.mxu0 0.0
    %2389 = vmatprep.subr.mxu0 0.0
    %2390 = vmatpush1.msra.mxu0 0.0
    %2391 = vmatprep.subr.mxu0 0.0
    %2392 = vmatpush1.msra.mxu0 0.0
    %2393 = vmatprep.subr.mxu0 0.0
    %2394 = vmatpush1.msra.mxu0 0.0
    %2395 = vmatprep.subr.mxu0 0.0
    %2396 = vmatpush1.msra.mxu0 0.0
    %2397 = vmatprep.subr.mxu0 0.0
    %2398 = vmatpush1.msra.mxu0 0.0
    %2399 = vmatprep.subr.mxu0 0.0
    %2400 = vmatpush1.msra.mxu0 0.0
    %2401 = vmatprep.mubr.f32.mxu0 0.0
    %2402 = vmatmul.mubr.f32.gmra.mrb[0].mxu0 %v2335
    %v2403 = vpop.f32.mrb[0].mxu0
    %v2404 = vadd.f32 0.0, %v2403
    %v2405 = vpop.f32.mrb[0].mxu0
    %2406 = vdwg.mxu0
    %2407 = vrot.lane.b32.xlu0 %v2148, 64
    %v2408 = vpop.permute.xlu0 %2407
    %v2411 = vsel %vm308, %v2330, 0
    %2413 = vmatprep.subr.mxu0 0.0
    %2414 = vmatpush1.msra.mxu0 %v2408
    %2415 = vmatprep.subr.mxu0 0.0
    %2416 = vmatpush1.msra.mxu0 0.0
    %2417 = vmatprep.subr.mxu0 0.0
    %2418 = vmatpush1.msra.mxu0 0.0
    %2419 = vmatprep.subr.mxu0 0.0
    %2420 = vmatpush1.msra.mxu0 0.0
    %2421 = vmatprep.subr.mxu0 0.0
    %2422 = vmatpush1.msra.mxu0 0.0
    %2423 = vmatprep.subr.mxu0 0.0
    %2424 = vmatpush1.msra.mxu0 0.0
    %2425 = vmatprep.subr.mxu0 0.0
    %2426 = vmatpush1.msra.mxu0 0.0
    %2427 = vmatprep.subr.mxu0 0.0
    %2428 = vmatpush1.msra.mxu0 0.0
    %2429 = vmatprep.subr.mxu0 0.0
    %2430 = vmatpush1.msra.mxu0 0.0
    %2431 = vmatprep.subr.mxu0 0.0
    %2432 = vmatpush1.msra.mxu0 0.0
    %2433 = vmatprep.subr.mxu0 0.0
    %2434 = vmatpush1.msra.mxu0 0.0
    %2435 = vmatprep.subr.mxu0 0.0
    %2436 = vmatpush1.msra.mxu0 0.0
    %2437 = vmatprep.subr.mxu0 0.0
    %2438 = vmatpush1.msra.mxu0 0.0
    %2439 = vmatprep.subr.mxu0 0.0
    %2440 = vmatpush1.msra.mxu0 0.0
    %2441 = vmatprep.subr.mxu0 0.0
    %2442 = vmatpush1.msra.mxu0 0.0
    %2443 = vmatprep.subr.mxu0 0.0
    %2444 = vmatpush1.msra.mxu0 0.0
    %2445 = vmatprep.subr.mxu0 0.0
    %2446 = vmatpush1.msra.mxu0 0.0
    %2447 = vmatprep.subr.mxu0 0.0
    %2448 = vmatpush1.msra.mxu0 0.0
    %2449 = vmatprep.subr.mxu0 0.0
    %2450 = vmatpush1.msra.mxu0 0.0
    %2451 = vmatprep.subr.mxu0 0.0
    %2452 = vmatpush1.msra.mxu0 0.0
    %2453 = vmatprep.subr.mxu0 0.0
    %2454 = vmatpush1.msra.mxu0 0.0
    %2455 = vmatprep.subr.mxu0 0.0
    %2456 = vmatpush1.msra.mxu0 0.0
    %2457 = vmatprep.subr.mxu0 0.0
    %2458 = vmatpush1.msra.mxu0 0.0
    %2459 = vmatprep.subr.mxu0 0.0
    %2460 = vmatpush1.msra.mxu0 0.0
    %2461 = vmatprep.subr.mxu0 0.0
    %2462 = vmatpush1.msra.mxu0 0.0
    %2463 = vmatprep.subr.mxu0 0.0
    %2464 = vmatpush1.msra.mxu0 0.0
    %2465 = vmatprep.subr.mxu0 0.0
    %2466 = vmatpush1.msra.mxu0 0.0
    %2467 = vmatprep.subr.mxu0 0.0
    %2468 = vmatpush1.msra.mxu0 0.0
    %2469 = vmatprep.subr.mxu0 0.0
    %2470 = vmatpush1.msra.mxu0 0.0
    %2471 = vmatprep.subr.mxu0 0.0
    %2472 = vmatpush1.msra.mxu0 0.0
    %2473 = vmatprep.subr.mxu0 0.0
    %2474 = vmatpush1.msra.mxu0 0.0
    %2475 = vmatprep.subr.mxu0 0.0
    %2476 = vmatpush1.msra.mxu0 0.0
    %2477 = vmatprep.mubr.f32.mxu0 0.0
    %2478 = vmatmul.mubr.f32.gmra.mrb[0].mxu0 %v2411
    %v2479 = vpop.f32.mrb[0].mxu0
    %v2480 = vadd.f32 0.0, %v2479
    %v2481 = vpop.f32.mrb[0].mxu0
    %2482 = vdwg.mxu0
    %2483 = vrot.lane.b32.xlu0 %v2143, 120
    %v2484 = vpop.permute.xlu0 %2483
    %2485 = vrot.lane.b32.xlu0 %v2143, 88
    %v2486 = vpop.permute.xlu0 %2485
    %v2487 = vsel %vm308, %v2484, 0
    %v2489 = vsel %vm308, %v2486, 0
    %2491 = vmatprep.subr.mxu0 0.0
    %2492 = vmatpush1.xpose.msra.mxu0 %v2489
    %2493 = vmatprep.subr.mxu0 0.0
    %2494 = vmatpush1.xpose.msra.mxu0 0.0
    %2495 = vmatprep.subr.mxu0 0.0
    %2496 = vmatpush1.xpose.msra.mxu0 0.0
    %2497 = vmatprep.subr.mxu0 0.0
    %2498 = vmatpush1.xpose.msra.mxu0 0.0
    %2499 = vmatprep.subr.mxu0 0.0
    %2500 = vmatpush1.xpose.msra.mxu0 0.0
    %2501 = vmatprep.subr.mxu0 0.0
    %2502 = vmatpush1.xpose.msra.mxu0 0.0
    %2503 = vmatprep.subr.mxu0 0.0
    %2504 = vmatpush1.xpose.msra.mxu0 0.0
    %2505 = vmatprep.subr.mxu0 0.0
    %2506 = vmatpush1.xpose.msra.mxu0 0.0
    %2507 = vmatprep.subr.mxu0 0.0
    %2508 = vmatpush1.xpose.msra.mxu0 0.0
    %2509 = vmatprep.subr.mxu0 0.0
    %2510 = vmatpush1.xpose.msra.mxu0 0.0
    %2511 = vmatprep.subr.mxu0 0.0
    %2512 = vmatpush1.xpose.msra.mxu0 0.0
    %2513 = vmatprep.subr.mxu0 0.0
    %2514 = vmatpush1.xpose.msra.mxu0 0.0
    %2515 = vmatprep.subr.mxu0 0.0
    %2516 = vmatpush1.xpose.msra.mxu0 0.0
    %2517 = vmatprep.subr.mxu0 0.0
    %2518 = vmatpush1.xpose.msra.mxu0 0.0
    %2519 = vmatprep.subr.mxu0 0.0
    %2520 = vmatpush1.xpose.msra.mxu0 0.0
    %2521 = vmatprep.subr.mxu0 0.0
    %2522 = vmatpush1.xpose.msra.mxu0 0.0
    %2523 = vmatprep.subr.mxu0 0.0
    %2524 = vmatpush1.xpose.msra.mxu0 0.0
    %2525 = vmatprep.subr.mxu0 0.0
    %2526 = vmatpush1.xpose.msra.mxu0 0.0
    %2527 = vmatprep.subr.mxu0 0.0
    %2528 = vmatpush1.xpose.msra.mxu0 0.0
    %2529 = vmatprep.subr.mxu0 0.0
    %2530 = vmatpush1.xpose.msra.mxu0 0.0
    %2531 = vmatprep.subr.mxu0 0.0
    %2532 = vmatpush1.xpose.msra.mxu0 0.0
    %2533 = vmatprep.subr.mxu0 0.0
    %2534 = vmatpush1.xpose.msra.mxu0 0.0
    %2535 = vmatprep.subr.mxu0 0.0
    %2536 = vmatpush1.xpose.msra.mxu0 0.0
    %2537 = vmatprep.subr.mxu0 0.0
    %2538 = vmatpush1.xpose.msra.mxu0 0.0
    %2539 = vmatprep.subr.mxu0 0.0
    %2540 = vmatpush1.xpose.msra.mxu0 0.0
    %2541 = vmatprep.subr.mxu0 0.0
    %2542 = vmatpush1.xpose.msra.mxu0 0.0
    %2543 = vmatprep.subr.mxu0 0.0
    %2544 = vmatpush1.xpose.msra.mxu0 0.0
    %2545 = vmatprep.subr.mxu0 0.0
    %2546 = vmatpush1.xpose.msra.mxu0 0.0
    %2547 = vmatprep.subr.mxu0 0.0
    %2548 = vmatpush1.xpose.msra.mxu0 0.0
    %2549 = vmatprep.subr.mxu0 0.0
    %2550 = vmatpush1.xpose.msra.mxu0 0.0
    %2551 = vmatprep.subr.mxu0 0.0
    %2552 = vmatpush1.xpose.msra.mxu0 0.0
    %2553 = vmatprep.subr.mxu0 0.0
    %2554 = vmatpush1.xpose.msra.mxu0 0.0
    %2555 = vmatprep.mubr.f32.mxu0 0.0
    %2556 = vmatmul.mubr.f32.gmra.mrb[0].mxu0 %v2487
    %v2557 = vpop.f32.mrb[0].mxu0
    %v2558 = vadd.f32 0.0, %v2557
    %v2559 = vpop.f32.mrb[0].mxu0
    %2560 = vdwg.mxu0
    %2561 = vrot.lane.b32.xlu0 %v2148, 120
    %v2562 = vpop.permute.xlu0 %2561
    %2563 = vrot.lane.b32.xlu0 %v2148, 88
    %v2564 = vpop.permute.xlu0 %2563
    %v2565 = vsel %vm308, %v2562, 0
    %v2567 = vsel %vm308, %v2564, 0
    %2569 = vmatprep.subr.mxu0 0.0
    %2570 = vmatpush1.xpose.msra.mxu0 %v2567
    %2571 = vmatprep.subr.mxu0 0.0
    %2572 = vmatpush1.xpose.msra.mxu0 0.0
    %2573 = vmatprep.subr.mxu0 0.0
    %2574 = vmatpush1.xpose.msra.mxu0 0.0
    %2575 = vmatprep.subr.mxu0 0.0
    %2576 = vmatpush1.xpose.msra.mxu0 0.0
    %2577 = vmatprep.subr.mxu0 0.0
    %2578 = vmatpush1.xpose.msra.mxu0 0.0
    %2579 = vmatprep.subr.mxu0 0.0
    %2580 = vmatpush1.xpose.msra.mxu0 0.0
    %2581 = vmatprep.subr.mxu0 0.0
    %2582 = vmatpush1.xpose.msra.mxu0 0.0
    %2583 = vmatprep.subr.mxu0 0.0
    %2584 = vmatpush1.xpose.msra.mxu0 0.0
    %2585 = vmatprep.subr.mxu0 0.0
    %2586 = vmatpush1.xpose.msra.mxu0 0.0
    %2587 = vmatprep.subr.mxu0 0.0
    %2588 = vmatpush1.xpose.msra.mxu0 0.0
    %2589 = vmatprep.subr.mxu0 0.0
    %2590 = vmatpush1.xpose.msra.mxu0 0.0
    %2591 = vmatprep.subr.mxu0 0.0
    %2592 = vmatpush1.xpose.msra.mxu0 0.0
    %2593 = vmatprep.subr.mxu0 0.0
    %2594 = vmatpush1.xpose.msra.mxu0 0.0
    %2595 = vmatprep.subr.mxu0 0.0
    %2596 = vmatpush1.xpose.msra.mxu0 0.0
    %2597 = vmatprep.subr.mxu0 0.0
    %2598 = vmatpush1.xpose.msra.mxu0 0.0
    %2599 = vmatprep.subr.mxu0 0.0
    %2600 = vmatpush1.xpose.msra.mxu0 0.0
    %2601 = vmatprep.subr.mxu0 0.0
    %2602 = vmatpush1.xpose.msra.mxu0 0.0
    %2603 = vmatprep.subr.mxu0 0.0
    %2604 = vmatpush1.xpose.msra.mxu0 0.0
    %2605 = vmatprep.subr.mxu0 0.0
    %2606 = vmatpush1.xpose.msra.mxu0 0.0
    %2607 = vmatprep.subr.mxu0 0.0
    %2608 = vmatpush1.xpose.msra.mxu0 0.0
    %2609 = vmatprep.subr.mxu0 0.0
    %2610 = vmatpush1.xpose.msra.mxu0 0.0
    %2611 = vmatprep.subr.mxu0 0.0
    %2612 = vmatpush1.xpose.msra.mxu0 0.0
    %2613 = vmatprep.subr.mxu0 0.0
    %2614 = vmatpush1.xpose.msra.mxu0 0.0
    %2615 = vmatprep.subr.mxu0 0.0
    %2616 = vmatpush1.xpose.msra.mxu0 0.0
    %2617 = vmatprep.subr.mxu0 0.0
    %2618 = vmatpush1.xpose.msra.mxu0 0.0
    %2619 = vmatprep.subr.mxu0 0.0
    %2620 = vmatpush1.xpose.msra.mxu0 0.0
    %2621 = vmatprep.subr.mxu0 0.0
    %2622 = vmatpush1.xpose.msra.mxu0 0.0
    %2623 = vmatprep.subr.mxu0 0.0
    %2624 = vmatpush1.xpose.msra.mxu0 0.0
    %2625 = vmatprep.subr.mxu0 0.0
    %2626 = vmatpush1.xpose.msra.mxu0 0.0
    %2627 = vmatprep.subr.mxu0 0.0
    %2628 = vmatpush1.xpose.msra.mxu0 0.0
    %2629 = vmatprep.subr.mxu0 0.0
    %2630 = vmatpush1.xpose.msra.mxu0 0.0
    %2631 = vmatprep.subr.mxu0 0.0
    %2632 = vmatpush1.xpose.msra.mxu0 0.0
    %2633 = vmatprep.mubr.f32.mxu0 0.0
    %2634 = vmatmul.mubr.f32.gmra.mrb[0].mxu0 %v2565
    %v2635 = vpop.f32.mrb[0].mxu0
    %v2636 = vadd.f32 0.0, %v2635
    %v2637 = vpop.f32.mrb[0].mxu0
    %2638 = vdwg.mxu0
    %v2639 = vmul.f32 %v2558, 0.35355338
    %v2640 = vmul.f32 %v2636, 0.35355338
    %v2641 = vadd.f32 %v2639, %v465
    %v2642 = vadd.f32 %v2640, %v469
    %v2643 = vsel %vm308, %v2641, -inf
    %2644 = vmax.xlane.f32.xlu0 %v2643
    %v2645 = vpop.xlane.xlu0 %2644
    %v2646 = vsel %vm308, %v2642, -inf
    %2647 = vmax.xlane.f32.xlu0 %v2646
    %v2648 = vpop.xlane.xlu0 %2647
    %v2649 = vsub.f32 %v2641, %v2645
    %v2650 = vsub.f32 %v2642, %v2648
    %v2651 = vmul.f32 %v2649, 1.442695
    %v2652 = vpow.pop %v2651
    %v2653 = vmul.f32 %v2650, 1.442695
    %v2654 = vpow.pop %v2653
    %v2655 = vsel %vm308, %v2652, 0.0
    %2656 = vadd.xlane.f32.xlu0 %v2655
    %v2657 = vpop.xlane.xlu0 %2656
    %v2658 = vsel %vm308, %v2654, 0.0
    %2659 = vadd.xlane.f32.xlu0 %v2658
    %v2660 = vpop.xlane.xlu0 %2659
    %v2661 = vrcp.pop %v2657
    %v2662 = vrcp.pop %v2660
    %v2663 = vmul.f32 %v2652, %v2661
    %v2664 = vmul.f32 %v2654, %v2662
    %2665 = vrot.lane.b32.xlu0 %v2143, 56
    %v2666 = vpop.permute.xlu0 %2665
    %v2669 = vsel %vm308, %v2663, 0
    %2671 = vmatprep.subr.mxu0 0.0
    %2672 = vmatpush1.msra.mxu0 %v2666
    %2673 = vmatprep.subr.mxu0 0.0
    %2674 = vmatpush1.msra.mxu0 0.0
    %2675 = vmatprep.subr.mxu0 0.0
    %2676 = vmatpush1.msra.mxu0 0.0
    %2677 = vmatprep.subr.mxu0 0.0
    %2678 = vmatpush1.msra.mxu0 0.0
    %2679 = vmatprep.subr.mxu0 0.0
    %2680 = vmatpush1.msra.mxu0 0.0
    %2681 = vmatprep.subr.mxu0 0.0
    %2682 = vmatpush1.msra.mxu0 0.0
    %2683 = vmatprep.subr.mxu0 0.0
    %2684 = vmatpush1.msra.mxu0 0.0
    %2685 = vmatprep.subr.mxu0 0.0
    %2686 = vmatpush1.msra.mxu0 0.0
    %2687 = vmatprep.subr.mxu0 0.0
    %2688 = vmatpush1.msra.mxu0 0.0
    %2689 = vmatprep.subr.mxu0 0.0
    %2690 = vmatpush1.msra.mxu0 0.0
    %2691 = vmatprep.subr.mxu0 0.0
    %2692 = vmatpush1.msra.mxu0 0.0
    %2693 = vmatprep.subr.mxu0 0.0
    %2694 = vmatpush1.msra.mxu0 0.0
    %2695 = vmatprep.subr.mxu0 0.0
    %2696 = vmatpush1.msra.mxu0 0.0
    %2697 = vmatprep.subr.mxu0 0.0
    %2698 = vmatpush1.msra.mxu0 0.0
    %2699 = vmatprep.subr.mxu0 0.0
    %2700 = vmatpush1.msra.mxu0 0.0
    %2701 = vmatprep.subr.mxu0 0.0
    %2702 = vmatpush1.msra.mxu0 0.0
    %2703 = vmatprep.subr.mxu0 0.0
    %2704 = vmatpush1.msra.mxu0 0.0
    %2705 = vmatprep.subr.mxu0 0.0
    %2706 = vmatpush1.msra.mxu0 0.0
    %2707 = vmatprep.subr.mxu0 0.0
    %2708 = vmatpush1.msra.mxu0 0.0
    %2709 = vmatprep.subr.mxu0 0.0
    %2710 = vmatpush1.msra.mxu0 0.0
    %2711 = vmatprep.subr.mxu0 0.0
    %2712 = vmatpush1.msra.mxu0 0.0
    %2713 = vmatprep.subr.mxu0 0.0
    %2714 = vmatpush1.msra.mxu0 0.0
    %2715 = vmatprep.subr.mxu0 0.0
    %2716 = vmatpush1.msra.mxu0 0.0
    %2717 = vmatprep.subr.mxu0 0.0
    %2718 = vmatpush1.msra.mxu0 0.0
    %2719 = vmatprep.subr.mxu0 0.0
    %2720 = vmatpush1.msra.mxu0 0.0
    %2721 = vmatprep.subr.mxu0 0.0
    %2722 = vmatpush1.msra.mxu0 0.0
    %2723 = vmatprep.subr.mxu0 0.0
    %2724 = vmatpush1.msra.mxu0 0.0
    %2725 = vmatprep.subr.mxu0 0.0
    %2726 = vmatpush1.msra.mxu0 0.0
    %2727 = vmatprep.subr.mxu0 0.0
    %2728 = vmatpush1.msra.mxu0 0.0
    %2729 = vmatprep.subr.mxu0 0.0
    %2730 = vmatpush1.msra.mxu0 0.0
    %2731 = vmatprep.subr.mxu0 0.0
    %2732 = vmatpush1.msra.mxu0 0.0
    %2733 = vmatprep.subr.mxu0 0.0
    %2734 = vmatpush1.msra.mxu0 0.0
    %2735 = vmatprep.mubr.f32.mxu0 0.0
    %2736 = vmatmul.mubr.f32.gmra.mrb[0].mxu0 %v2669
    %v2737 = vpop.f32.mrb[0].mxu0
    %v2738 = vadd.f32 0.0, %v2737
    %v2739 = vpop.f32.mrb[0].mxu0
    %2740 = vdwg.mxu0
    %2741 = vrot.lane.b32.xlu0 %v2148, 56
    %v2742 = vpop.permute.xlu0 %2741
    %v2745 = vsel %vm308, %v2664, 0
    %2747 = vmatprep.subr.mxu0 0.0
    %2748 = vmatpush1.msra.mxu0 %v2742
    %2749 = vmatprep.subr.mxu0 0.0
    %2750 = vmatpush1.msra.mxu0 0.0
    %2751 = vmatprep.subr.mxu0 0.0
    %2752 = vmatpush1.msra.mxu0 0.0
    %2753 = vmatprep.subr.mxu0 0.0
    %2754 = vmatpush1.msra.mxu0 0.0
    %2755 = vmatprep.subr.mxu0 0.0
    %2756 = vmatpush1.msra.mxu0 0.0
    %2757 = vmatprep.subr.mxu0 0.0
    %2758 = vmatpush1.msra.mxu0 0.0
    %2759 = vmatprep.subr.mxu0 0.0
    %2760 = vmatpush1.msra.mxu0 0.0
    %2761 = vmatprep.subr.mxu0 0.0
    %2762 = vmatpush1.msra.mxu0 0.0
    %2763 = vmatprep.subr.mxu0 0.0
    %2764 = vmatpush1.msra.mxu0 0.0
    %2765 = vmatprep.subr.mxu0 0.0
    %2766 = vmatpush1.msra.mxu0 0.0
    %2767 = vmatprep.subr.mxu0 0.0
    %2768 = vmatpush1.msra.mxu0 0.0
    %2769 = vmatprep.subr.mxu0 0.0
    %2770 = vmatpush1.msra.mxu0 0.0
    %2771 = vmatprep.subr.mxu0 0.0
    %2772 = vmatpush1.msra.mxu0 0.0
    %2773 = vmatprep.subr.mxu0 0.0
    %2774 = vmatpush1.msra.mxu0 0.0
    %2775 = vmatprep.subr.mxu0 0.0
    %2776 = vmatpush1.msra.mxu0 0.0
    %2777 = vmatprep.subr.mxu0 0.0
    %2778 = vmatpush1.msra.mxu0 0.0
    %2779 = vmatprep.subr.mxu0 0.0
    %2780 = vmatpush1.msra.mxu0 0.0
    %2781 = vmatprep.subr.mxu0 0.0
    %2782 = vmatpush1.msra.mxu0 0.0
    %2783 = vmatprep.subr.mxu0 0.0
    %2784 = vmatpush1.msra.mxu0 0.0
    %2785 = vmatprep.subr.mxu0 0.0
    %2786 = vmatpush1.msra.mxu0 0.0
    %2787 = vmatprep.subr.mxu0 0.0
    %2788 = vmatpush1.msra.mxu0 0.0
    %2789 = vmatprep.subr.mxu0 0.0
    %2790 = vmatpush1.msra.mxu0 0.0
    %2791 = vmatprep.subr.mxu0 0.0
    %2792 = vmatpush1.msra.mxu0 0.0
    %2793 = vmatprep.subr.mxu0 0.0
    %2794 = vmatpush1.msra.mxu0 0.0
    %2795 = vmatprep.subr.mxu0 0.0
    %2796 = vmatpush1.msra.mxu0 0.0
    %2797 = vmatprep.subr.mxu0 0.0
    %2798 = vmatpush1.msra.mxu0 0.0
    %2799 = vmatprep.subr.mxu0 0.0
    %2800 = vmatpush1.msra.mxu0 0.0
    %2801 = vmatprep.subr.mxu0 0.0
    %2802 = vmatpush1.msra.mxu0 0.0
    %2803 = vmatprep.subr.mxu0 0.0
    %2804 = vmatpush1.msra.mxu0 0.0
    %2805 = vmatprep.subr.mxu0 0.0
    %2806 = vmatpush1.msra.mxu0 0.0
    %2807 = vmatprep.subr.mxu0 0.0
    %2808 = vmatpush1.msra.mxu0 0.0
    %2809 = vmatprep.subr.mxu0 0.0
    %2810 = vmatpush1.msra.mxu0 0.0
    %2811 = vmatprep.mubr.f32.mxu0 0.0
    %2812 = vmatmul.mubr.f32.gmra.mrb[0].mxu0 %v2745
    %v2813 = vpop.f32.mrb[0].mxu0
    %v2814 = vadd.f32 0.0, %v2813
    %v2815 = vpop.f32.mrb[0].mxu0
    %2816 = vdwg.mxu0
    %2817 = vrot.lane.b32.xlu0 %v2143, 112
    %v2818 = vpop.permute.xlu0 %2817
    %2819 = vrot.lane.b32.xlu0 %v2143, 80
    %v2820 = vpop.permute.xlu0 %2819
    %v2821 = vsel %vm308, %v2818, 0
    %v2823 = vsel %vm308, %v2820, 0
    %2825 = vmatprep.subr.mxu0 0.0
    %2826 = vmatpush1.xpose.msra.mxu0 %v2823
    %2827 = vmatprep.subr.mxu0 0.0
    %2828 = vmatpush1.xpose.msra.mxu0 0.0
    %2829 = vmatprep.subr.mxu0 0.0
    %2830 = vmatpush1.xpose.msra.mxu0 0.0
    %2831 = vmatprep.subr.mxu0 0.0
    %2832 = vmatpush1.xpose.msra.mxu0 0.0
    %2833 = vmatprep.subr.mxu0 0.0
    %2834 = vmatpush1.xpose.msra.mxu0 0.0
    %2835 = vmatprep.subr.mxu0 0.0
    %2836 = vmatpush1.xpose.msra.mxu0 0.0
    %2837 = vmatprep.subr.mxu0 0.0
    %2838 = vmatpush1.xpose.msra.mxu0 0.0
    %2839 = vmatprep.subr.mxu0 0.0
    %2840 = vmatpush1.xpose.msra.mxu0 0.0
    %2841 = vmatprep.subr.mxu0 0.0
    %2842 = vmatpush1.xpose.msra.mxu0 0.0
    %2843 = vmatprep.subr.mxu0 0.0
    %2844 = vmatpush1.xpose.msra.mxu0 0.0
    %2845 = vmatprep.subr.mxu0 0.0
    %2846 = vmatpush1.xpose.msra.mxu0 0.0
    %2847 = vmatprep.subr.mxu0 0.0
    %2848 = vmatpush1.xpose.msra.mxu0 0.0
    %2849 = vmatprep.subr.mxu0 0.0
    %2850 = vmatpush1.xpose.msra.mxu0 0.0
    %2851 = vmatprep.subr.mxu0 0.0
    %2852 = vmatpush1.xpose.msra.mxu0 0.0
    %2853 = vmatprep.subr.mxu0 0.0
    %2854 = vmatpush1.xpose.msra.mxu0 0.0
    %2855 = vmatprep.subr.mxu0 0.0
    %2856 = vmatpush1.xpose.msra.mxu0 0.0
    %2857 = vmatprep.subr.mxu0 0.0
    %2858 = vmatpush1.xpose.msra.mxu0 0.0
    %2859 = vmatprep.subr.mxu0 0.0
    %2860 = vmatpush1.xpose.msra.mxu0 0.0
    %2861 = vmatprep.subr.mxu0 0.0
    %2862 = vmatpush1.xpose.msra.mxu0 0.0
    %2863 = vmatprep.subr.mxu0 0.0
    %2864 = vmatpush1.xpose.msra.mxu0 0.0
    %2865 = vmatprep.subr.mxu0 0.0
    %2866 = vmatpush1.xpose.msra.mxu0 0.0
    %2867 = vmatprep.subr.mxu0 0.0
    %2868 = vmatpush1.xpose.msra.mxu0 0.0
    %2869 = vmatprep.subr.mxu0 0.0
    %2870 = vmatpush1.xpose.msra.mxu0 0.0
    %2871 = vmatprep.subr.mxu0 0.0
    %2872 = vmatpush1.xpose.msra.mxu0 0.0
    %2873 = vmatprep.subr.mxu0 0.0
    %2874 = vmatpush1.xpose.msra.mxu0 0.0
    %2875 = vmatprep.subr.mxu0 0.0
    %2876 = vmatpush1.xpose.msra.mxu0 0.0
    %2877 = vmatprep.subr.mxu0 0.0
    %2878 = vmatpush1.xpose.msra.mxu0 0.0
    %2879 = vmatprep.subr.mxu0 0.0
    %2880 = vmatpush1.xpose.msra.mxu0 0.0
    %2881 = vmatprep.subr.mxu0 0.0
    %2882 = vmatpush1.xpose.msra.mxu0 0.0
    %2883 = vmatprep.subr.mxu0 0.0
    %2884 = vmatpush1.xpose.msra.mxu0 0.0
    %2885 = vmatprep.subr.mxu0 0.0
    %2886 = vmatpush1.xpose.msra.mxu0 0.0
    %2887 = vmatprep.subr.mxu0 0.0
    %2888 = vmatpush1.xpose.msra.mxu0 0.0
    %2889 = vmatprep.mubr.f32.mxu0 0.0
    %2890 = vmatmul.mubr.f32.gmra.mrb[0].mxu0 %v2821
    %v2891 = vpop.f32.mrb[0].mxu0
    %v2892 = vadd.f32 0.0, %v2891
    %v2893 = vpop.f32.mrb[0].mxu0
    %2894 = vdwg.mxu0
    %2895 = vrot.lane.b32.xlu0 %v2148, 112
    %v2896 = vpop.permute.xlu0 %2895
    %2897 = vrot.lane.b32.xlu0 %v2148, 80
    %v2898 = vpop.permute.xlu0 %2897
    %v2899 = vsel %vm308, %v2896, 0
    %v2901 = vsel %vm308, %v2898, 0
    %2903 = vmatprep.subr.mxu0 0.0
    %2904 = vmatpush1.xpose.msra.mxu0 %v2901
    %2905 = vmatprep.subr.mxu0 0.0
    %2906 = vmatpush1.xpose.msra.mxu0 0.0
    %2907 = vmatprep.subr.mxu0 0.0
    %2908 = vmatpush1.xpose.msra.mxu0 0.0
    %2909 = vmatprep.subr.mxu0 0.0
    %2910 = vmatpush1.xpose.msra.mxu0 0.0
    %2911 = vmatprep.subr.mxu0 0.0
    %2912 = vmatpush1.xpose.msra.mxu0 0.0
    %2913 = vmatprep.subr.mxu0 0.0
    %2914 = vmatpush1.xpose.msra.mxu0 0.0
    %2915 = vmatprep.subr.mxu0 0.0
    %2916 = vmatpush1.xpose.msra.mxu0 0.0
    %2917 = vmatprep.subr.mxu0 0.0
    %2918 = vmatpush1.xpose.msra.mxu0 0.0
    %2919 = vmatprep.subr.mxu0 0.0
    %2920 = vmatpush1.xpose.msra.mxu0 0.0
    %2921 = vmatprep.subr.mxu0 0.0
    %2922 = vmatpush1.xpose.msra.mxu0 0.0
    %2923 = vmatprep.subr.mxu0 0.0
    %2924 = vmatpush1.xpose.msra.mxu0 0.0
    %2925 = vmatprep.subr.mxu0 0.0
    %2926 = vmatpush1.xpose.msra.mxu0 0.0
    %2927 = vmatprep.subr.mxu0 0.0
    %2928 = vmatpush1.xpose.msra.mxu0 0.0
    %2929 = vmatprep.subr.mxu0 0.0
    %2930 = vmatpush1.xpose.msra.mxu0 0.0
    %2931 = vmatprep.subr.mxu0 0.0
    %2932 = vmatpush1.xpose.msra.mxu0 0.0
    %2933 = vmatprep.subr.mxu0 0.0
    %2934 = vmatpush1.xpose.msra.mxu0 0.0
    %2935 = vmatprep.subr.mxu0 0.0
    %2936 = vmatpush1.xpose.msra.mxu0 0.0
    %2937 = vmatprep.subr.mxu0 0.0
    %2938 = vmatpush1.xpose.msra.mxu0 0.0
    %2939 = vmatprep.subr.mxu0 0.0
    %2940 = vmatpush1.xpose.msra.mxu0 0.0
    %2941 = vmatprep.subr.mxu0 0.0
    %2942 = vmatpush1.xpose.msra.mxu0 0.0
    %2943 = vmatprep.subr.mxu0 0.0
    %2944 = vmatpush1.xpose.msra.mxu0 0.0
    %2945 = vmatprep.subr.mxu0 0.0
    %2946 = vmatpush1.xpose.msra.mxu0 0.0
    %2947 = vmatprep.subr.mxu0 0.0
    %2948 = vmatpush1.xpose.msra.mxu0 0.0
    %2949 = vmatprep.subr.mxu0 0.0
    %2950 = vmatpush1.xpose.msra.mxu0 0.0
    %2951 = vmatprep.subr.mxu0 0.0
    %2952 = vmatpush1.xpose.msra.mxu0 0.0
    %2953 = vmatprep.subr.mxu0 0.0
    %2954 = vmatpush1.xpose.msra.mxu0 0.0
    %2955 = vmatprep.subr.mxu0 0.0
    %2956 = vmatpush1.xpose.msra.mxu0 0.0
    %2957 = vmatprep.subr.mxu0 0.0
    %2958 = vmatpush1.xpose.msra.mxu0 0.0
    %2959 = vmatprep.subr.mxu0 0.0
    %2960 = vmatpush1.xpose.msra.mxu0 0.0
    %2961 = vmatprep.subr.mxu0 0.0
    %2962 = vmatpush1.xpose.msra.mxu0 0.0
    %2963 = vmatprep.subr.mxu0 0.0
    %2964 = vmatpush1.xpose.msra.mxu0 0.0
    %2965 = vmatprep.subr.mxu0 0.0
    %2966 = vmatpush1.xpose.msra.mxu0 0.0
    %2967 = vmatprep.mubr.f32.mxu0 0.0
    %2968 = vmatmul.mubr.f32.gmra.mrb[0].mxu0 %v2899
    %v2969 = vpop.f32.mrb[0].mxu0
    %v2970 = vadd.f32 0.0, %v2969
    %v2971 = vpop.f32.mrb[0].mxu0
    %2972 = vdwg.mxu0
    %v2973 = vmul.f32 %v2892, 0.35355338
    %v2974 = vmul.f32 %v2970, 0.35355338
    %v2975 = vadd.f32 %v2973, %v465
    %v2976 = vadd.f32 %v2974, %v469
    %v2977 = vsel %vm308, %v2975, -inf
    %2978 = vmax.xlane.f32.xlu0 %v2977
    %v2979 = vpop.xlane.xlu0 %2978
    %v2980 = vsel %vm308, %v2976, -inf
    %2981 = vmax.xlane.f32.xlu0 %v2980
    %v2982 = vpop.xlane.xlu0 %2981
    %v2983 = vsub.f32 %v2975, %v2979
    %v2984 = vsub.f32 %v2976, %v2982
    %v2985 = vmul.f32 %v2983, 1.442695
    %v2986 = vpow.pop %v2985
    %v2987 = vmul.f32 %v2984, 1.442695
    %v2988 = vpow.pop %v2987
    %v2989 = vsel %vm308, %v2986, 0.0
    %2990 = vadd.xlane.f32.xlu0 %v2989
    %v2991 = vpop.xlane.xlu0 %2990
    %v2992 = vsel %vm308, %v2988, 0.0
    %2993 = vadd.xlane.f32.xlu0 %v2992
    %v2994 = vpop.xlane.xlu0 %2993
    %v2995 = vrcp.pop %v2991
    %v2996 = vrcp.pop %v2994
    %v2997 = vmul.f32 %v2986, %v2995
    %v2998 = vmul.f32 %v2988, %v2996
    %2999 = vrot.lane.b32.xlu0 %v2143, 48
    %v3000 = vpop.permute.xlu0 %2999
    %v3003 = vsel %vm308, %v2997, 0
    %3005 = vmatprep.subr.mxu0 0.0
    %3006 = vmatpush1.msra.mxu0 %v3000
    %3007 = vmatprep.subr.mxu0 0.0
    %3008 = vmatpush1.msra.mxu0 0.0
    %3009 = vmatprep.subr.mxu0 0.0
    %3010 = vmatpush1.msra.mxu0 0.0
    %3011 = vmatprep.subr.mxu0 0.0
    %3012 = vmatpush1.msra.mxu0 0.0
    %3013 = vmatprep.subr.mxu0 0.0
    %3014 = vmatpush1.msra.mxu0 0.0
    %3015 = vmatprep.subr.mxu0 0.0
    %3016 = vmatpush1.msra.mxu0 0.0
    %3017 = vmatprep.subr.mxu0 0.0
    %3018 = vmatpush1.msra.mxu0 0.0
    %3019 = vmatprep.subr.mxu0 0.0
    %3020 = vmatpush1.msra.mxu0 0.0
    %3021 = vmatprep.subr.mxu0 0.0
    %3022 = vmatpush1.msra.mxu0 0.0
    %3023 = vmatprep.subr.mxu0 0.0
    %3024 = vmatpush1.msra.mxu0 0.0
    %3025 = vmatprep.subr.mxu0 0.0
    %3026 = vmatpush1.msra.mxu0 0.0
    %3027 = vmatprep.subr.mxu0 0.0
    %3028 = vmatpush1.msra.mxu0 0.0
    %3029 = vmatprep.subr.mxu0 0.0
    %3030 = vmatpush1.msra.mxu0 0.0
    %3031 = vmatprep.subr.mxu0 0.0
    %3032 = vmatpush1.msra.mxu0 0.0
    %3033 = vmatprep.subr.mxu0 0.0
    %3034 = vmatpush1.msra.mxu0 0.0
    %3035 = vmatprep.subr.mxu0 0.0
    %3036 = vmatpush1.msra.mxu0 0.0
    %3037 = vmatprep.subr.mxu0 0.0
    %3038 = vmatpush1.msra.mxu0 0.0
    %3039 = vmatprep.subr.mxu0 0.0
    %3040 = vmatpush1.msra.mxu0 0.0
    %3041 = vmatprep.subr.mxu0 0.0
    %3042 = vmatpush1.msra.mxu0 0.0
    %3043 = vmatprep.subr.mxu0 0.0
    %3044 = vmatpush1.msra.mxu0 0.0
    %3045 = vmatprep.subr.mxu0 0.0
    %3046 = vmatpush1.msra.mxu0 0.0
    %3047 = vmatprep.subr.mxu0 0.0
    %3048 = vmatpush1.msra.mxu0 0.0
    %3049 = vmatprep.subr.mxu0 0.0
    %3050 = vmatpush1.msra.mxu0 0.0
    %3051 = vmatprep.subr.mxu0 0.0
    %3052 = vmatpush1.msra.mxu0 0.0
    %3053 = vmatprep.subr.mxu0 0.0
    %3054 = vmatpush1.msra.mxu0 0.0
    %3055 = vmatprep.subr.mxu0 0.0
    %3056 = vmatpush1.msra.mxu0 0.0
    %3057 = vmatprep.subr.mxu0 0.0
    %3058 = vmatpush1.msra.mxu0 0.0
    %3059 = vmatprep.subr.mxu0 0.0
    %3060 = vmatpush1.msra.mxu0 0.0
    %3061 = vmatprep.subr.mxu0 0.0
    %3062 = vmatpush1.msra.mxu0 0.0
    %3063 = vmatprep.subr.mxu0 0.0
    %3064 = vmatpush1.msra.mxu0 0.0
    %3065 = vmatprep.subr.mxu0 0.0
    %3066 = vmatpush1.msra.mxu0 0.0
    %3067 = vmatprep.subr.mxu0 0.0
    %3068 = vmatpush1.msra.mxu0 0.0
    %3069 = vmatprep.mubr.f32.mxu0 0.0
    %3070 = vmatmul.mubr.f32.gmra.mrb[0].mxu0 %v3003
    %v3071 = vpop.f32.mrb[0].mxu0
    %v3072 = vadd.f32 0.0, %v3071
    %v3073 = vpop.f32.mrb[0].mxu0
    %3074 = vdwg.mxu0
    %3075 = vrot.lane.b32.xlu0 %v2148, 48
    %v3076 = vpop.permute.xlu0 %3075
    %v3079 = vsel %vm308, %v2998, 0
    %3081 = vmatprep.subr.mxu0 0.0
    %3082 = vmatpush1.msra.mxu0 %v3076
    %3083 = vmatprep.subr.mxu0 0.0
    %3084 = vmatpush1.msra.mxu0 0.0
    %3085 = vmatprep.subr.mxu0 0.0
    %3086 = vmatpush1.msra.mxu0 0.0
    %3087 = vmatprep.subr.mxu0 0.0
    %3088 = vmatpush1.msra.mxu0 0.0
    %3089 = vmatprep.subr.mxu0 0.0
    %3090 = vmatpush1.msra.mxu0 0.0
    %3091 = vmatprep.subr.mxu0 0.0
    %3092 = vmatpush1.msra.mxu0 0.0
    %3093 = vmatprep.subr.mxu0 0.0
    %3094 = vmatpush1.msra.mxu0 0.0
    %3095 = vmatprep.subr.mxu0 0.0
    %3096 = vmatpush1.msra.mxu0 0.0
    %3097 = vmatprep.subr.mxu0 0.0
    %3098 = vmatpush1.msra.mxu0 0.0
    %3099 = vmatprep.subr.mxu0 0.0
    %3100 = vmatpush1.msra.mxu0 0.0
    %3101 = vmatprep.subr.mxu0 0.0
    %3102 = vmatpush1.msra.mxu0 0.0
    %3103 = vmatprep.subr.mxu0 0.0
    %3104 = vmatpush1.msra.mxu0 0.0
    %3105 = vmatprep.subr.mxu0 0.0
    %3106 = vmatpush1.msra.mxu0 0.0
    %3107 = vmatprep.subr.mxu0 0.0
    %3108 = vmatpush1.msra.mxu0 0.0
    %3109 = vmatprep.subr.mxu0 0.0
    %3110 = vmatpush1.msra.mxu0 0.0
    %3111 = vmatprep.subr.mxu0 0.0
    %3112 = vmatpush1.msra.mxu0 0.0
    %3113 = vmatprep.subr.mxu0 0.0
    %3114 = vmatpush1.msra.mxu0 0.0
    %3115 = vmatprep.subr.mxu0 0.0
    %3116 = vmatpush1.msra.mxu0 0.0
    %3117 = vmatprep.subr.mxu0 0.0
    %3118 = vmatpush1.msra.mxu0 0.0
    %3119 = vmatprep.subr.mxu0 0.0
    %3120 = vmatpush1.msra.mxu0 0.0
    %3121 = vmatprep.subr.mxu0 0.0
    %3122 = vmatpush1.msra.mxu0 0.0
    %3123 = vmatprep.subr.mxu0 0.0
    %3124 = vmatpush1.msra.mxu0 0.0
    %3125 = vmatprep.subr.mxu0 0.0
    %3126 = vmatpush1.msra.mxu0 0.0
    %3127 = vmatprep.subr.mxu0 0.0
    %3128 = vmatpush1.msra.mxu0 0.0
    %3129 = vmatprep.subr.mxu0 0.0
    %3130 = vmatpush1.msra.mxu0 0.0
    %3131 = vmatprep.subr.mxu0 0.0
    %3132 = vmatpush1.msra.mxu0 0.0
    %3133 = vmatprep.subr.mxu0 0.0
    %3134 = vmatpush1.msra.mxu0 0.0
    %3135 = vmatprep.subr.mxu0 0.0
    %3136 = vmatpush1.msra.mxu0 0.0
    %3137 = vmatprep.subr.mxu0 0.0
    %3138 = vmatpush1.msra.mxu0 0.0
    %3139 = vmatprep.subr.mxu0 0.0
    %3140 = vmatpush1.msra.mxu0 0.0
    %3141 = vmatprep.subr.mxu0 0.0
    %3142 = vmatpush1.msra.mxu0 0.0
    %3143 = vmatprep.subr.mxu0 0.0
    %3144 = vmatpush1.msra.mxu0 0.0
    %3145 = vmatprep.mubr.f32.mxu0 0.0
    %3146 = vmatmul.mubr.f32.gmra.mrb[0].mxu0 %v3079
    %v3147 = vpop.f32.mrb[0].mxu0
    %v3148 = vadd.f32 0.0, %v3147
    %v3149 = vpop.f32.mrb[0].mxu0
    %3150 = vdwg.mxu0
    %3151 = vrot.lane.b32.xlu0 %v2143, 104
    %v3152 = vpop.permute.xlu0 %3151
    %3153 = vrot.lane.b32.xlu0 %v2143, 72
    %v3154 = vpop.permute.xlu0 %3153
    %v3155 = vsel %vm308, %v3152, 0
    %v3157 = vsel %vm308, %v3154, 0
    %3159 = vmatprep.subr.mxu0 0.0
    %3160 = vmatpush1.xpose.msra.mxu0 %v3157
    %3161 = vmatprep.subr.mxu0 0.0
    %3162 = vmatpush1.xpose.msra.mxu0 0.0
    %3163 = vmatprep.subr.mxu0 0.0
    %3164 = vmatpush1.xpose.msra.mxu0 0.0
    %3165 = vmatprep.subr.mxu0 0.0
    %3166 = vmatpush1.xpose.msra.mxu0 0.0
    %3167 = vmatprep.subr.mxu0 0.0
    %3168 = vmatpush1.xpose.msra.mxu0 0.0
    %3169 = vmatprep.subr.mxu0 0.0
    %3170 = vmatpush1.xpose.msra.mxu0 0.0
    %3171 = vmatprep.subr.mxu0 0.0
    %3172 = vmatpush1.xpose.msra.mxu0 0.0
    %3173 = vmatprep.subr.mxu0 0.0
    %3174 = vmatpush1.xpose.msra.mxu0 0.0
    %3175 = vmatprep.subr.mxu0 0.0
    %3176 = vmatpush1.xpose.msra.mxu0 0.0
    %3177 = vmatprep.subr.mxu0 0.0
    %3178 = vmatpush1.xpose.msra.mxu0 0.0
    %3179 = vmatprep.subr.mxu0 0.0
    %3180 = vmatpush1.xpose.msra.mxu0 0.0
    %3181 = vmatprep.subr.mxu0 0.0
    %3182 = vmatpush1.xpose.msra.mxu0 0.0
    %3183 = vmatprep.subr.mxu0 0.0
    %3184 = vmatpush1.xpose.msra.mxu0 0.0
    %3185 = vmatprep.subr.mxu0 0.0
    %3186 = vmatpush1.xpose.msra.mxu0 0.0
    %3187 = vmatprep.subr.mxu0 0.0
    %3188 = vmatpush1.xpose.msra.mxu0 0.0
    %3189 = vmatprep.subr.mxu0 0.0
    %3190 = vmatpush1.xpose.msra.mxu0 0.0
    %3191 = vmatprep.subr.mxu0 0.0
    %3192 = vmatpush1.xpose.msra.mxu0 0.0
    %3193 = vmatprep.subr.mxu0 0.0
    %3194 = vmatpush1.xpose.msra.mxu0 0.0
    %3195 = vmatprep.subr.mxu0 0.0
    %3196 = vmatpush1.xpose.msra.mxu0 0.0
    %3197 = vmatprep.subr.mxu0 0.0
    %3198 = vmatpush1.xpose.msra.mxu0 0.0
    %3199 = vmatprep.subr.mxu0 0.0
    %3200 = vmatpush1.xpose.msra.mxu0 0.0
    %3201 = vmatprep.subr.mxu0 0.0
    %3202 = vmatpush1.xpose.msra.mxu0 0.0
    %3203 = vmatprep.subr.mxu0 0.0
    %3204 = vmatpush1.xpose.msra.mxu0 0.0
    %3205 = vmatprep.subr.mxu0 0.0
    %3206 = vmatpush1.xpose.msra.mxu0 0.0
    %3207 = vmatprep.subr.mxu0 0.0
    %3208 = vmatpush1.xpose.msra.mxu0 0.0
    %3209 = vmatprep.subr.mxu0 0.0
    %3210 = vmatpush1.xpose.msra.mxu0 0.0
    %3211 = vmatprep.subr.mxu0 0.0
    %3212 = vmatpush1.xpose.msra.mxu0 0.0
    %3213 = vmatprep.subr.mxu0 0.0
    %3214 = vmatpush1.xpose.msra.mxu0 0.0
    %3215 = vmatprep.subr.mxu0 0.0
    %3216 = vmatpush1.xpose.msra.mxu0 0.0
    %3217 = vmatprep.subr.mxu0 0.0
    %3218 = vmatpush1.xpose.msra.mxu0 0.0
    %3219 = vmatprep.subr.mxu0 0.0
    %3220 = vmatpush1.xpose.msra.mxu0 0.0
    %3221 = vmatprep.subr.mxu0 0.0
    %3222 = vmatpush1.xpose.msra.mxu0 0.0
    %3223 = vmatprep.mubr.f32.mxu0 0.0
    %3224 = vmatmul.mubr.f32.gmra.mrb[0].mxu0 %v3155
    %v3225 = vpop.f32.mrb[0].mxu0
    %v3226 = vadd.f32 0.0, %v3225
    %v3227 = vpop.f32.mrb[0].mxu0
    %3228 = vdwg.mxu0
    %3229 = vrot.lane.b32.xlu0 %v2148, 104
    %v3230 = vpop.permute.xlu0 %3229
    %3231 = vrot.lane.b32.xlu0 %v2148, 72
    %v3232 = vpop.permute.xlu0 %3231
    %v3233 = vsel %vm308, %v3230, 0
    %v3235 = vsel %vm308, %v3232, 0
    %3237 = vmatprep.subr.mxu0 0.0
    %3238 = vmatpush1.xpose.msra.mxu0 %v3235
    %3239 = vmatprep.subr.mxu0 0.0
    %3240 = vmatpush1.xpose.msra.mxu0 0.0
    %3241 = vmatprep.subr.mxu0 0.0
    %3242 = vmatpush1.xpose.msra.mxu0 0.0
    %3243 = vmatprep.subr.mxu0 0.0
    %3244 = vmatpush1.xpose.msra.mxu0 0.0
    %3245 = vmatprep.subr.mxu0 0.0
    %3246 = vmatpush1.xpose.msra.mxu0 0.0
    %3247 = vmatprep.subr.mxu0 0.0
    %3248 = vmatpush1.xpose.msra.mxu0 0.0
    %3249 = vmatprep.subr.mxu0 0.0
    %3250 = vmatpush1.xpose.msra.mxu0 0.0
    %3251 = vmatprep.subr.mxu0 0.0
    %3252 = vmatpush1.xpose.msra.mxu0 0.0
    %3253 = vmatprep.subr.mxu0 0.0
    %3254 = vmatpush1.xpose.msra.mxu0 0.0
    %3255 = vmatprep.subr.mxu0 0.0
    %3256 = vmatpush1.xpose.msra.mxu0 0.0
    %3257 = vmatprep.subr.mxu0 0.0
    %3258 = vmatpush1.xpose.msra.mxu0 0.0
    %3259 = vmatprep.subr.mxu0 0.0
    %3260 = vmatpush1.xpose.msra.mxu0 0.0
    %3261 = vmatprep.subr.mxu0 0.0
    %3262 = vmatpush1.xpose.msra.mxu0 0.0
    %3263 = vmatprep.subr.mxu0 0.0
    %3264 = vmatpush1.xpose.msra.mxu0 0.0
    %3265 = vmatprep.subr.mxu0 0.0
    %3266 = vmatpush1.xpose.msra.mxu0 0.0
    %3267 = vmatprep.subr.mxu0 0.0
    %3268 = vmatpush1.xpose.msra.mxu0 0.0
    %3269 = vmatprep.subr.mxu0 0.0
    %3270 = vmatpush1.xpose.msra.mxu0 0.0
    %3271 = vmatprep.subr.mxu0 0.0
    %3272 = vmatpush1.xpose.msra.mxu0 0.0
    %3273 = vmatprep.subr.mxu0 0.0
    %3274 = vmatpush1.xpose.msra.mxu0 0.0
    %3275 = vmatprep.subr.mxu0 0.0
    %3276 = vmatpush1.xpose.msra.mxu0 0.0
    %3277 = vmatprep.subr.mxu0 0.0
    %3278 = vmatpush1.xpose.msra.mxu0 0.0
    %3279 = vmatprep.subr.mxu0 0.0
    %3280 = vmatpush1.xpose.msra.mxu0 0.0
    %3281 = vmatprep.subr.mxu0 0.0
    %3282 = vmatpush1.xpose.msra.mxu0 0.0
    %3283 = vmatprep.subr.mxu0 0.0
    %3284 = vmatpush1.xpose.msra.mxu0 0.0
    %3285 = vmatprep.subr.mxu0 0.0
    %3286 = vmatpush1.xpose.msra.mxu0 0.0
    %3287 = vmatprep.subr.mxu0 0.0
    %3288 = vmatpush1.xpose.msra.mxu0 0.0
    %3289 = vmatprep.subr.mxu0 0.0
    %3290 = vmatpush1.xpose.msra.mxu0 0.0
    %3291 = vmatprep.subr.mxu0 0.0
    %3292 = vmatpush1.xpose.msra.mxu0 0.0
    %3293 = vmatprep.subr.mxu0 0.0
    %3294 = vmatpush1.xpose.msra.mxu0 0.0
    %3295 = vmatprep.subr.mxu0 0.0
    %3296 = vmatpush1.xpose.msra.mxu0 0.0
    %3297 = vmatprep.subr.mxu0 0.0
    %3298 = vmatpush1.xpose.msra.mxu0 0.0
    %3299 = vmatprep.subr.mxu0 0.0
    %3300 = vmatpush1.xpose.msra.mxu0 0.0
    %3301 = vmatprep.mubr.f32.mxu0 0.0
    %3302 = vmatmul.mubr.f32.gmra.mrb[0].mxu0 %v3233
    %v3303 = vpop.f32.mrb[0].mxu0
    %v3304 = vadd.f32 0.0, %v3303
    %v3305 = vpop.f32.mrb[0].mxu0
    %3306 = vdwg.mxu0
    %v3307 = vmul.f32 %v3226, 0.35355338
    %v3308 = vmul.f32 %v3304, 0.35355338
    %v3309 = vadd.f32 %v3307, %v465
    %v3310 = vadd.f32 %v3308, %v469
    %v3311 = vsel %vm308, %v3309, -inf
    %3312 = vmax.xlane.f32.xlu0 %v3311
    %v3313 = vpop.xlane.xlu0 %3312
    %v3314 = vsel %vm308, %v3310, -inf
    %3315 = vmax.xlane.f32.xlu0 %v3314
    %v3316 = vpop.xlane.xlu0 %3315
    %v3317 = vsub.f32 %v3309, %v3313
    %v3318 = vsub.f32 %v3310, %v3316
    %v3319 = vmul.f32 %v3317, 1.442695
    %v3320 = vpow.pop %v3319
    %v3321 = vmul.f32 %v3318, 1.442695
    %v3322 = vpow.pop %v3321
    %v3323 = vsel %vm308, %v3320, 0.0
    %3324 = vadd.xlane.f32.xlu0 %v3323
    %v3325 = vpop.xlane.xlu0 %3324
    %v3326 = vsel %vm308, %v3322, 0.0
    %3327 = vadd.xlane.f32.xlu0 %v3326
    %v3328 = vpop.xlane.xlu0 %3327
    %v3329 = vrcp.pop %v3325
    %v3330 = vrcp.pop %v3328
    %v3331 = vmul.f32 %v3320, %v3329
    %v3332 = vmul.f32 %v3322, %v3330
    %3333 = vrot.lane.b32.xlu0 %v2143, 40
    %v3334 = vpop.permute.xlu0 %3333
    %v3337 = vsel %vm308, %v3331, 0
    %3339 = vmatprep.subr.mxu0 0.0
    %3340 = vmatpush1.msra.mxu0 %v3334
    %3341 = vmatprep.subr.mxu0 0.0
    %3342 = vmatpush1.msra.mxu0 0.0
    %3343 = vmatprep.subr.mxu0 0.0
    %3344 = vmatpush1.msra.mxu0 0.0
    %3345 = vmatprep.subr.mxu0 0.0
    %3346 = vmatpush1.msra.mxu0 0.0
    %3347 = vmatprep.subr.mxu0 0.0
    %3348 = vmatpush1.msra.mxu0 0.0
    %3349 = vmatprep.subr.mxu0 0.0
    %3350 = vmatpush1.msra.mxu0 0.0
    %3351 = vmatprep.subr.mxu0 0.0
    %3352 = vmatpush1.msra.mxu0 0.0
    %3353 = vmatprep.subr.mxu0 0.0
    %3354 = vmatpush1.msra.mxu0 0.0
    %3355 = vmatprep.subr.mxu0 0.0
    %3356 = vmatpush1.msra.mxu0 0.0
    %3357 = vmatprep.subr.mxu0 0.0
    %3358 = vmatpush1.msra.mxu0 0.0
    %3359 = vmatprep.subr.mxu0 0.0
    %3360 = vmatpush1.msra.mxu0 0.0
    %3361 = vmatprep.subr.mxu0 0.0
    %3362 = vmatpush1.msra.mxu0 0.0
    %3363 = vmatprep.subr.mxu0 0.0
    %3364 = vmatpush1.msra.mxu0 0.0
    %3365 = vmatprep.subr.mxu0 0.0
    %3366 = vmatpush1.msra.mxu0 0.0
    %3367 = vmatprep.subr.mxu0 0.0
    %3368 = vmatpush1.msra.mxu0 0.0
    %3369 = vmatprep.subr.mxu0 0.0
    %3370 = vmatpush1.msra.mxu0 0.0
    %3371 = vmatprep.subr.mxu0 0.0
    %3372 = vmatpush1.msra.mxu0 0.0
    %3373 = vmatprep.subr.mxu0 0.0
    %3374 = vmatpush1.msra.mxu0 0.0
    %3375 = vmatprep.subr.mxu0 0.0
    %3376 = vmatpush1.msra.mxu0 0.0
    %3377 = vmatprep.subr.mxu0 0.0
    %3378 = vmatpush1.msra.mxu0 0.0
    %3379 = vmatprep.subr.mxu0 0.0
    %3380 = vmatpush1.msra.mxu0 0.0
    %3381 = vmatprep.subr.mxu0 0.0
    %3382 = vmatpush1.msra.mxu0 0.0
    %3383 = vmatprep.subr.mxu0 0.0
    %3384 = vmatpush1.msra.mxu0 0.0
    %3385 = vmatprep.subr.mxu0 0.0
    %3386 = vmatpush1.msra.mxu0 0.0
    %3387 = vmatprep.subr.mxu0 0.0
    %3388 = vmatpush1.msra.mxu0 0.0
    %3389 = vmatprep.subr.mxu0 0.0
    %3390 = vmatpush1.msra.mxu0 0.0
    %3391 = vmatprep.subr.mxu0 0.0
    %3392 = vmatpush1.msra.mxu0 0.0
    %3393 = vmatprep.subr.mxu0 0.0
    %3394 = vmatpush1.msra.mxu0 0.0
    %3395 = vmatprep.subr.mxu0 0.0
    %3396 = vmatpush1.msra.mxu0 0.0
    %3397 = vmatprep.subr.mxu0 0.0
    %3398 = vmatpush1.msra.mxu0 0.0
    %3399 = vmatprep.subr.mxu0 0.0
    %3400 = vmatpush1.msra.mxu0 0.0
    %3401 = vmatprep.subr.mxu0 0.0
    %3402 = vmatpush1.msra.mxu0 0.0
    %3403 = vmatprep.mubr.f32.mxu0 0.0
    %3404 = vmatmul.mubr.f32.gmra.mrb[0].mxu0 %v3337
    %v3405 = vpop.f32.mrb[0].mxu0
    %v3406 = vadd.f32 0.0, %v3405
    %v3407 = vpop.f32.mrb[0].mxu0
    %3408 = vdwg.mxu0
    %3409 = vrot.lane.b32.xlu0 %v2148, 40
    %v3410 = vpop.permute.xlu0 %3409
    %v3413 = vsel %vm308, %v3332, 0
    %3415 = vmatprep.subr.mxu0 0.0
    %3416 = vmatpush1.msra.mxu0 %v3410
    %3417 = vmatprep.subr.mxu0 0.0
    %3418 = vmatpush1.msra.mxu0 0.0
    %3419 = vmatprep.subr.mxu0 0.0
    %3420 = vmatpush1.msra.mxu0 0.0
    %3421 = vmatprep.subr.mxu0 0.0
    %3422 = vmatpush1.msra.mxu0 0.0
    %3423 = vmatprep.subr.mxu0 0.0
    %3424 = vmatpush1.msra.mxu0 0.0
    %3425 = vmatprep.subr.mxu0 0.0
    %3426 = vmatpush1.msra.mxu0 0.0
    %3427 = vmatprep.subr.mxu0 0.0
    %3428 = vmatpush1.msra.mxu0 0.0
    %3429 = vmatprep.subr.mxu0 0.0
    %3430 = vmatpush1.msra.mxu0 0.0
    %3431 = vmatprep.subr.mxu0 0.0
    %3432 = vmatpush1.msra.mxu0 0.0
    %3433 = vmatprep.subr.mxu0 0.0
    %3434 = vmatpush1.msra.mxu0 0.0
    %3435 = vmatprep.subr.mxu0 0.0
    %3436 = vmatpush1.msra.mxu0 0.0
    %3437 = vmatprep.subr.mxu0 0.0
    %3438 = vmatpush1.msra.mxu0 0.0
    %3439 = vmatprep.subr.mxu0 0.0
    %3440 = vmatpush1.msra.mxu0 0.0
    %3441 = vmatprep.subr.mxu0 0.0
    %3442 = vmatpush1.msra.mxu0 0.0
    %3443 = vmatprep.subr.mxu0 0.0
    %3444 = vmatpush1.msra.mxu0 0.0
    %3445 = vmatprep.subr.mxu0 0.0
    %3446 = vmatpush1.msra.mxu0 0.0
    %3447 = vmatprep.subr.mxu0 0.0
    %3448 = vmatpush1.msra.mxu0 0.0
    %3449 = vmatprep.subr.mxu0 0.0
    %3450 = vmatpush1.msra.mxu0 0.0
    %3451 = vmatprep.subr.mxu0 0.0
    %3452 = vmatpush1.msra.mxu0 0.0
    %3453 = vmatprep.subr.mxu0 0.0
    %3454 = vmatpush1.msra.mxu0 0.0
    %3455 = vmatprep.subr.mxu0 0.0
    %3456 = vmatpush1.msra.mxu0 0.0
    %3457 = vmatprep.subr.mxu0 0.0
    %3458 = vmatpush1.msra.mxu0 0.0
    %3459 = vmatprep.subr.mxu0 0.0
    %3460 = vmatpush1.msra.mxu0 0.0
    %3461 = vmatprep.subr.mxu0 0.0
    %3462 = vmatpush1.msra.mxu0 0.0
    %3463 = vmatprep.subr.mxu0 0.0
    %3464 = vmatpush1.msra.mxu0 0.0
    %3465 = vmatprep.subr.mxu0 0.0
    %3466 = vmatpush1.msra.mxu0 0.0
    %3467 = vmatprep.subr.mxu0 0.0
    %3468 = vmatpush1.msra.mxu0 0.0
    %3469 = vmatprep.subr.mxu0 0.0
    %3470 = vmatpush1.msra.mxu0 0.0
    %3471 = vmatprep.subr.mxu0 0.0
    %3472 = vmatpush1.msra.mxu0 0.0
    %3473 = vmatprep.subr.mxu0 0.0
    %3474 = vmatpush1.msra.mxu0 0.0
    %3475 = vmatprep.subr.mxu0 0.0
    %3476 = vmatpush1.msra.mxu0 0.0
    %3477 = vmatprep.subr.mxu0 0.0
    %3478 = vmatpush1.msra.mxu0 0.0
    %3479 = vmatprep.mubr.f32.mxu0 0.0
    %3480 = vmatmul.mubr.f32.gmra.mrb[0].mxu0 %v3413
    %v3481 = vpop.f32.mrb[0].mxu0
    %v3482 = vadd.f32 0.0, %v3481
    %v3483 = vpop.f32.mrb[0].mxu0
    %3484 = vdwg.mxu0
    %3487 = vrot.lane.b32.xlu0 %v2738, 8
    %v3488 = vpop.permute.xlu0 %3487
    %3489 = vrot.lane.b32.xlu0 %v2814, 8
    %v3490 = vpop.permute.xlu0 %3489
    %3495 = vrot.lane.b32.xlu0 %v3072, 16
    %v3496 = vpop.permute.xlu0 %3495
    %3497 = vrot.lane.b32.xlu0 %v3148, 16
    %v3498 = vpop.permute.xlu0 %3497
    %3503 = vrot.lane.b32.xlu0 %v3406, 24
    %v3504 = vpop.permute.xlu0 %3503
    %3505 = vrot.lane.b32.xlu0 %v3482, 24
    %v3506 = vpop.permute.xlu0 %3505
    %v3509 = vsel %vm308, %v2404, %v3488
    %v3510 = vsel %vm308, %v2480, %v3490
    %v3511 = vsel %vm1676, %v3509, %v3496
    %v3512 = vsel %vm1676, %v3510, %v3498
    %v3513 = vsel %vm1679, %v3511, %v3504
    %v3514 = vsel %vm1679, %v3512, %v3506
    %v3515 = vld [vmem:[#allocation2 + $0x148] sm:$0xff]
    %v3516 = vld [vmem:[#allocation2 + $0x150] sm:$0xff]
    %v3517 = vld [vmem:[#allocation2 + $0x158] sm:$0xff]
    %v3518 = vld [vmem:[#allocation2 + $0x160] sm:$0xff]
    %v3520 = vsel %vm150, %v3513, 0
    %v3523 = vsel %vm150, %v3514, 0
    %3525 = vmatprep.subr.mxu0 0.0
    %3526 = vmatpush1.msra.mxu0 %v3515
    %3527 = vmatprep.subr.mxu0 0.0
    %3528 = vmatpush1.msra.mxu0 %v3516
    %3529 = vmatprep.subr.mxu0 0.0
    %3530 = vmatpush1.msra.mxu0 %v3517
    %3531 = vmatprep.subr.mxu0 0.0
    %3532 = vmatpush1.msra.mxu0 %v3518
    %3533 = vmatprep.subr.mxu0 0.0
    %3534 = vmatpush1.msra.mxu0 0.0
    %3535 = vmatprep.subr.mxu0 0.0
    %3536 = vmatpush1.msra.mxu0 0.0
    %3537 = vmatprep.subr.mxu0 0.0
    %3538 = vmatpush1.msra.mxu0 0.0
    %3539 = vmatprep.subr.mxu0 0.0
    %3540 = vmatpush1.msra.mxu0 0.0
    %3541 = vmatprep.subr.mxu0 0.0
    %3542 = vmatpush1.msra.mxu0 0.0
    %3543 = vmatprep.subr.mxu0 0.0
    %3544 = vmatpush1.msra.mxu0 0.0
    %3545 = vmatprep.subr.mxu0 0.0
    %3546 = vmatpush1.msra.mxu0 0.0
    %3547 = vmatprep.subr.mxu0 0.0
    %3548 = vmatpush1.msra.mxu0 0.0
    %3549 = vmatprep.subr.mxu0 0.0
    %3550 = vmatpush1.msra.mxu0 0.0
    %3551 = vmatprep.subr.mxu0 0.0
    %3552 = vmatpush1.msra.mxu0 0.0
    %3553 = vmatprep.subr.mxu0 0.0
    %3554 = vmatpush1.msra.mxu0 0.0
    %3555 = vmatprep.subr.mxu0 0.0
    %3556 = vmatpush1.msra.mxu0 0.0
    %3557 = vmatprep.subr.mxu0 0.0
    %3558 = vmatpush1.msra.mxu0 0.0
    %3559 = vmatprep.subr.mxu0 0.0
    %3560 = vmatpush1.msra.mxu0 0.0
    %3561 = vmatprep.subr.mxu0 0.0
    %3562 = vmatpush1.msra.mxu0 0.0
    %3563 = vmatprep.subr.mxu0 0.0
    %3564 = vmatpush1.msra.mxu0 0.0
    %3565 = vmatprep.subr.mxu0 0.0
    %3566 = vmatpush1.msra.mxu0 0.0
    %3567 = vmatprep.subr.mxu0 0.0
    %3568 = vmatpush1.msra.mxu0 0.0
    %3569 = vmatprep.subr.mxu0 0.0
    %3570 = vmatpush1.msra.mxu0 0.0
    %3571 = vmatprep.subr.mxu0 0.0
    %3572 = vmatpush1.msra.mxu0 0.0
    %3573 = vmatprep.subr.mxu0 0.0
    %3574 = vmatpush1.msra.mxu0 0.0
    %3575 = vmatprep.subr.mxu0 0.0
    %3576 = vmatpush1.msra.mxu0 0.0
    %3577 = vmatprep.subr.mxu0 0.0
    %3578 = vmatpush1.msra.mxu0 0.0
    %3579 = vmatprep.subr.mxu0 0.0
    %3580 = vmatpush1.msra.mxu0 0.0
    %3581 = vmatprep.subr.mxu0 0.0
    %3582 = vmatpush1.msra.mxu0 0.0
    %3583 = vmatprep.subr.mxu0 0.0
    %3584 = vmatpush1.msra.mxu0 0.0
    %3585 = vmatprep.subr.mxu0 0.0
    %3586 = vmatpush1.msra.mxu0 0.0
    %3587 = vmatprep.subr.mxu0 0.0
    %3588 = vmatpush1.msra.mxu0 0.0
    %3589 = vmatprep.mubr.f32.mxu0 0.0
    %3590 = vmatmul.mubr.f32.gmra.mrb[0].mxu0 %v3520
    %v3591 = vpop.f32.mrb[0].mxu0
    %v3592 = vadd.f32 0.0, %v3591
    %v3593 = vpop.f32.mrb[0].mxu0
    %3594 = vmatprep.mubr.f32.mxu0 0.0
    %3595 = vmatmul.mubr.f32.gmra.mrb[0].mxu0 %v3523
    %v3596 = vpop.f32.mrb[0].mxu0
    %v3597 = vadd.f32 0.0, %v3596
    %v3598 = vpop.f32.mrb[0].mxu0
    %3599 = vdwg.mxu0
    %v3600 = vadd.f32 %v2059, %v3592
    %v3601 = vadd.f32 %v2060, %v3597
    %v3602 = vld [vmem:[%s3 + $0xc] sm:$0x1]
    %v3603 = vlaneseq
    %v3604 = vshrl.u32 %v3603, 7
    %v3605 = vsub.s32 0, %v3604
    %v3606 = vrot.slane %v3602, %v3605
    %v3607 = vadd.f32 %v3600, %v3606
    %v3608 = vadd.f32 %v3601, %v3606
    %v3609 = vld [vmem:[%s3 + $0xd] sm:$0x1]
    %v3610 = vld [vmem:[%s3 + $0xe] sm:$0x1]
    %v3611 = vsel %vm150, %v3607, 0.0
    %3612 = vadd.xlane.f32.xlu0 %v3611
    %v3613 = vpop.xlane.xlu0 %3612
    %v3614 = vsel %vm150, %v3608, 0.0
    %3615 = vadd.xlane.f32.xlu0 %v3614
    %v3616 = vpop.xlane.xlu0 %3615
    %v3617 = vmul.f32 %v3613, %v157
    %v3618 = vmul.f32 %v3616, %v157
    %v3619 = vsub.f32 %v3607, %v3617
    %v3620 = vsub.f32 %v3608, %v3618
    %v3621 = vmul.f32 %v3619, %v3619
    %v3622 = vmul.f32 %v3620, %v3620
    %v3623 = vsel %vm150, %v3621, 0.0
    %3624 = vadd.xlane.f32.xlu0 %v3623
    %v3625 = vpop.xlane.xlu0 %3624
    %v3626 = vsel %vm150, %v3622, 0.0
    %3627 = vadd.xlane.f32.xlu0 %v3626
    %v3628 = vpop.xlane.xlu0 %3627
    %v3629 = vmul.f32 %v3625, %v157
    %v3630 = vmul.f32 %v3628, %v157
    %v3631 = vadd.f32 %v3629, 1e-12
    %v3632 = vadd.f32 %v3630, 1e-12
    %v3633 = vrsqrt.pop %v3631
    %v3634 = vrsqrt.pop %v3632
    %v3635 = vmul.f32 %v3619, %v3633
    %v3636 = vmul.f32 %v3620, %v3634
    %v3637 = vlaneseq
    %v3638 = vshrl.u32 %v3637, 7
    %v3639 = vsub.s32 0, %v3638
    %v3640 = vrot.slane %v3609, %v3639
    %v3641 = vmul.f32 %v3635, %v3640
    %v3642 = vmul.f32 %v3636, %v3640
    %v3643 = vlaneseq
    %v3644 = vshrl.u32 %v3643, 7
    %v3645 = vsub.s32 0, %v3644
    %v3646 = vrot.slane %v3610, %v3645
    %v3647 = vadd.f32 %v3641, %v3646
    %v3648 = vadd.f32 %v3642, %v3646
    %v3649 = vld [vmem:[#allocation2 + $0x168] sm:$0xff]
    %v3650 = vld [vmem:[#allocation2 + $0x170] sm:$0xff]
    %v3651 = vld [vmem:[#allocation2 + $0x178] sm:$0xff]
    %v3652 = vld [vmem:[#allocation2 + $0x180] sm:$0xff]
    %v3653 = vld [vmem:[%s3 + $0xf] sm:$0x1]
    %v3654 = vlaneseq
    %v3655 = vshrl.u32 %v3654, 7
    %v3656 = vsub.s32 0, %v3655
    %v3657 = vrot.slane %v3653, %v3656
    %v3659 = vsel %vm150, %v3647, 0
    %v3662 = vsel %vm150, %v3648, 0
    %3664 = vmatprep.subr.mxu0 0.0
    %3665 = vmatpush1.msra.mxu0 %v3649
    %3666 = vmatprep.subr.mxu0 0.0
    %3667 = vmatpush1.msra.mxu0 %v3650
    %3668 = vmatprep.subr.mxu0 0.0
    %3669 = vmatpush1.msra.mxu0 %v3651
    %3670 = vmatprep.subr.mxu0 0.0
    %3671 = vmatpush1.msra.mxu0 %v3652
    %3672 = vmatprep.subr.mxu0 0.0
    %3673 = vmatpush1.msra.mxu0 0.0
    %3674 = vmatprep.subr.mxu0 0.0
    %3675 = vmatpush1.msra.mxu0 0.0
    %3676 = vmatprep.subr.mxu0 0.0
    %3677 = vmatpush1.msra.mxu0 0.0
    %3678 = vmatprep.subr.mxu0 0.0
    %3679 = vmatpush1.msra.mxu0 0.0
    %3680 = vmatprep.subr.mxu0 0.0
    %3681 = vmatpush1.msra.mxu0 0.0
    %3682 = vmatprep.subr.mxu0 0.0
    %3683 = vmatpush1.msra.mxu0 0.0
    %3684 = vmatprep.subr.mxu0 0.0
    %3685 = vmatpush1.msra.mxu0 0.0
    %3686 = vmatprep.subr.mxu0 0.0
    %3687 = vmatpush1.msra.mxu0 0.0
    %3688 = vmatprep.subr.mxu0 0.0
    %3689 = vmatpush1.msra.mxu0 0.0
    %3690 = vmatprep.subr.mxu0 0.0
    %3691 = vmatpush1.msra.mxu0 0.0
    %3692 = vmatprep.subr.mxu0 0.0
    %3693 = vmatpush1.msra.mxu0 0.0
    %3694 = vmatprep.subr.mxu0 0.0
    %3695 = vmatpush1.msra.mxu0 0.0
    %3696 = vmatprep.subr.mxu0 0.0
    %3697 = vmatpush1.msra.mxu0 0.0
    %3698 = vmatprep.subr.mxu0 0.0
    %3699 = vmatpush1.msra.mxu0 0.0
    %3700 = vmatprep.subr.mxu0 0.0
    %3701 = vmatpush1.msra.mxu0 0.0
    %3702 = vmatprep.subr.mxu0 0.0
    %3703 = vmatpush1.msra.mxu0 0.0
    %3704 = vmatprep.subr.mxu0 0.0
    %3705 = vmatpush1.msra.mxu0 0.0
    %3706 = vmatprep.subr.mxu0 0.0
    %3707 = vmatpush1.msra.mxu0 0.0
    %3708 = vmatprep.subr.mxu0 0.0
    %3709 = vmatpush1.msra.mxu0 0.0
    %3710 = vmatprep.subr.mxu0 0.0
    %3711 = vmatpush1.msra.mxu0 0.0
    %3712 = vmatprep.subr.mxu0 0.0
    %3713 = vmatpush1.msra.mxu0 0.0
    %3714 = vmatprep.subr.mxu0 0.0
    %3715 = vmatpush1.msra.mxu0 0.0
    %3716 = vmatprep.subr.mxu0 0.0
    %3717 = vmatpush1.msra.mxu0 0.0
    %3718 = vmatprep.subr.mxu0 0.0
    %3719 = vmatpush1.msra.mxu0 0.0
    %3720 = vmatprep.subr.mxu0 0.0
    %3721 = vmatpush1.msra.mxu0 0.0
    %3722 = vmatprep.subr.mxu0 0.0
    %3723 = vmatpush1.msra.mxu0 0.0
    %3724 = vmatprep.subr.mxu0 0.0
    %3725 = vmatpush1.msra.mxu0 0.0
    %3726 = vmatprep.subr.mxu0 0.0
    %3727 = vmatpush1.msra.mxu0 0.0
    %3728 = vmatprep.mubr.f32.mxu0 0.0
    %3729 = vmatmul.mubr.f32.gmra.mrb[0].mxu0 %v3659
    %v3730 = vpop.f32.mrb[0].mxu0
    %v3731 = vadd.f32 %v3657, %v3730
    %v3732 = vpop.f32.mrb[0].mxu0
    %3733 = vmatprep.mubr.f32.mxu0 0.0
    %3734 = vmatmul.mubr.f32.gmra.mrb[0].mxu0 %v3662
    %v3735 = vpop.f32.mrb[0].mxu0
    %v3736 = vadd.f32 %v3657, %v3735
    %v3737 = vpop.f32.mrb[0].mxu0
    %3738 = vdwg.mxu0
    %v3739 = vmul.f32 %v3731, %v3731
    %v3740 = vmul.f32 %v3736, %v3736
    %v3741 = vmul.f32 %v3731, %v3739
    %v3742 = vmul.f32 %v3736, %v3740
    %v3743 = vmul.f32 %v3741, 0.044715
    %v3744 = vmul.f32 %v3742, 0.044715
    %v3745 = vadd.f32 %v3731, %v3743
    %v3746 = vadd.f32 %v3736, %v3744
    %v3747 = vmul.f32 %v3745, 0.7978846
    %v3748 = vmul.f32 %v3746, 0.7978846
    %v3749 = vtanh.pop %v3747
    %v3750 = vtanh.pop %v3748
    %v3751 = vadd.f32 %v3749, 1.0
    %v3752 = vadd.f32 %v3750, 1.0
    %v3753 = vmul.f32 %v3751, 0.5
    %v3754 = vmul.f32 %v3752, 0.5
    %v3755 = vmul.f32 %v3731, %v3753
    %v3756 = vmul.f32 %v3736, %v3754
    %v3757 = vld [vmem:[#allocation2 + $0x188] sm:$0xff]
    %v3758 = vld [vmem:[#allocation2 + $0x190] sm:$0xff]
    %v3759 = vld [vmem:[#allocation2 + $0x198] sm:$0xff]
    %v3760 = vld [vmem:[#allocation2 + $0x1a0] sm:$0xff]
    %v3761 = vld [vmem:[#allocation2 + $0x1a8] sm:$0xff]
    %v3762 = vld [vmem:[#allocation2 + $0x1b0] sm:$0xff]
    %v3763 = vld [vmem:[#allocation2 + $0x1b8] sm:$0xff]
    %v3764 = vld [vmem:[#allocation2 + $0x1c0] sm:$0xff]
    %v3765 = vld [vmem:[%s3 + $0x10] sm:$0x1]
    %v3766 = vlaneseq
    %v3767 = vshrl.u32 %v3766, 7
    %v3768 = vsub.s32 0, %v3767
    %v3769 = vrot.slane %v3765, %v3768
    %v3771 = vsel %vm1937, %v3755, 0
    %v3774 = vsel %vm1937, %v3756, 0
    %3776 = vmatprep.subr.mxu0 0.0
    %3777 = vmatpush1.msra.mxu0 %v3757
    %3778 = vmatprep.subr.mxu0 0.0
    %3779 = vmatpush1.msra.mxu0 %v3758
    %3780 = vmatprep.subr.mxu0 0.0
    %3781 = vmatpush1.msra.mxu0 %v3759
    %3782 = vmatprep.subr.mxu0 0.0
    %3783 = vmatpush1.msra.mxu0 %v3760
    %3784 = vmatprep.subr.mxu0 0.0
    %3785 = vmatpush1.msra.mxu0 %v3761
    %3786 = vmatprep.subr.mxu0 0.0
    %3787 = vmatpush1.msra.mxu0 %v3762
    %3788 = vmatprep.subr.mxu0 0.0
    %3789 = vmatpush1.msra.mxu0 %v3763
    %3790 = vmatprep.subr.mxu0 0.0
    %3791 = vmatpush1.msra.mxu0 %v3764
    %3792 = vmatprep.subr.mxu0 0.0
    %3793 = vmatpush1.msra.mxu0 0.0
    %3794 = vmatprep.subr.mxu0 0.0
    %3795 = vmatpush1.msra.mxu0 0.0
    %3796 = vmatprep.subr.mxu0 0.0
    %3797 = vmatpush1.msra.mxu0 0.0
    %3798 = vmatprep.subr.mxu0 0.0
    %3799 = vmatpush1.msra.mxu0 0.0
    %3800 = vmatprep.subr.mxu0 0.0
    %3801 = vmatpush1.msra.mxu0 0.0
    %3802 = vmatprep.subr.mxu0 0.0
    %3803 = vmatpush1.msra.mxu0 0.0
    %3804 = vmatprep.subr.mxu0 0.0
    %3805 = vmatpush1.msra.mxu0 0.0
    %3806 = vmatprep.subr.mxu0 0.0
    %3807 = vmatpush1.msra.mxu0 0.0
    %3808 = vmatprep.subr.mxu0 0.0
    %3809 = vmatpush1.msra.mxu0 0.0
    %3810 = vmatprep.subr.mxu0 0.0
    %3811 = vmatpush1.msra.mxu0 0.0
    %3812 = vmatprep.subr.mxu0 0.0
    %3813 = vmatpush1.msra.mxu0 0.0
    %3814 = vmatprep.subr.mxu0 0.0
    %3815 = vmatpush1.msra.mxu0 0.0
    %3816 = vmatprep.subr.mxu0 0.0
    %3817 = vmatpush1.msra.mxu0 0.0
    %3818 = vmatprep.subr.mxu0 0.0
    %3819 = vmatpush1.msra.mxu0 0.0
    %3820 = vmatprep.subr.mxu0 0.0
    %3821 = vmatpush1.msra.mxu0 0.0
    %3822 = vmatprep.subr.mxu0 0.0
    %3823 = vmatpush1.msra.mxu0 0.0
    %3824 = vmatprep.subr.mxu0 0.0
    %3825 = vmatpush1.msra.mxu0 0.0
    %3826 = vmatprep.subr.mxu0 0.0
    %3827 = vmatpush1.msra.mxu0 0.0
    %3828 = vmatprep.subr.mxu0 0.0
    %3829 = vmatpush1.msra.mxu0 0.0
    %3830 = vmatprep.subr.mxu0 0.0
    %3831 = vmatpush1.msra.mxu0 0.0
    %3832 = vmatprep.subr.mxu0 0.0
    %3833 = vmatpush1.msra.mxu0 0.0
    %3834 = vmatprep.subr.mxu0 0.0
    %3835 = vmatpush1.msra.mxu0 0.0
    %3836 = vmatprep.subr.mxu0 0.0
    %3837 = vmatpush1.msra.mxu0 0.0
    %3838 = vmatprep.subr.mxu0 0.0
    %3839 = vmatpush1.msra.mxu0 0.0
    %3840 = vmatprep.mubr.f32.mxu0 0.0
    %3841 = vmatmul.mubr.f32.gmra.mrb[0].mxu0 %v3771
    %v3842 = vpop.f32.mrb[0].mxu0
    %v3843 = vadd.f32 %v3769, %v3842
    %v3844 = vpop.f32.mrb[0].mxu0
    %3845 = vmatprep.mubr.f32.mxu0 0.0
    %3846 = vmatmul.mubr.f32.gmra.mrb[0].mxu0 %v3774
    %v3847 = vpop.f32.mrb[0].mxu0
    %v3848 = vadd.f32 %v3769, %v3847
    %v3849 = vpop.f32.mrb[0].mxu0
    %3850 = vdwg.mxu0
    %v3851 = vadd.f32 %v3647, %v3843
    %v3852 = vadd.f32 %v3648, %v3848
    %v3853 = vld [vmem:[%s3 + $0x11] sm:$0x1]
    %v3854 = vld [vmem:[%s3 + $0x12] sm:$0x1]
    %v3855 = vsel %vm150, %v3851, 0.0
    %3856 = vadd.xlane.f32.xlu0 %v3855
    %v3857 = vpop.xlane.xlu0 %3856
    %v3858 = vsel %vm150, %v3852, 0.0
    %3859 = vadd.xlane.f32.xlu0 %v3858
    %v3860 = vpop.xlane.xlu0 %3859
    %v3861 = vmul.f32 %v3857, %v157
    %v3862 = vmul.f32 %v3860, %v157
    %v3863 = vsub.f32 %v3851, %v3861
    %v3864 = vsub.f32 %v3852, %v3862
    %v3865 = vmul.f32 %v3863, %v3863
    %v3866 = vmul.f32 %v3864, %v3864
    %v3867 = vsel %vm150, %v3865, 0.0
    %3868 = vadd.xlane.f32.xlu0 %v3867
    %v3869 = vpop.xlane.xlu0 %3868
    %v3870 = vsel %vm150, %v3866, 0.0
    %3871 = vadd.xlane.f32.xlu0 %v3870
    %v3872 = vpop.xlane.xlu0 %3871
    %v3873 = vmul.f32 %v3869, %v157
    %v3874 = vmul.f32 %v3872, %v157
    %v3875 = vadd.f32 %v3873, 1e-12
    %v3876 = vadd.f32 %v3874, 1e-12
    %v3877 = vrsqrt.pop %v3875
    %v3878 = vrsqrt.pop %v3876
    %v3879 = vmul.f32 %v3863, %v3877
    %v3880 = vmul.f32 %v3864, %v3878
    %v3881 = vlaneseq
    %v3882 = vshrl.u32 %v3881, 7
    %v3883 = vsub.s32 0, %v3882
    %v3884 = vrot.slane %v3853, %v3883
    %v3885 = vmul.f32 %v3879, %v3884
    %v3886 = vmul.f32 %v3880, %v3884
    %v3887 = vlaneseq
    %v3888 = vshrl.u32 %v3887, 7
    %v3889 = vsub.s32 0, %v3888
    %v3890 = vrot.slane %v3854, %v3889
    %v3891 = vadd.f32 %v3885, %v3890
    %v3892 = vadd.f32 %v3886, %v3890
    %v3893 = vld [vmem:[#allocation2 + $0x1c8] sm:$0xff]
    %v3894 = vld [vmem:[#allocation2 + $0x1d0] sm:$0xff]
    %v3895 = vld [vmem:[#allocation2 + $0x1d8] sm:$0xff]
    %v3896 = vld [vmem:[#allocation2 + $0x1e0] sm:$0xff]
    %v3897 = vld [vmem:[%s3 + $0x13] sm:$0x1]
    %v3898 = vlaneseq
    %v3899 = vshrl.u32 %v3898, 7
    %v3900 = vsub.s32 0, %v3899
    %v3901 = vrot.slane %v3897, %v3900
    %v3903 = vsel %vm150, %v3891, 0
    %v3906 = vsel %vm150, %v3892, 0
    %3908 = vmatprep.subr.mxu0 0.0
    %3909 = vmatpush1.msra.mxu0 %v3893
    %3910 = vmatprep.subr.mxu0 0.0
    %3911 = vmatpush1.msra.mxu0 %v3894
    %3912 = vmatprep.subr.mxu0 0.0
    %3913 = vmatpush1.msra.mxu0 %v3895
    %3914 = vmatprep.subr.mxu0 0.0
    %3915 = vmatpush1.msra.mxu0 %v3896
    %3916 = vmatprep.subr.mxu0 0.0
    %3917 = vmatpush1.msra.mxu0 0.0
    %3918 = vmatprep.subr.mxu0 0.0
    %3919 = vmatpush1.msra.mxu0 0.0
    %3920 = vmatprep.subr.mxu0 0.0
    %3921 = vmatpush1.msra.mxu0 0.0
    %3922 = vmatprep.subr.mxu0 0.0
    %3923 = vmatpush1.msra.mxu0 0.0
    %3924 = vmatprep.subr.mxu0 0.0
    %3925 = vmatpush1.msra.mxu0 0.0
    %3926 = vmatprep.subr.mxu0 0.0
    %3927 = vmatpush1.msra.mxu0 0.0
    %3928 = vmatprep.subr.mxu0 0.0
    %3929 = vmatpush1.msra.mxu0 0.0
    %3930 = vmatprep.subr.mxu0 0.0
    %3931 = vmatpush1.msra.mxu0 0.0
    %3932 = vmatprep.subr.mxu0 0.0
    %3933 = vmatpush1.msra.mxu0 0.0
    %3934 = vmatprep.subr.mxu0 0.0
    %3935 = vmatpush1.msra.mxu0 0.0
    %3936 = vmatprep.subr.mxu0 0.0
    %3937 = vmatpush1.msra.mxu0 0.0
    %3938 = vmatprep.subr.mxu0 0.0
    %3939 = vmatpush1.msra.mxu0 0.0
    %3940 = vmatprep.subr.mxu0 0.0
    %3941 = vmatpush1.msra.mxu0 0.0
    %3942 = vmatprep.subr.mxu0 0.0
    %3943 = vmatpush1.msra.mxu0 0.0
    %3944 = vmatprep.subr.mxu0 0.0
    %3945 = vmatpush1.msra.mxu0 0.0
    %3946 = vmatprep.subr.mxu0 0.0
    %3947 = vmatpush1.msra.mxu0 0.0
    %3948 = vmatprep.subr.mxu0 0.0
    %3949 = vmatpush1.msra.mxu0 0.0
    %3950 = vmatprep.subr.mxu0 0.0
    %3951 = vmatpush1.msra.mxu0 0.0
    %3952 = vmatprep.subr.mxu0 0.0
    %3953 = vmatpush1.msra.mxu0 0.0
    %3954 = vmatprep.subr.mxu0 0.0
    %3955 = vmatpush1.msra.mxu0 0.0
    %3956 = vmatprep.subr.mxu0 0.0
    %3957 = vmatpush1.msra.mxu0 0.0
    %3958 = vmatprep.subr.mxu0 0.0
    %3959 = vmatpush1.msra.mxu0 0.0
    %3960 = vmatprep.subr.mxu0 0.0
    %3961 = vmatpush1.msra.mxu0 0.0
    %3962 = vmatprep.subr.mxu0 0.0
    %3963 = vmatpush1.msra.mxu0 0.0
    %3964 = vmatprep.subr.mxu0 0.0
    %3965 = vmatpush1.msra.mxu0 0.0
    %3966 = vmatprep.subr.mxu0 0.0
    %3967 = vmatpush1.msra.mxu0 0.0
    %3968 = vmatprep.subr.mxu0 0.0
    %3969 = vmatpush1.msra.mxu0 0.0
    %3970 = vmatprep.subr.mxu0 0.0
    %3971 = vmatpush1.msra.mxu0 0.0
    %3972 = vmatprep.mubr.f32.mxu0 0.0
    %3973 = vmatmul.mubr.f32.gmra.mrb[0].mxu0 %v3903
    %v3974 = vpop.f32.mrb[0].mxu0
    %v3975 = vadd.f32 %v3901, %v3974
    %v3976 = vpop.f32.mrb[0].mxu0
    %3977 = vmatprep.mubr.f32.mxu0 0.0
    %3978 = vmatmul.mubr.f32.gmra.mrb[0].mxu0 %v3906
    %v3979 = vpop.f32.mrb[0].mxu0
    %v3980 = vadd.f32 %v3901, %v3979
    %v3981 = vpop.f32.mrb[0].mxu0
    %3982 = vdwg.mxu0
    %3983 = vmax.xlane.f32.xlu0 %v3975
    %v3984 = vpop.xlane.xlu0 %3983
    %3985 = vmax.xlane.f32.xlu0 %v3980
    %v3986 = vpop.xlane.xlu0 %3985
    %v3987 = vsub.f32 %v3975, %v3984
    %v3988 = vsub.f32 %v3980, %v3986
    %v3989 = vmul.f32 %v3987, 1.442695
    %v3990 = vpow.pop %v3989
    %v3991 = vmul.f32 %v3988, 1.442695
    %v3992 = vpow.pop %v3991
    %3993 = vadd.xlane.f32.xlu0 %v3990
    %v3994 = vpop.xlane.xlu0 %3993
    %3995 = vadd.xlane.f32.xlu0 %v3992
    %v3996 = vpop.xlane.xlu0 %3995
    %v3997 = vrcp.pop %v3994
    %v3998 = vmul.f32 %v3990, %v3997
    %v3999 = vrcp.pop %v3996
    %v4000 = vmul.f32 %v3992, %v3999
    %4001 = vst [vmem:[#allocation5] sm:$0xff] %v3998
    %4002 = vst [vmem:[#allocation5 + $0x8] sm:$0xff] %v4000
    // Predicated region
    $region22: #{fwd.1} parent=1 // pred_check
      _
    $region23: #{fwd.1} parent=1 // pred_check_branch
      %4004 = sbr.rel (0) target = $region25
    $region24: #{fwd.1} parent=1 // pred_region
      %s4006 = ssub.s32 256, 256
      %4007 = vsyncadd [#allocation4], %s4006
      %s4008 = sshll.u32 [#allocation5], 4
      %s4009 = int_to_ptr.vmem [resolvable:$true] %s4008
      %4014 = dma.vmem_to_hbm [thread:$0]  %s4009, 256, %s4, [#allocation4], 128, 128, 8
    $region25: #{fwd.1} parent=1 // pred_fallthru
      _
    // Predicated region
    $region26: #{fwd.1} parent=1 // pred_check
      _
    $region27: #{fwd.1} parent=1 // pred_check_branch
      %4016 = sbr.rel (0) target = $region29
    $region28: #{fwd.1} parent=1 // pred_region
      %4017 = dma.done [#allocation4], 256
    $region29: #{fwd.1} parent=1 // pred_fallthru
      _
    %4018 = vsyncpa [#allocation3], 1
    %4019 = vsyncpa [#allocation4], 1

</llo_original>
